<compile_context>
chip_gen: v7x
topology: tpu7x:2x2x1
jax: 0.10.0
libtpu: 0.0.40
codegen_flags: <defaults>
</compile_context>

<pallas_src>
import math
import jax
import jax.numpy as jnp
from jax.experimental import pallas as pl
from jax.experimental.pallas import tpu as pltpu

# ---------------- config (small, Roberta-like) ----------------
NUM_LAYERS = 2
HIDDEN = 32
NUM_HEADS = 4
HEAD_DIM = HIDDEN // NUM_HEADS
INTERMEDIATE = 64
LN_EPS = 1e-5
BATCH = 2
SEQ = 8


def _layernorm(x, gamma, beta):
    mean = jnp.mean(x, axis=-1, keepdims=True)
    var = jnp.mean((x - mean) ** 2, axis=-1, keepdims=True)
    return (x - mean) * jax.lax.rsqrt(var + LN_EPS) * gamma + beta


def roberta_encoder_kernel(h_ref, mask_ref,
                           wqkv_ref, bqkv_ref, wao_ref, bao_ref, g1_ref, be1_ref,
                           wi_ref, bi_ref, wo2_ref, bo2_ref, g2_ref, be2_ref,
                           out_ref, h_scratch):
    B, S, H, D = BATCH, SEQ, HIDDEN, HEAD_DIM
    layer = pl.program_id(0)

    # layer 0: pull the input hidden state into the persistent VMEM carry.
    @pl.when(layer == 0)
    def _():
        h_scratch[...] = h_ref[...]

    h = h_scratch[...]                                    # [B*S, H]
    add_mask = mask_ref[...]                              # [B, 1, S] additive

    # ---- fused Q/K/V projection: one [B*S,H] x [H,3H] matmul ----
    qkv = jnp.dot(h, wqkv_ref[...],
                  preferred_element_type=jnp.float32) + bqkv_ref[...]
    q = qkv[:, 0 * H:1 * H].reshape(B, S, H)
    k = qkv[:, 1 * H:2 * H].reshape(B, S, H)
    v = qkv[:, 2 * H:3 * H].reshape(B, S, H)

    wao = wao_ref[...]                                    # [H, H]
    scale = 1.0 / math.sqrt(D)

    # ---- self-attention: batched over batch, per-head lane slices of H ----
    attn = jnp.zeros((B * S, H), dtype=jnp.float32)
    for hd in range(NUM_HEADS):
        sl = slice(hd * D, (hd + 1) * D)
        qh, kh, vh = q[:, :, sl], k[:, :, sl], v[:, :, sl]          # [B, S, D]
        scores = jnp.einsum('bqd,bkd->bqk', qh, kh,
                            preferred_element_type=jnp.float32) * scale
        scores = scores + add_mask                                   # [B, S, S]
        m = jnp.max(scores, axis=-1, keepdims=True)
        e = jnp.exp(scores - m)
        p = e * pl.reciprocal(jnp.sum(e, axis=-1, keepdims=True), approx=True)
        ctx = jnp.einsum('bqk,bkd->bqd', p, vh,
                         preferred_element_type=jnp.float32)         # [B, S, D]
        # project this head straight through its slice of W_out (no concat).
        attn = attn + jnp.dot(ctx.reshape(B * S, D), wao[sl, :],
                              preferred_element_type=jnp.float32)

    # ---- attention output: bias + residual + LayerNorm ----
    attn_out = _layernorm(attn + bao_ref[...] + h, g1_ref[...], be1_ref[...])

    # ---- feed-forward: dense -> exact GELU -> dense + residual + LayerNorm ----
    inter = jnp.dot(attn_out, wi_ref[...],
                    preferred_element_type=jnp.float32) + bi_ref[...]
    inter = 0.5 * inter * (1.0 + jax.lax.erf(inter / math.sqrt(2.0)))
    ff = jnp.dot(inter, wo2_ref[...],
                 preferred_element_type=jnp.float32) + bo2_ref[...]
    new_h = _layernorm(ff + attn_out, g2_ref[...], be2_ref[...])

    # carry to the next layer (stays in VMEM across grid steps).
    h_scratch[...] = new_h

    # last layer: single HBM writeback of the final hidden state.
    @pl.when(layer == pl.num_programs(0) - 1)
    def _():
        out_ref[...] = new_h


def _stack_layer_params(all_layer_params):
    """Stack per-layer params with a leading L axis; fuse wq|wk|wv -> wqkv."""
    def cat_stack(idxs):
        return jnp.stack(
            [jnp.concatenate([p[i] for i in idxs], axis=1)
             for p in all_layer_params], axis=0)

    def stack(i):
        return jnp.stack([p[i] for p in all_layer_params], axis=0)

    wqkv = cat_stack((0, 2, 4))     # [L, H, 3H]
    bqkv = cat_stack((1, 3, 5))     # [L, 1, 3H]
    wao, bao = stack(6), stack(7)   # [L, H, H], [L, 1, H]
    g1, be1 = stack(8), stack(9)    # [L, 1, H]
    wi, bi = stack(10), stack(11)   # [L, H, I], [L, 1, I]
    wo2, bo2 = stack(12), stack(13)  # [L, I, H], [L, 1, H]
    g2, be2 = stack(14), stack(15)  # [L, 1, H]
    return (wqkv, bqkv, wao, bao, g1, be1, wi, bi, wo2, bo2, g2, be2)


def roberta_encoder(hidden_states, attention_mask, all_layer_params):
    """Matches RobertaEncoder.forward (eval mode): returns last_hidden_state."""
    B, S, H = hidden_states.shape
    L = len(all_layer_params)

    h2 = hidden_states.reshape(B * S, H)          # host-side, free
    mask3 = attention_mask.reshape(B, 1, S)       # broadcast over query rows
    stacked = _stack_layer_params(all_layer_params)

    def per_layer_spec(arr):
        d0, d1 = arr.shape[1], arr.shape[2]
        return pl.BlockSpec((None, d0, d1), lambda l: (l, 0, 0))

    in_specs = ([pl.BlockSpec((B * S, H), lambda l: (0, 0)),
                 pl.BlockSpec((B, 1, S), lambda l: (0, 0, 0))]
                + [per_layer_spec(a) for a in stacked])

    out2 = pl.pallas_call(
        roberta_encoder_kernel,
        out_shape=jax.ShapeDtypeStruct((B * S, H), jnp.float32),
        grid_spec=pltpu.PrefetchScalarGridSpec(
            num_scalar_prefetch=0,
            grid=(L,),
            in_specs=in_specs,
            out_specs=pl.BlockSpec((B * S, H), lambda l: (0, 0)),
            scratch_shapes=[pltpu.VMEM((B * S, H), jnp.float32)]),
        compiler_params=pltpu.CompilerParams(
            dimension_semantics=("arbitrary",)),   # carried hidden state
    )(h2, mask3, *stacked)
    return out2.reshape(B, S, H)


# ---------------- pure-JAX reference (for verification) ----------------
def _ref_layer(h, mask, p):
    (wq, bq, wk, bk, wv, bv, wao, bao, g1, be1, wi, bi, wo2, bo2, g2, be2) = p
    B, S, H = h.shape
    q = (h @ wq + bq).reshape(B, S, NUM_HEADS, HEAD_DIM).transpose(0, 2, 1, 3)
    k = (h @ wk + bk).reshape(B, S, NUM_HEADS, HEAD_DIM).transpose(0, 2, 1, 3)
    v = (h @ wv + bv).reshape(B, S, NUM_HEADS, HEAD_DIM).transpose(0, 2, 1, 3)
    scores = jnp.einsum('bhqd,bhkd->bhqk', q, k) / math.sqrt(HEAD_DIM)
    scores = scores + mask[:, None, None, :]
    probs = jax.nn.softmax(scores, axis=-1)
    ctx = jnp.einsum('bhqk,bhkd->bhqd', probs, v)
    ctx = ctx.transpose(0, 2, 1, 3).reshape(B, S, H)
    attn_out = ctx @ wao + bao
    attn_out = _layernorm(attn_out + h, g1, be1)
    inter = jax.nn.gelu(attn_out @ wi + bi, approximate=False)
    ff = inter @ wo2 + bo2
    return _layernorm(ff + attn_out, g2, be2)


def _ref_encoder(h, mask, all_params):
    for p in all_params:
        h = _ref_layer(h, mask, p)
    return h


# ---------------- deterministic parameter init ----------------
def init_layer_params(key):
    ks = jax.random.split(key, 10)

    def lin(k, fan_in, fan_out):
        kw, kb = jax.random.split(k)
        w = jax.random.normal(kw, (fan_in, fan_out), jnp.float32) * 0.02
        b = jax.random.normal(kb, (1, fan_out), jnp.float32) * 0.02
        return w, b

    wq, bq = lin(ks[0], HIDDEN, HIDDEN)
    wk, bk = lin(ks[1], HIDDEN, HIDDEN)
    wv, bv = lin(ks[2], HIDDEN, HIDDEN)
    wao, bao = lin(ks[3], HIDDEN, HIDDEN)
    g1 = 1.0 + 0.02 * jax.random.normal(ks[4], (1, HIDDEN), jnp.float32)
    be1 = 0.02 * jax.random.normal(ks[5], (1, HIDDEN), jnp.float32)
    wi, bi = lin(ks[6], HIDDEN, INTERMEDIATE)
    wo2, bo2 = lin(ks[7], INTERMEDIATE, HIDDEN)
    g2 = 1.0 + 0.02 * jax.random.normal(ks[8], (1, HIDDEN), jnp.float32)
    be2 = 0.02 * jax.random.normal(ks[9], (1, HIDDEN), jnp.float32)
    return (wq, bq, wk, bk, wv, bv, wao, bao, g1, be1,
            wi, bi, wo2, bo2, g2, be2)


if __name__ == "__main__":
    key = jax.random.PRNGKey(0)
    k_h, k_layers = jax.random.split(key)

    hidden_states = jax.random.normal(k_h, (BATCH, SEQ, HIDDEN), jnp.float32)

    # additive attention mask: batch 1 masks out its last two key positions
    attention_mask = jnp.zeros((BATCH, SEQ), jnp.float32)
    attention_mask = attention_mask.at[1, -2:].set(-1e9)

    layer_keys = jax.random.split(k_layers, NUM_LAYERS)
    all_layer_params = [init_layer_params(k) for k in layer_keys]

    out = roberta_encoder(hidden_states, attention_mask, all_layer_params)
    out = jax.block_until_ready(out)

    ref = _ref_encoder(hidden_states, attention_mask, all_layer_params)
    if not jnp.allclose(out, ref, atol=2e-3, rtol=2e-3):
        raise AssertionError(
            f"mismatch vs reference, max abs diff = {jnp.max(jnp.abs(out - ref))}")

    # TODO(synk): output_attentions / output_hidden_states / past_key_values /
    # use_cache branches of RobertaEncoder.forward are bookkeeping-only and not
    # materialized here (eval-mode last_hidden_state only).
    print("KERNEL_OK")
</pallas_src>

<mosaic_0001>
module attributes {stable_mosaic.version = 11 : i64} {
  func.func @roberta_encoder_kernel(%arg0: i32, %arg1: memref<16x32xf32, #tpu.memory_space<vmem>>, %arg2: memref<2x1x8xf32, #tpu.memory_space<vmem>>, %arg3: memref<1x32x96xf32, #tpu.memory_space<vmem>>, %arg4: memref<1x1x96xf32, #tpu.memory_space<vmem>>, %arg5: memref<1x32x32xf32, #tpu.memory_space<vmem>>, %arg6: memref<1x1x32xf32, #tpu.memory_space<vmem>>, %arg7: memref<1x1x32xf32, #tpu.memory_space<vmem>>, %arg8: memref<1x1x32xf32, #tpu.memory_space<vmem>>, %arg9: memref<1x32x64xf32, #tpu.memory_space<vmem>>, %arg10: memref<1x1x64xf32, #tpu.memory_space<vmem>>, %arg11: memref<1x64x32xf32, #tpu.memory_space<vmem>>, %arg12: memref<1x1x32xf32, #tpu.memory_space<vmem>>, %arg13: memref<1x1x32xf32, #tpu.memory_space<vmem>>, %arg14: memref<1x1x32xf32, #tpu.memory_space<vmem>>, %arg15: memref<16x32xf32, #tpu.memory_space<vmem>>, %arg16: memref<16x32xf32, #tpu.memory_space<vmem>>) attributes {dimension_semantics = [#tpu.dimension_semantics<arbitrary>], iteration_bounds = array<i64: 2>, scalar_prefetch = 0 : i64, scratch_operands = 1 : i64, tpu.core_type = #tpu.core_type<tc>, window_params = [{pipeline_mode = #tpu.pipeline_mode<synchronous>, transform_indices = @transform_0, window_bounds = array<i64: 16, 32>}, {pipeline_mode = #tpu.pipeline_mode<synchronous>, transform_indices = @transform_1, window_bounds = array<i64: 2, 1, 8>}, {transform_indices = @transform_2, window_bounds = array<i64: 1, 32, 96>}, {transform_indices = @transform_3, window_bounds = array<i64: 1, 1, 96>}, {transform_indices = @transform_4, window_bounds = array<i64: 1, 32, 32>}, {transform_indices = @transform_5, window_bounds = array<i64: 1, 1, 32>}, {transform_indices = @transform_6, window_bounds = array<i64: 1, 1, 32>}, {transform_indices = @transform_7, window_bounds = array<i64: 1, 1, 32>}, {transform_indices = @transform_8, window_bounds = array<i64: 1, 32, 64>}, {transform_indices = @transform_9, window_bounds = array<i64: 1, 1, 64>}, {transform_indices = @transform_10, window_bounds = array<i64: 1, 64, 32>}, {transform_indices = @transform_11, window_bounds = array<i64: 1, 1, 32>}, {transform_indices = @transform_12, window_bounds = array<i64: 1, 1, 32>}, {transform_indices = @transform_13, window_bounds = array<i64: 1, 1, 32>}, {pipeline_mode = #tpu.pipeline_mode<synchronous>, transform_indices = @transform_14, window_bounds = array<i64: 16, 32>}]} {
    %c0_i32 = arith.constant 0 : i32
    %0 = arith.cmpi eq, %arg0, %c0_i32 : i32
    %1 = arith.extui %0 : i1 to i32
    %c0_i32_0 = arith.constant 0 : i32
    %2 = arith.cmpi ne, %1, %c0_i32_0 : i32
    scf.if %2 {
      %c0_84 = arith.constant 0 : index
      %c0_85 = arith.constant 0 : index
      %197 = vector.load %arg1[%c0_84, %c0_85] : memref<16x32xf32, #tpu.memory_space<vmem>>, vector<16x32xf32>
      %c0_86 = arith.constant 0 : index
      %c0_87 = arith.constant 0 : index
      %198 = vector.load %arg16[%c0_86, %c0_87] : memref<16x32xf32, #tpu.memory_space<vmem>>, vector<16x32xf32>
      tpu.vector_store %arg16[%c0_86, %c0_87], %197 {strides = array<i32>} : memref<16x32xf32, #tpu.memory_space<vmem>>, vector<16x32xf32>,
    } else {
    }
    %c0 = arith.constant 0 : index
    %c0_1 = arith.constant 0 : index
    %3 = vector.load %arg16[%c0, %c0_1] : memref<16x32xf32, #tpu.memory_space<vmem>>, vector<16x32xf32>
    %c0_2 = arith.constant 0 : index
    %c0_3 = arith.constant 0 : index
    %c0_4 = arith.constant 0 : index
    %4 = vector.load %arg2[%c0_2, %c0_3, %c0_4] : memref<2x1x8xf32, #tpu.memory_space<vmem>>, vector<2x1x8xf32>
    %c0_5 = arith.constant 0 : index
    %c0_6 = arith.constant 0 : index
    %c0_7 = arith.constant 0 : index
    %5 = vector.load %arg3[%c0_5, %c0_6, %c0_7] : memref<1x32x96xf32, #tpu.memory_space<vmem>>, vector<1x32x96xf32>
    %6 = vector.shape_cast %5 : vector<1x32x96xf32> to vector<32x96xf32>
    %cst = arith.constant dense<0.000000e+00> : vector<16x96xf32>
    %7 = tpu.matmul %3, %6, %cst {dimension_numbers = #tpu.dot_dimension_numbers<[1], [0], [0], [1], [0, 0, 1, 1], [], []>} : vector<16x32xf32>, vector<32x96xf32>, vector<16x96xf32> -> vector<16x96xf32>
    %c0_8 = arith.constant 0 : index
    %c0_9 = arith.constant 0 : index
    %c0_10 = arith.constant 0 : index
    %8 = vector.load %arg4[%c0_8, %c0_9, %c0_10] : memref<1x1x96xf32, #tpu.memory_space<vmem>>, vector<1x1x96xf32>
    %9 = vector.shape_cast %8 : vector<1x1x96xf32> to vector<1x96xf32>
    %10 = vector.broadcast %9 : vector<1x96xf32> to vector<16x96xf32>
    %11 = arith.addf %7, %10 : vector<16x96xf32>
    %12 = vector.extract_strided_slice %11 {offsets = [0, 0], sizes = [16, 32], strides = [1, 1]} : vector<16x96xf32> to vector<16x32xf32>
    %13 = vector.shape_cast %12 : vector<16x32xf32> to vector<2x8x32xf32>
    %14 = vector.extract_strided_slice %11 {offsets = [0, 32], sizes = [16, 32], strides = [1, 1]} : vector<16x96xf32> to vector<16x32xf32>
    %15 = vector.shape_cast %14 : vector<16x32xf32> to vector<2x8x32xf32>
    %16 = vector.extract_strided_slice %11 {offsets = [0, 64], sizes = [16, 32], strides = [1, 1]} : vector<16x96xf32> to vector<16x32xf32>
    %17 = vector.shape_cast %16 : vector<16x32xf32> to vector<2x8x32xf32>
    %c0_11 = arith.constant 0 : index
    %c0_12 = arith.constant 0 : index
    %c0_13 = arith.constant 0 : index
    %18 = vector.load %arg5[%c0_11, %c0_12, %c0_13] : memref<1x32x32xf32, #tpu.memory_space<vmem>>, vector<1x32x32xf32>
    %19 = vector.shape_cast %18 : vector<1x32x32xf32> to vector<32x32xf32>
    %cst_14 = arith.constant 0.000000e+00 : f32
    %20 = vector.broadcast %cst_14 : f32 to vector<16x32xf32>
    %21 = vector.extract_strided_slice %13 {offsets = [0, 0, 0], sizes = [2, 8, 8], strides = [1, 1, 1]} : vector<2x8x32xf32> to vector<2x8x8xf32>
    %22 = vector.extract_strided_slice %15 {offsets = [0, 0, 0], sizes = [2, 8, 8], strides = [1, 1, 1]} : vector<2x8x32xf32> to vector<2x8x8xf32>
    %23 = vector.extract_strided_slice %17 {offsets = [0, 0, 0], sizes = [2, 8, 8], strides = [1, 1, 1]} : vector<2x8x32xf32> to vector<2x8x8xf32>
    "tpu.trace_start"() <{level = 10 : i32, message = "bqd,bkd->bqk"}> : () -> ()
    %cst_15 = arith.constant dense<0.000000e+00> : vector<2x8x8xf32>
    %24 = tpu.matmul %21, %22, %cst_15 {dimension_numbers = #tpu.dot_dimension_numbers<[2], [2], [1], [1], [0, 0, 0, 1, 1, 1], [0], [0]>} : vector<2x8x8xf32>, vector<2x8x8xf32>, vector<2x8x8xf32> -> vector<2x8x8xf32>
    "tpu.trace_stop"() : () -> ()
    %cst_16 = arith.constant 0.353553385 : f32
    %25 = vector.broadcast %cst_16 : f32 to vector<2x8x8xf32>
    %26 = arith.mulf %24, %25 : vector<2x8x8xf32>
    %27 = vector.broadcast %4 : vector<2x1x8xf32> to vector<2x8x8xf32>
    %28 = arith.addf %26, %27 : vector<2x8x8xf32>
    %cst_17 = arith.constant dense<0xFF800000> : vector<2x8xf32>
    %29 = vector.multi_reduction <maximumf>, %28, %cst_17 [2] : vector<2x8x8xf32> to vector<2x8xf32>
    %30 = vector.shape_cast %29 : vector<2x8xf32> to vector<2x8x1xf32>
    %31 = vector.broadcast %30 : vector<2x8x1xf32> to vector<2x8x8xf32>
    %32 = arith.subf %28, %31 : vector<2x8x8xf32>
    %33 = math.exp %32 : vector<2x8x8xf32>
    %cst_18 = arith.constant dense<0.000000e+00> : vector<2x8xf32>
    %34 = vector.multi_reduction <add>, %33, %cst_18 [2] : vector<2x8x8xf32> to vector<2x8xf32>
    %35 = vector.shape_cast %34 : vector<2x8xf32> to vector<2x8x1xf32>
    %36 = tpu.reciprocal %35 {approx = true} : vector<2x8x1xf32> -> vector<2x8x1xf32>
    %37 = vector.broadcast %36 : vector<2x8x1xf32> to vector<2x8x8xf32>
    %38 = arith.mulf %33, %37 : vector<2x8x8xf32>
    "tpu.trace_start"() <{level = 10 : i32, message = "bqk,bkd->bqd"}> : () -> ()
    %cst_19 = arith.constant dense<0.000000e+00> : vector<2x8x8xf32>
    %39 = tpu.matmul %38, %23, %cst_19 {dimension_numbers = #tpu.dot_dimension_numbers<[2], [1], [1], [2], [0, 0, 0, 1, 1, 2], [0], [0]>} : vector<2x8x8xf32>, vector<2x8x8xf32>, vector<2x8x8xf32> -> vector<2x8x8xf32>
    "tpu.trace_stop"() : () -> ()
    %40 = vector.shape_cast %39 : vector<2x8x8xf32> to vector<16x8xf32>
    %41 = vector.extract_strided_slice %19 {offsets = [0, 0], sizes = [8, 32], strides = [1, 1]} : vector<32x32xf32> to vector<8x32xf32>
    %cst_20 = arith.constant dense<0.000000e+00> : vector<16x32xf32>
    %42 = tpu.matmul %40, %41, %cst_20 {dimension_numbers = #tpu.dot_dimension_numbers<[1], [0], [0], [1], [0, 0, 1, 1], [], []>} : vector<16x8xf32>, vector<8x32xf32>, vector<16x32xf32> -> vector<16x32xf32>
    %43 = arith.addf %20, %42 : vector<16x32xf32>
    %44 = vector.extract_strided_slice %13 {offsets = [0, 0, 8], sizes = [2, 8, 8], strides = [1, 1, 1]} : vector<2x8x32xf32> to vector<2x8x8xf32>
    %45 = vector.extract_strided_slice %15 {offsets = [0, 0, 8], sizes = [2, 8, 8], strides = [1, 1, 1]} : vector<2x8x32xf32> to vector<2x8x8xf32>
    %46 = vector.extract_strided_slice %17 {offsets = [0, 0, 8], sizes = [2, 8, 8], strides = [1, 1, 1]} : vector<2x8x32xf32> to vector<2x8x8xf32>
    "tpu.trace_start"() <{level = 10 : i32, message = "bqd,bkd->bqk"}> : () -> ()
    %cst_21 = arith.constant dense<0.000000e+00> : vector<2x8x8xf32>
    %47 = tpu.matmul %44, %45, %cst_21 {dimension_numbers = #tpu.dot_dimension_numbers<[2], [2], [1], [1], [0, 0, 0, 1, 1, 1], [0], [0]>} : vector<2x8x8xf32>, vector<2x8x8xf32>, vector<2x8x8xf32> -> vector<2x8x8xf32>
    "tpu.trace_stop"() : () -> ()
    %cst_22 = arith.constant 0.353553385 : f32
    %48 = vector.broadcast %cst_22 : f32 to vector<2x8x8xf32>
    %49 = arith.mulf %47, %48 : vector<2x8x8xf32>
    %50 = vector.broadcast %4 : vector<2x1x8xf32> to vector<2x8x8xf32>
    %51 = arith.addf %49, %50 : vector<2x8x8xf32>
    %cst_23 = arith.constant dense<0xFF800000> : vector<2x8xf32>
    %52 = vector.multi_reduction <maximumf>, %51, %cst_23 [2] : vector<2x8x8xf32> to vector<2x8xf32>
    %53 = vector.shape_cast %52 : vector<2x8xf32> to vector<2x8x1xf32>
    %54 = vector.broadcast %53 : vector<2x8x1xf32> to vector<2x8x8xf32>
    %55 = arith.subf %51, %54 : vector<2x8x8xf32>
    %56 = math.exp %55 : vector<2x8x8xf32>
    %cst_24 = arith.constant dense<0.000000e+00> : vector<2x8xf32>
    %57 = vector.multi_reduction <add>, %56, %cst_24 [2] : vector<2x8x8xf32> to vector<2x8xf32>
    %58 = vector.shape_cast %57 : vector<2x8xf32> to vector<2x8x1xf32>
    %59 = tpu.reciprocal %58 {approx = true} : vector<2x8x1xf32> -> vector<2x8x1xf32>
    %60 = vector.broadcast %59 : vector<2x8x1xf32> to vector<2x8x8xf32>
    %61 = arith.mulf %56, %60 : vector<2x8x8xf32>
    "tpu.trace_start"() <{level = 10 : i32, message = "bqk,bkd->bqd"}> : () -> ()
    %cst_25 = arith.constant dense<0.000000e+00> : vector<2x8x8xf32>
    %62 = tpu.matmul %61, %46, %cst_25 {dimension_numbers = #tpu.dot_dimension_numbers<[2], [1], [1], [2], [0, 0, 0, 1, 1, 2], [0], [0]>} : vector<2x8x8xf32>, vector<2x8x8xf32>, vector<2x8x8xf32> -> vector<2x8x8xf32>
    "tpu.trace_stop"() : () -> ()
    %63 = vector.shape_cast %62 : vector<2x8x8xf32> to vector<16x8xf32>
    %64 = vector.extract_strided_slice %19 {offsets = [8, 0], sizes = [8, 32], strides = [1, 1]} : vector<32x32xf32> to vector<8x32xf32>
    %cst_26 = arith.constant dense<0.000000e+00> : vector<16x32xf32>
    %65 = tpu.matmul %63, %64, %cst_26 {dimension_numbers = #tpu.dot_dimension_numbers<[1], [0], [0], [1], [0, 0, 1, 1], [], []>} : vector<16x8xf32>, vector<8x32xf32>, vector<16x32xf32> -> vector<16x32xf32>
    %66 = arith.addf %43, %65 : vector<16x32xf32>
    %67 = vector.extract_strided_slice %13 {offsets = [0, 0, 16], sizes = [2, 8, 8], strides = [1, 1, 1]} : vector<2x8x32xf32> to vector<2x8x8xf32>
    %68 = vector.extract_strided_slice %15 {offsets = [0, 0, 16], sizes = [2, 8, 8], strides = [1, 1, 1]} : vector<2x8x32xf32> to vector<2x8x8xf32>
    %69 = vector.extract_strided_slice %17 {offsets = [0, 0, 16], sizes = [2, 8, 8], strides = [1, 1, 1]} : vector<2x8x32xf32> to vector<2x8x8xf32>
    "tpu.trace_start"() <{level = 10 : i32, message = "bqd,bkd->bqk"}> : () -> ()
    %cst_27 = arith.constant dense<0.000000e+00> : vector<2x8x8xf32>
    %70 = tpu.matmul %67, %68, %cst_27 {dimension_numbers = #tpu.dot_dimension_numbers<[2], [2], [1], [1], [0, 0, 0, 1, 1, 1], [0], [0]>} : vector<2x8x8xf32>, vector<2x8x8xf32>, vector<2x8x8xf32> -> vector<2x8x8xf32>
    "tpu.trace_stop"() : () -> ()
    %cst_28 = arith.constant 0.353553385 : f32
    %71 = vector.broadcast %cst_28 : f32 to vector<2x8x8xf32>
    %72 = arith.mulf %70, %71 : vector<2x8x8xf32>
    %73 = vector.broadcast %4 : vector<2x1x8xf32> to vector<2x8x8xf32>
    %74 = arith.addf %72, %73 : vector<2x8x8xf32>
    %cst_29 = arith.constant dense<0xFF800000> : vector<2x8xf32>
    %75 = vector.multi_reduction <maximumf>, %74, %cst_29 [2] : vector<2x8x8xf32> to vector<2x8xf32>
    %76 = vector.shape_cast %75 : vector<2x8xf32> to vector<2x8x1xf32>
    %77 = vector.broadcast %76 : vector<2x8x1xf32> to vector<2x8x8xf32>
    %78 = arith.subf %74, %77 : vector<2x8x8xf32>
    %79 = math.exp %78 : vector<2x8x8xf32>
    %cst_30 = arith.constant dense<0.000000e+00> : vector<2x8xf32>
    %80 = vector.multi_reduction <add>, %79, %cst_30 [2] : vector<2x8x8xf32> to vector<2x8xf32>
    %81 = vector.shape_cast %80 : vector<2x8xf32> to vector<2x8x1xf32>
    %82 = tpu.reciprocal %81 {approx = true} : vector<2x8x1xf32> -> vector<2x8x1xf32>
    %83 = vector.broadcast %82 : vector<2x8x1xf32> to vector<2x8x8xf32>
    %84 = arith.mulf %79, %83 : vector<2x8x8xf32>
    "tpu.trace_start"() <{level = 10 : i32, message = "bqk,bkd->bqd"}> : () -> ()
    %cst_31 = arith.constant dense<0.000000e+00> : vector<2x8x8xf32>
    %85 = tpu.matmul %84, %69, %cst_31 {dimension_numbers = #tpu.dot_dimension_numbers<[2], [1], [1], [2], [0, 0, 0, 1, 1, 2], [0], [0]>} : vector<2x8x8xf32>, vector<2x8x8xf32>, vector<2x8x8xf32> -> vector<2x8x8xf32>
    "tpu.trace_stop"() : () -> ()
    %86 = vector.shape_cast %85 : vector<2x8x8xf32> to vector<16x8xf32>
    %87 = vector.extract_strided_slice %19 {offsets = [16, 0], sizes = [8, 32], strides = [1, 1]} : vector<32x32xf32> to vector<8x32xf32>
    %cst_32 = arith.constant dense<0.000000e+00> : vector<16x32xf32>
    %88 = tpu.matmul %86, %87, %cst_32 {dimension_numbers = #tpu.dot_dimension_numbers<[1], [0], [0], [1], [0, 0, 1, 1], [], []>} : vector<16x8xf32>, vector<8x32xf32>, vector<16x32xf32> -> vector<16x32xf32>
    %89 = arith.addf %66, %88 : vector<16x32xf32>
    %90 = vector.extract_strided_slice %13 {offsets = [0, 0, 24], sizes = [2, 8, 8], strides = [1, 1, 1]} : vector<2x8x32xf32> to vector<2x8x8xf32>
    %91 = vector.extract_strided_slice %15 {offsets = [0, 0, 24], sizes = [2, 8, 8], strides = [1, 1, 1]} : vector<2x8x32xf32> to vector<2x8x8xf32>
    %92 = vector.extract_strided_slice %17 {offsets = [0, 0, 24], sizes = [2, 8, 8], strides = [1, 1, 1]} : vector<2x8x32xf32> to vector<2x8x8xf32>
    "tpu.trace_start"() <{level = 10 : i32, message = "bqd,bkd->bqk"}> : () -> ()
    %cst_33 = arith.constant dense<0.000000e+00> : vector<2x8x8xf32>
    %93 = tpu.matmul %90, %91, %cst_33 {dimension_numbers = #tpu.dot_dimension_numbers<[2], [2], [1], [1], [0, 0, 0, 1, 1, 1], [0], [0]>} : vector<2x8x8xf32>, vector<2x8x8xf32>, vector<2x8x8xf32> -> vector<2x8x8xf32>
    "tpu.trace_stop"() : () -> ()
    %cst_34 = arith.constant 0.353553385 : f32
    %94 = vector.broadcast %cst_34 : f32 to vector<2x8x8xf32>
    %95 = arith.mulf %93, %94 : vector<2x8x8xf32>
    %96 = vector.broadcast %4 : vector<2x1x8xf32> to vector<2x8x8xf32>
    %97 = arith.addf %95, %96 : vector<2x8x8xf32>
    %cst_35 = arith.constant dense<0xFF800000> : vector<2x8xf32>
    %98 = vector.multi_reduction <maximumf>, %97, %cst_35 [2] : vector<2x8x8xf32> to vector<2x8xf32>
    %99 = vector.shape_cast %98 : vector<2x8xf32> to vector<2x8x1xf32>
    %100 = vector.broadcast %99 : vector<2x8x1xf32> to vector<2x8x8xf32>
    %101 = arith.subf %97, %100 : vector<2x8x8xf32>
    %102 = math.exp %101 : vector<2x8x8xf32>
    %cst_36 = arith.constant dense<0.000000e+00> : vector<2x8xf32>
    %103 = vector.multi_reduction <add>, %102, %cst_36 [2] : vector<2x8x8xf32> to vector<2x8xf32>
    %104 = vector.shape_cast %103 : vector<2x8xf32> to vector<2x8x1xf32>
    %105 = tpu.reciprocal %104 {approx = true} : vector<2x8x1xf32> -> vector<2x8x1xf32>
    %106 = vector.broadcast %105 : vector<2x8x1xf32> to vector<2x8x8xf32>
    %107 = arith.mulf %102, %106 : vector<2x8x8xf32>
    "tpu.trace_start"() <{level = 10 : i32, message = "bqk,bkd->bqd"}> : () -> ()
    %cst_37 = arith.constant dense<0.000000e+00> : vector<2x8x8xf32>
    %108 = tpu.matmul %107, %92, %cst_37 {dimension_numbers = #tpu.dot_dimension_numbers<[2], [1], [1], [2], [0, 0, 0, 1, 1, 2], [0], [0]>} : vector<2x8x8xf32>, vector<2x8x8xf32>, vector<2x8x8xf32> -> vector<2x8x8xf32>
    "tpu.trace_stop"() : () -> ()
    %109 = vector.shape_cast %108 : vector<2x8x8xf32> to vector<16x8xf32>
    %110 = vector.extract_strided_slice %19 {offsets = [24, 0], sizes = [8, 32], strides = [1, 1]} : vector<32x32xf32> to vector<8x32xf32>
    %cst_38 = arith.constant dense<0.000000e+00> : vector<16x32xf32>
    %111 = tpu.matmul %109, %110, %cst_38 {dimension_numbers = #tpu.dot_dimension_numbers<[1], [0], [0], [1], [0, 0, 1, 1], [], []>} : vector<16x8xf32>, vector<8x32xf32>, vector<16x32xf32> -> vector<16x32xf32>
    %112 = arith.addf %89, %111 : vector<16x32xf32>
    %c0_39 = arith.constant 0 : index
    %c0_40 = arith.constant 0 : index
    %c0_41 = arith.constant 0 : index
    %113 = vector.load %arg6[%c0_39, %c0_40, %c0_41] : memref<1x1x32xf32, #tpu.memory_space<vmem>>, vector<1x1x32xf32>
    %114 = vector.shape_cast %113 : vector<1x1x32xf32> to vector<1x32xf32>
    %115 = vector.broadcast %114 : vector<1x32xf32> to vector<16x32xf32>
    %116 = arith.addf %112, %115 : vector<16x32xf32>
    %117 = arith.addf %116, %3 : vector<16x32xf32>
    %c0_42 = arith.constant 0 : index
    %c0_43 = arith.constant 0 : index
    %c0_44 = arith.constant 0 : index
    %118 = vector.load %arg7[%c0_42, %c0_43, %c0_44] : memref<1x1x32xf32, #tpu.memory_space<vmem>>, vector<1x1x32xf32>
    %119 = vector.shape_cast %118 : vector<1x1x32xf32> to vector<1x32xf32>
    %c0_45 = arith.constant 0 : index
    %c0_46 = arith.constant 0 : index
    %c0_47 = arith.constant 0 : index
    %120 = vector.load %arg8[%c0_45, %c0_46, %c0_47] : memref<1x1x32xf32, #tpu.memory_space<vmem>>, vector<1x1x32xf32>
    %121 = vector.shape_cast %120 : vector<1x1x32xf32> to vector<1x32xf32>
    %cst_48 = arith.constant dense<0.000000e+00> : vector<16xf32>
    %122 = vector.multi_reduction <add>, %117, %cst_48 [1] : vector<16x32xf32> to vector<16xf32>
    %123 = vector.shape_cast %122 : vector<16xf32> to vector<16x1xf32>
    %cst_49 = arith.constant 3.200000e+01 : f32
    %124 = vector.broadcast %cst_49 : f32 to vector<16x1xf32>
    %125 = arith.divf %123, %124 : vector<16x1xf32>
    %126 = vector.broadcast %125 : vector<16x1xf32> to vector<16x32xf32>
    %127 = arith.subf %117, %126 : vector<16x32xf32>
    %128 = arith.mulf %127, %127 : vector<16x32xf32>
    %cst_50 = arith.constant dense<0.000000e+00> : vector<16xf32>
    %129 = vector.multi_reduction <add>, %128, %cst_50 [1] : vector<16x32xf32> to vector<16xf32>
    %130 = vector.shape_cast %129 : vector<16xf32> to vector<16x1xf32>
    %cst_51 = arith.constant 3.200000e+01 : f32
    %131 = vector.broadcast %cst_51 : f32 to vector<16x1xf32>
    %132 = arith.divf %130, %131 : vector<16x1xf32>
    %133 = vector.broadcast %125 : vector<16x1xf32> to vector<16x32xf32>
    %134 = arith.subf %117, %133 : vector<16x32xf32>
    %cst_52 = arith.constant 9.99999974E-6 : f32
    %135 = vector.broadcast %cst_52 : f32 to vector<16x1xf32>
    %136 = arith.addf %132, %135 : vector<16x1xf32>
    %137 = math.rsqrt %136 : vector<16x1xf32>
    %138 = vector.broadcast %137 : vector<16x1xf32> to vector<16x32xf32>
    %139 = arith.mulf %134, %138 : vector<16x32xf32>
    %140 = vector.broadcast %119 : vector<1x32xf32> to vector<16x32xf32>
    %141 = arith.mulf %139, %140 : vector<16x32xf32>
    %142 = vector.broadcast %121 : vector<1x32xf32> to vector<16x32xf32>
    %143 = arith.addf %141, %142 : vector<16x32xf32>
    %c0_53 = arith.constant 0 : index
    %c0_54 = arith.constant 0 : index
    %c0_55 = arith.constant 0 : index
    %144 = vector.load %arg9[%c0_53, %c0_54, %c0_55] : memref<1x32x64xf32, #tpu.memory_space<vmem>>, vector<1x32x64xf32>
    %145 = vector.shape_cast %144 : vector<1x32x64xf32> to vector<32x64xf32>
    %cst_56 = arith.constant dense<0.000000e+00> : vector<16x64xf32>
    %146 = tpu.matmul %143, %145, %cst_56 {dimension_numbers = #tpu.dot_dimension_numbers<[1], [0], [0], [1], [0, 0, 1, 1], [], []>} : vector<16x32xf32>, vector<32x64xf32>, vector<16x64xf32> -> vector<16x64xf32>
    %c0_57 = arith.constant 0 : index
    %c0_58 = arith.constant 0 : index
    %c0_59 = arith.constant 0 : index
    %147 = vector.load %arg10[%c0_57, %c0_58, %c0_59] : memref<1x1x64xf32, #tpu.memory_space<vmem>>, vector<1x1x64xf32>
    %148 = vector.shape_cast %147 : vector<1x1x64xf32> to vector<1x64xf32>
    %149 = vector.broadcast %148 : vector<1x64xf32> to vector<16x64xf32>
    %150 = arith.addf %146, %149 : vector<16x64xf32>
    %cst_60 = arith.constant 5.000000e-01 : f32
    %151 = vector.broadcast %cst_60 : f32 to vector<16x64xf32>
    %152 = arith.mulf %151, %150 : vector<16x64xf32>
    %cst_61 = arith.constant 1.41421354 : f32
    %153 = vector.broadcast %cst_61 : f32 to vector<16x64xf32>
    %154 = arith.divf %150, %153 : vector<16x64xf32>
    %155 = math.erf %154 : vector<16x64xf32>
    %cst_62 = arith.constant 1.000000e+00 : f32
    %156 = vector.broadcast %cst_62 : f32 to vector<16x64xf32>
    %157 = arith.addf %156, %155 : vector<16x64xf32>
    %158 = arith.mulf %152, %157 : vector<16x64xf32>
    %c0_63 = arith.constant 0 : index
    %c0_64 = arith.constant 0 : index
    %c0_65 = arith.constant 0 : index
    %159 = vector.load %arg11[%c0_63, %c0_64, %c0_65] : memref<1x64x32xf32, #tpu.memory_space<vmem>>, vector<1x64x32xf32>
    %160 = vector.shape_cast %159 : vector<1x64x32xf32> to vector<64x32xf32>
    %cst_66 = arith.constant dense<0.000000e+00> : vector<16x32xf32>
    %161 = tpu.matmul %158, %160, %cst_66 {dimension_numbers = #tpu.dot_dimension_numbers<[1], [0], [0], [1], [0, 0, 1, 1], [], []>} : vector<16x64xf32>, vector<64x32xf32>, vector<16x32xf32> -> vector<16x32xf32>
    %c0_67 = arith.constant 0 : index
    %c0_68 = arith.constant 0 : index
    %c0_69 = arith.constant 0 : index
    %162 = vector.load %arg12[%c0_67, %c0_68, %c0_69] : memref<1x1x32xf32, #tpu.memory_space<vmem>>, vector<1x1x32xf32>
    %163 = vector.shape_cast %162 : vector<1x1x32xf32> to vector<1x32xf32>
    %164 = vector.broadcast %163 : vector<1x32xf32> to vector<16x32xf32>
    %165 = arith.addf %161, %164 : vector<16x32xf32>
    %166 = arith.addf %165, %143 : vector<16x32xf32>
    %c0_70 = arith.constant 0 : index
    %c0_71 = arith.constant 0 : index
    %c0_72 = arith.constant 0 : index
    %167 = vector.load %arg13[%c0_70, %c0_71, %c0_72] : memref<1x1x32xf32, #tpu.memory_space<vmem>>, vector<1x1x32xf32>
    %168 = vector.shape_cast %167 : vector<1x1x32xf32> to vector<1x32xf32>
    %c0_73 = arith.constant 0 : index
    %c0_74 = arith.constant 0 : index
    %c0_75 = arith.constant 0 : index
    %169 = vector.load %arg14[%c0_73, %c0_74, %c0_75] : memref<1x1x32xf32, #tpu.memory_space<vmem>>, vector<1x1x32xf32>
    %170 = vector.shape_cast %169 : vector<1x1x32xf32> to vector<1x32xf32>
    %cst_76 = arith.constant dense<0.000000e+00> : vector<16xf32>
    %171 = vector.multi_reduction <add>, %166, %cst_76 [1] : vector<16x32xf32> to vector<16xf32>
    %172 = vector.shape_cast %171 : vector<16xf32> to vector<16x1xf32>
    %cst_77 = arith.constant 3.200000e+01 : f32
    %173 = vector.broadcast %cst_77 : f32 to vector<16x1xf32>
    %174 = arith.divf %172, %173 : vector<16x1xf32>
    %175 = vector.broadcast %174 : vector<16x1xf32> to vector<16x32xf32>
    %176 = arith.subf %166, %175 : vector<16x32xf32>
    %177 = arith.mulf %176, %176 : vector<16x32xf32>
    %cst_78 = arith.constant dense<0.000000e+00> : vector<16xf32>
    %178 = vector.multi_reduction <add>, %177, %cst_78 [1] : vector<16x32xf32> to vector<16xf32>
    %179 = vector.shape_cast %178 : vector<16xf32> to vector<16x1xf32>
    %cst_79 = arith.constant 3.200000e+01 : f32
    %180 = vector.broadcast %cst_79 : f32 to vector<16x1xf32>
    %181 = arith.divf %179, %180 : vector<16x1xf32>
    %182 = vector.broadcast %174 : vector<16x1xf32> to vector<16x32xf32>
    %183 = arith.subf %166, %182 : vector<16x32xf32>
    %cst_80 = arith.constant 9.99999974E-6 : f32
    %184 = vector.broadcast %cst_80 : f32 to vector<16x1xf32>
    %185 = arith.addf %181, %184 : vector<16x1xf32>
    %186 = math.rsqrt %185 : vector<16x1xf32>
    %187 = vector.broadcast %186 : vector<16x1xf32> to vector<16x32xf32>
    %188 = arith.mulf %183, %187 : vector<16x32xf32>
    %189 = vector.broadcast %168 : vector<1x32xf32> to vector<16x32xf32>
    %190 = arith.mulf %188, %189 : vector<16x32xf32>
    %191 = vector.broadcast %170 : vector<1x32xf32> to vector<16x32xf32>
    %192 = arith.addf %190, %191 : vector<16x32xf32>
    %c0_81 = arith.constant 0 : index
    %c0_82 = arith.constant 0 : index
    %193 = vector.load %arg16[%c0_81, %c0_82] : memref<16x32xf32, #tpu.memory_space<vmem>>, vector<16x32xf32>
    tpu.vector_store %arg16[%c0_81, %c0_82], %192 {strides = array<i32>} : memref<16x32xf32, #tpu.memory_space<vmem>>, vector<16x32xf32>,
    %c1_i32 = arith.constant 1 : i32
    %194 = arith.cmpi eq, %arg0, %c1_i32 : i32
    %195 = arith.extui %194 : i1 to i32
    %c0_i32_83 = arith.constant 0 : i32
    %196 = arith.cmpi ne, %195, %c0_i32_83 : i32
    scf.if %196 {
      %c0_84 = arith.constant 0 : index
      %c0_85 = arith.constant 0 : index
      %197 = vector.load %arg15[%c0_84, %c0_85] : memref<16x32xf32, #tpu.memory_space<vmem>>, vector<16x32xf32>
      tpu.vector_store %arg15[%c0_84, %c0_85], %192 {strides = array<i32>} : memref<16x32xf32, #tpu.memory_space<vmem>>, vector<16x32xf32>,
    } else {
    }
    return
  }
  func.func @transform_0(%arg0: i32) -> (i32, i32) {
    %c0_i32 = arith.constant 0 : i32
    %c0_i32_0 = arith.constant 0 : i32
    %c0_i32_1 = arith.constant 0 : i32
    return %c0_i32, %c0_i32_0 : i32, i32
  }
  func.func @transform_1(%arg0: i32) -> (i32, i32, i32) {
    %c0_i32 = arith.constant 0 : i32
    %c0_i32_0 = arith.constant 0 : i32
    %c0_i32_1 = arith.constant 0 : i32
    %c0_i32_2 = arith.constant 0 : i32
    return %c0_i32, %c0_i32_0, %c0_i32_1 : i32, i32, i32
  }
  func.func @transform_2(%arg0: i32) -> (i32, i32, i32) {
    %c0_i32 = arith.constant 0 : i32
    %c0_i32_0 = arith.constant 0 : i32
    %c0_i32_1 = arith.constant 0 : i32
    return %arg0, %c0_i32, %c0_i32_0 : i32, i32, i32
  }
  func.func @transform_3(%arg0: i32) -> (i32, i32, i32) {
    %c0_i32 = arith.constant 0 : i32
    %c0_i32_0 = arith.constant 0 : i32
    %c0_i32_1 = arith.constant 0 : i32
    return %arg0, %c0_i32, %c0_i32_0 : i32, i32, i32
  }
  func.func @transform_4(%arg0: i32) -> (i32, i32, i32) {
    %c0_i32 = arith.constant 0 : i32
    %c0_i32_0 = arith.constant 0 : i32
    %c0_i32_1 = arith.constant 0 : i32
    return %arg0, %c0_i32, %c0_i32_0 : i32, i32, i32
  }
  func.func @transform_5(%arg0: i32) -> (i32, i32, i32) {
    %c0_i32 = arith.constant 0 : i32
    %c0_i32_0 = arith.constant 0 : i32
    %c0_i32_1 = arith.constant 0 : i32
    return %arg0, %c0_i32, %c0_i32_0 : i32, i32, i32
  }
  func.func @transform_6(%arg0: i32) -> (i32, i32, i32) {
    %c0_i32 = arith.constant 0 : i32
    %c0_i32_0 = arith.constant 0 : i32
    %c0_i32_1 = arith.constant 0 : i32
    return %arg0, %c0_i32, %c0_i32_0 : i32, i32, i32
  }
  func.func @transform_7(%arg0: i32) -> (i32, i32, i32) {
    %c0_i32 = arith.constant 0 : i32
    %c0_i32_0 = arith.constant 0 : i32
    %c0_i32_1 = arith.constant 0 : i32
    return %arg0, %c0_i32, %c0_i32_0 : i32, i32, i32
  }
  func.func @transform_8(%arg0: i32) -> (i32, i32, i32) {
    %c0_i32 = arith.constant 0 : i32
    %c0_i32_0 = arith.constant 0 : i32
    %c0_i32_1 = arith.constant 0 : i32
    return %arg0, %c0_i32, %c0_i32_0 : i32, i32, i32
  }
  func.func @transform_9(%arg0: i32) -> (i32, i32, i32) {
    %c0_i32 = arith.constant 0 : i32
    %c0_i32_0 = arith.constant 0 : i32
    %c0_i32_1 = arith.constant 0 : i32
    return %arg0, %c0_i32, %c0_i32_0 : i32, i32, i32
  }
  func.func @transform_10(%arg0: i32) -> (i32, i32, i32) {
    %c0_i32 = arith.constant 0 : i32
    %c0_i32_0 = arith.constant 0 : i32
    %c0_i32_1 = arith.constant 0 : i32
    return %arg0, %c0_i32, %c0_i32_0 : i32, i32, i32
  }
  func.func @transform_11(%arg0: i32) -> (i32, i32, i32) {
    %c0_i32 = arith.constant 0 : i32
    %c0_i32_0 = arith.constant 0 : i32
    %c0_i32_1 = arith.constant 0 : i32
    return %arg0, %c0_i32, %c0_i32_0 : i32, i32, i32
  }
  func.func @transform_12(%arg0: i32) -> (i32, i32, i32) {
    %c0_i32 = arith.constant 0 : i32
    %c0_i32_0 = arith.constant 0 : i32
    %c0_i32_1 = arith.constant 0 : i32
    return %arg0, %c0_i32, %c0_i32_0 : i32, i32, i32
  }
  func.func @transform_13(%arg0: i32) -> (i32, i32, i32) {
    %c0_i32 = arith.constant 0 : i32
    %c0_i32_0 = arith.constant 0 : i32
    %c0_i32_1 = arith.constant 0 : i32
    return %arg0, %c0_i32, %c0_i32_0 : i32, i32, i32
  }
  func.func @transform_14(%arg0: i32) -> (i32, i32) {
    %c0_i32 = arith.constant 0 : i32
    %c0_i32_0 = arith.constant 0 : i32
    %c0_i32_1 = arith.constant 0 : i32
    return %c0_i32, %c0_i32_0 : i32, i32
  }
}

</mosaic_0001>

<llo_original>
// kernel: tpu_custom_call.1
$region0: #{tpu_custom_call.1}
  #allocation0 [shape = 'u32[]', space=smem, size = 0x4, offset = 0x4, fixed_abs, tag = 'smem constant byte address 0x4 - core index']
  #allocation1 [shape = 'u32[144,128]{1,0:T(1,128)}', space=vmem, size = 0x12000, scoped, tag = 'internal scratch']
  #allocation2 [shape = 'f32[16,32]{1,0:T(8,128)}', space=vmem, size = 0x2000, scoped, tag = 'scratch operand']
  %s0 = inlined_call_operand.hbm [shape: f32[16,32], index: 0, kind: input, shape index: {}]
  %s1 = inlined_call_operand.vmem [shape: f32[2,1,8], index: 1, kind: input, shape index: {}]
  %s2 = inlined_call_operand.vmem [shape: f32[2,32,96], index: 2, kind: input, shape index: {}]
  %s3 = inlined_call_operand.vmem [shape: f32[2,1,96], index: 3, kind: input, shape index: {}]
  %s4 = inlined_call_operand.vmem [shape: f32[2,32,32], index: 4, kind: input, shape index: {}]
  %s5 = inlined_call_operand.vmem [shape: f32[2,1,32], index: 5, kind: input, shape index: {}]
  %s6 = inlined_call_operand.vmem [shape: f32[2,1,32], index: 6, kind: input, shape index: {}]
  %s7 = inlined_call_operand.vmem [shape: f32[2,1,32], index: 7, kind: input, shape index: {}]
  %s8 = inlined_call_operand.vmem [shape: f32[2,32,64], index: 8, kind: input, shape index: {}]
  %s9 = inlined_call_operand.vmem [shape: f32[2,1,64], index: 9, kind: input, shape index: {}]
  %s10 = inlined_call_operand.vmem [shape: f32[2,64,32], index: 10, kind: input, shape index: {}]
  %s11 = inlined_call_operand.vmem [shape: f32[2,1,32], index: 11, kind: input, shape index: {}]
  %s12 = inlined_call_operand.vmem [shape: f32[2,1,32], index: 12, kind: input, shape index: {}]
  %s13 = inlined_call_operand.vmem [shape: f32[2,1,32], index: 13, kind: input, shape index: {}]
  %s14 = inlined_call_operand.hbm [shape: f32[16,32], index: 14, kind: output, shape index: {}]
  %s15 = sld [smem:[#allocation0]]
  $region101: #{tpu_custom_call.1} parent=0
    _
  %s17 = ssub.s32 1, %s15
  %s18 = scalar_select 0, %s17, %s15
  $region1: #{tpu_custom_call.1} parent=0
    #allocation3 [shape = 'u8[8192]{0}', space=vmem, size = 0x2000, scoped, tag = 'input window, operand 0, single buffered']
    #allocation4 [shape = 's32[2]{0}', space=sflag, size = 0x8, scoped, tag = 'scoped memory for tpu_custom_call.1']
    #allocation5 [shape = 's32[2]{0}', space=sflag, size = 0x8, scoped, tag = 'scoped memory for tpu_custom_call.1']
    #allocation6 [shape = 'u8[8192]{0}', space=vmem, size = 0x2000, scoped, tag = 'output window, operand 0, single buffered']
    %19 = vsyncpa [#allocation4], 0
    %20 = vsyncpa [#allocation5], 0
    loop: start=0, step=1, limit=4
    $region2: #{tpu_custom_call.1} parent=1 // loop_pre_header
      _
    $region3: #{tpu_custom_call.1} parent=1 // loop_header
      %s22 = sphi 0, %s26
      %p23 = scmp.ge.s32.totalorder %s22, 4
      %s30 = sphi 0, %s30
      %s32 = sphi 0, %s30
      %s33 = sphi 0, %s32
      %s47 = sphi 0, %s33
      %s51 = sphi 0, %s51
      %s53 = sphi 0, %s51
      %s54 = sphi 0, %s53
      %s68 = sphi 0, %s54
      %s74 = sphi 0, %s76
      %s77 = sphi 0, %s74
      %s78 = sphi 0, %s77
      %s94 = sphi 0, %s78
      %s100 = sphi 0, %s102
      %s103 = sphi 0, %s100
      %s104 = sphi 0, %s103
      %s120 = sphi 0, %s104
      %s126 = sphi 0, %s128
      %s129 = sphi 0, %s126
      %s130 = sphi 0, %s129
      %s146 = sphi 0, %s130
      %s152 = sphi 0, %s154
      %s155 = sphi 0, %s152
      %s156 = sphi 0, %s155
      %s172 = sphi 0, %s156
      %s178 = sphi 0, %s180
      %s181 = sphi 0, %s178
      %s182 = sphi 0, %s181
      %s198 = sphi 0, %s182
      %s204 = sphi 0, %s206
      %s207 = sphi 0, %s204
      %s208 = sphi 0, %s207
      %s224 = sphi 0, %s208
      %s230 = sphi 0, %s232
      %s233 = sphi 0, %s230
      %s234 = sphi 0, %s233
      %s250 = sphi 0, %s234
      %s256 = sphi 0, %s258
      %s259 = sphi 0, %s256
      %s260 = sphi 0, %s259
      %s276 = sphi 0, %s260
      %s282 = sphi 0, %s284
      %s285 = sphi 0, %s282
      %s286 = sphi 0, %s285
      %s302 = sphi 0, %s286
      %s308 = sphi 0, %s310
      %s311 = sphi 0, %s308
      %s312 = sphi 0, %s311
      %s328 = sphi 0, %s312
      %s334 = sphi 0, %s336
      %s337 = sphi 0, %s334
      %s338 = sphi 0, %s337
      %s354 = sphi 0, %s338
      %s360 = sphi 0, %s362
      %s363 = sphi 0, %s360
      %s364 = sphi 0, %s363
      %s380 = sphi 0, %s364
      %s384 = sphi 0, %s384
      %s386 = sphi 0, %s384
      %s387 = sphi 0, %s386
      %s401 = sphi 0, %s387
    $region4: #{tpu_custom_call.1} parent=1 // loop_header_branch
      %25 = sbr.rel (%p23) target = $region8
    $region5: #{tpu_custom_call.1} parent=1 // loop_body
      %s27 = ssub.s32 %s22, 1
      %s28 = ssub.s32 %s22, 2
      %s29 = sadd.s32 %s22, 1
      %s31 = sadd.s32 %s30, 1
      %p34 = scmp.eq.s32.totalorder %s22, 1
      %p35 = scmp.ne.s32.totalorder %s30, %s32
      %p36 = scmp.eq.s32.totalorder %s22, 0
      %p37 = por %p35, %p36
      %p38 = scmp.ne.s32.totalorder %s30, %s32
      %p39 = scmp.eq.s32.totalorder %s27, 1
      %p40 = por %p38, %p39
      %p41 = scmp.ne.s32.totalorder %s32, %s33
      %p42 = scmp.eq.s32.totalorder %s27, 0
      %p43 = por %p41, %p42
      %p44 = scmp.ne.s32.totalorder %s32, %s33
      %p45 = scmp.eq.s32.totalorder %s28, 1
      %p46 = por %p44, %p45
      %p48 = scmp.ne.s32.totalorder %s33, %s47
      %p49 = scmp.eq.s32.totalorder %s28, 0
      %p50 = por %p48, %p49
      %s52 = sadd.s32 %s51, 1
      %p55 = scmp.eq.s32.totalorder %s22, 1
      %p56 = scmp.ne.s32.totalorder %s51, %s53
      %p57 = scmp.eq.s32.totalorder %s22, 0
      %p58 = por %p56, %p57
      %p59 = scmp.ne.s32.totalorder %s51, %s53
      %p60 = scmp.eq.s32.totalorder %s27, 1
      %p61 = por %p59, %p60
      %p62 = scmp.ne.s32.totalorder %s53, %s54
      %p63 = scmp.eq.s32.totalorder %s27, 0
      %p64 = por %p62, %p63
      %p65 = scmp.ne.s32.totalorder %s53, %s54
      %p66 = scmp.eq.s32.totalorder %s28, 1
      %p67 = por %p65, %p66
      %p69 = scmp.ne.s32.totalorder %s54, %s68
      %p70 = scmp.eq.s32.totalorder %s28, 0
      %p71 = por %p69, %p70
      %s72 = ssub.s32 %s22, %s29
      %p73 = scmp.eq.s32.totalorder %s72, 0
      %s75 = sadd.s32 %s74, 1
      %s76 = scalar_select %p73, %s74, %s75
      %p79 = pneg %p73
      %p80 = scmp.eq.s32.totalorder %s22, 1
      %p81 = por %p79, %p80
      %p82 = scmp.ne.s32.totalorder %s74, %s77
      %p83 = scmp.eq.s32.totalorder %s22, 0
      %p84 = por %p82, %p83
      %p85 = scmp.ne.s32.totalorder %s74, %s77
      %p86 = scmp.eq.s32.totalorder %s27, 1
      %p87 = por %p85, %p86
      %p88 = scmp.ne.s32.totalorder %s77, %s78
      %p89 = scmp.eq.s32.totalorder %s27, 0
      %p90 = por %p88, %p89
      %p91 = scmp.ne.s32.totalorder %s77, %s78
      %p92 = scmp.eq.s32.totalorder %s28, 1
      %p93 = por %p91, %p92
      %p95 = scmp.ne.s32.totalorder %s78, %s94
      %p96 = scmp.eq.s32.totalorder %s28, 0
      %p97 = por %p95, %p96
      %s98 = ssub.s32 %s22, %s29
      %p99 = scmp.eq.s32.totalorder %s98, 0
      %s101 = sadd.s32 %s100, 1
      %s102 = scalar_select %p99, %s100, %s101
      %p105 = pneg %p99
      %p106 = scmp.eq.s32.totalorder %s22, 1
      %p107 = por %p105, %p106
      %p108 = scmp.ne.s32.totalorder %s100, %s103
      %p109 = scmp.eq.s32.totalorder %s22, 0
      %p110 = por %p108, %p109
      %p111 = scmp.ne.s32.totalorder %s100, %s103
      %p112 = scmp.eq.s32.totalorder %s27, 1
      %p113 = por %p111, %p112
      %p114 = scmp.ne.s32.totalorder %s103, %s104
      %p115 = scmp.eq.s32.totalorder %s27, 0
      %p116 = por %p114, %p115
      %p117 = scmp.ne.s32.totalorder %s103, %s104
      %p118 = scmp.eq.s32.totalorder %s28, 1
      %p119 = por %p117, %p118
      %p121 = scmp.ne.s32.totalorder %s104, %s120
      %p122 = scmp.eq.s32.totalorder %s28, 0
      %p123 = por %p121, %p122
      %s124 = ssub.s32 %s22, %s29
      %p125 = scmp.eq.s32.totalorder %s124, 0
      %s127 = sadd.s32 %s126, 1
      %s128 = scalar_select %p125, %s126, %s127
      %p131 = pneg %p125
      %p132 = scmp.eq.s32.totalorder %s22, 1
      %p133 = por %p131, %p132
      %p134 = scmp.ne.s32.totalorder %s126, %s129
      %p135 = scmp.eq.s32.totalorder %s22, 0
      %p136 = por %p134, %p135
      %p137 = scmp.ne.s32.totalorder %s126, %s129
      %p138 = scmp.eq.s32.totalorder %s27, 1
      %p139 = por %p137, %p138
      %p140 = scmp.ne.s32.totalorder %s129, %s130
      %p141 = scmp.eq.s32.totalorder %s27, 0
      %p142 = por %p140, %p141
      %p143 = scmp.ne.s32.totalorder %s129, %s130
      %p144 = scmp.eq.s32.totalorder %s28, 1
      %p145 = por %p143, %p144
      %p147 = scmp.ne.s32.totalorder %s130, %s146
      %p148 = scmp.eq.s32.totalorder %s28, 0
      %p149 = por %p147, %p148
      %s150 = ssub.s32 %s22, %s29
      %p151 = scmp.eq.s32.totalorder %s150, 0
      %s153 = sadd.s32 %s152, 1
      %s154 = scalar_select %p151, %s152, %s153
      %p157 = pneg %p151
      %p158 = scmp.eq.s32.totalorder %s22, 1
      %p159 = por %p157, %p158
      %p160 = scmp.ne.s32.totalorder %s152, %s155
      %p161 = scmp.eq.s32.totalorder %s22, 0
      %p162 = por %p160, %p161
      %p163 = scmp.ne.s32.totalorder %s152, %s155
      %p164 = scmp.eq.s32.totalorder %s27, 1
      %p165 = por %p163, %p164
      %p166 = scmp.ne.s32.totalorder %s155, %s156
      %p167 = scmp.eq.s32.totalorder %s27, 0
      %p168 = por %p166, %p167
      %p169 = scmp.ne.s32.totalorder %s155, %s156
      %p170 = scmp.eq.s32.totalorder %s28, 1
      %p171 = por %p169, %p170
      %p173 = scmp.ne.s32.totalorder %s156, %s172
      %p174 = scmp.eq.s32.totalorder %s28, 0
      %p175 = por %p173, %p174
      %s176 = ssub.s32 %s22, %s29
      %p177 = scmp.eq.s32.totalorder %s176, 0
      %s179 = sadd.s32 %s178, 1
      %s180 = scalar_select %p177, %s178, %s179
      %p183 = pneg %p177
      %p184 = scmp.eq.s32.totalorder %s22, 1
      %p185 = por %p183, %p184
      %p186 = scmp.ne.s32.totalorder %s178, %s181
      %p187 = scmp.eq.s32.totalorder %s22, 0
      %p188 = por %p186, %p187
      %p189 = scmp.ne.s32.totalorder %s178, %s181
      %p190 = scmp.eq.s32.totalorder %s27, 1
      %p191 = por %p189, %p190
      %p192 = scmp.ne.s32.totalorder %s181, %s182
      %p193 = scmp.eq.s32.totalorder %s27, 0
      %p194 = por %p192, %p193
      %p195 = scmp.ne.s32.totalorder %s181, %s182
      %p196 = scmp.eq.s32.totalorder %s28, 1
      %p197 = por %p195, %p196
      %p199 = scmp.ne.s32.totalorder %s182, %s198
      %p200 = scmp.eq.s32.totalorder %s28, 0
      %p201 = por %p199, %p200
      %s202 = ssub.s32 %s22, %s29
      %p203 = scmp.eq.s32.totalorder %s202, 0
      %s205 = sadd.s32 %s204, 1
      %s206 = scalar_select %p203, %s204, %s205
      %p209 = pneg %p203
      %p210 = scmp.eq.s32.totalorder %s22, 1
      %p211 = por %p209, %p210
      %p212 = scmp.ne.s32.totalorder %s204, %s207
      %p213 = scmp.eq.s32.totalorder %s22, 0
      %p214 = por %p212, %p213
      %p215 = scmp.ne.s32.totalorder %s204, %s207
      %p216 = scmp.eq.s32.totalorder %s27, 1
      %p217 = por %p215, %p216
      %p218 = scmp.ne.s32.totalorder %s207, %s208
      %p219 = scmp.eq.s32.totalorder %s27, 0
      %p220 = por %p218, %p219
      %p221 = scmp.ne.s32.totalorder %s207, %s208
      %p222 = scmp.eq.s32.totalorder %s28, 1
      %p223 = por %p221, %p222
      %p225 = scmp.ne.s32.totalorder %s208, %s224
      %p226 = scmp.eq.s32.totalorder %s28, 0
      %p227 = por %p225, %p226
      %s228 = ssub.s32 %s22, %s29
      %p229 = scmp.eq.s32.totalorder %s228, 0
      %s231 = sadd.s32 %s230, 1
      %s232 = scalar_select %p229, %s230, %s231
      %p235 = pneg %p229
      %p236 = scmp.eq.s32.totalorder %s22, 1
      %p237 = por %p235, %p236
      %p238 = scmp.ne.s32.totalorder %s230, %s233
      %p239 = scmp.eq.s32.totalorder %s22, 0
      %p240 = por %p238, %p239
      %p241 = scmp.ne.s32.totalorder %s230, %s233
      %p242 = scmp.eq.s32.totalorder %s27, 1
      %p243 = por %p241, %p242
      %p244 = scmp.ne.s32.totalorder %s233, %s234
      %p245 = scmp.eq.s32.totalorder %s27, 0
      %p246 = por %p244, %p245
      %p247 = scmp.ne.s32.totalorder %s233, %s234
      %p248 = scmp.eq.s32.totalorder %s28, 1
      %p249 = por %p247, %p248
      %p251 = scmp.ne.s32.totalorder %s234, %s250
      %p252 = scmp.eq.s32.totalorder %s28, 0
      %p253 = por %p251, %p252
      %s254 = ssub.s32 %s22, %s29
      %p255 = scmp.eq.s32.totalorder %s254, 0
      %s257 = sadd.s32 %s256, 1
      %s258 = scalar_select %p255, %s256, %s257
      %p261 = pneg %p255
      %p262 = scmp.eq.s32.totalorder %s22, 1
      %p263 = por %p261, %p262
      %p264 = scmp.ne.s32.totalorder %s256, %s259
      %p265 = scmp.eq.s32.totalorder %s22, 0
      %p266 = por %p264, %p265
      %p267 = scmp.ne.s32.totalorder %s256, %s259
      %p268 = scmp.eq.s32.totalorder %s27, 1
      %p269 = por %p267, %p268
      %p270 = scmp.ne.s32.totalorder %s259, %s260
      %p271 = scmp.eq.s32.totalorder %s27, 0
      %p272 = por %p270, %p271
      %p273 = scmp.ne.s32.totalorder %s259, %s260
      %p274 = scmp.eq.s32.totalorder %s28, 1
      %p275 = por %p273, %p274
      %p277 = scmp.ne.s32.totalorder %s260, %s276
      %p278 = scmp.eq.s32.totalorder %s28, 0
      %p279 = por %p277, %p278
      %s280 = ssub.s32 %s22, %s29
      %p281 = scmp.eq.s32.totalorder %s280, 0
      %s283 = sadd.s32 %s282, 1
      %s284 = scalar_select %p281, %s282, %s283
      %p287 = pneg %p281
      %p288 = scmp.eq.s32.totalorder %s22, 1
      %p289 = por %p287, %p288
      %p290 = scmp.ne.s32.totalorder %s282, %s285
      %p291 = scmp.eq.s32.totalorder %s22, 0
      %p292 = por %p290, %p291
      %p293 = scmp.ne.s32.totalorder %s282, %s285
      %p294 = scmp.eq.s32.totalorder %s27, 1
      %p295 = por %p293, %p294
      %p296 = scmp.ne.s32.totalorder %s285, %s286
      %p297 = scmp.eq.s32.totalorder %s27, 0
      %p298 = por %p296, %p297
      %p299 = scmp.ne.s32.totalorder %s285, %s286
      %p300 = scmp.eq.s32.totalorder %s28, 1
      %p301 = por %p299, %p300
      %p303 = scmp.ne.s32.totalorder %s286, %s302
      %p304 = scmp.eq.s32.totalorder %s28, 0
      %p305 = por %p303, %p304
      %s306 = ssub.s32 %s22, %s29
      %p307 = scmp.eq.s32.totalorder %s306, 0
      %s309 = sadd.s32 %s308, 1
      %s310 = scalar_select %p307, %s308, %s309
      %p313 = pneg %p307
      %p314 = scmp.eq.s32.totalorder %s22, 1
      %p315 = por %p313, %p314
      %p316 = scmp.ne.s32.totalorder %s308, %s311
      %p317 = scmp.eq.s32.totalorder %s22, 0
      %p318 = por %p316, %p317
      %p319 = scmp.ne.s32.totalorder %s308, %s311
      %p320 = scmp.eq.s32.totalorder %s27, 1
      %p321 = por %p319, %p320
      %p322 = scmp.ne.s32.totalorder %s311, %s312
      %p323 = scmp.eq.s32.totalorder %s27, 0
      %p324 = por %p322, %p323
      %p325 = scmp.ne.s32.totalorder %s311, %s312
      %p326 = scmp.eq.s32.totalorder %s28, 1
      %p327 = por %p325, %p326
      %p329 = scmp.ne.s32.totalorder %s312, %s328
      %p330 = scmp.eq.s32.totalorder %s28, 0
      %p331 = por %p329, %p330
      %s332 = ssub.s32 %s22, %s29
      %p333 = scmp.eq.s32.totalorder %s332, 0
      %s335 = sadd.s32 %s334, 1
      %s336 = scalar_select %p333, %s334, %s335
      %p339 = pneg %p333
      %p340 = scmp.eq.s32.totalorder %s22, 1
      %p341 = por %p339, %p340
      %p342 = scmp.ne.s32.totalorder %s334, %s337
      %p343 = scmp.eq.s32.totalorder %s22, 0
      %p344 = por %p342, %p343
      %p345 = scmp.ne.s32.totalorder %s334, %s337
      %p346 = scmp.eq.s32.totalorder %s27, 1
      %p347 = por %p345, %p346
      %p348 = scmp.ne.s32.totalorder %s337, %s338
      %p349 = scmp.eq.s32.totalorder %s27, 0
      %p350 = por %p348, %p349
      %p351 = scmp.ne.s32.totalorder %s337, %s338
      %p352 = scmp.eq.s32.totalorder %s28, 1
      %p353 = por %p351, %p352
      %p355 = scmp.ne.s32.totalorder %s338, %s354
      %p356 = scmp.eq.s32.totalorder %s28, 0
      %p357 = por %p355, %p356
      %s358 = ssub.s32 %s22, %s29
      %p359 = scmp.eq.s32.totalorder %s358, 0
      %s361 = sadd.s32 %s360, 1
      %s362 = scalar_select %p359, %s360, %s361
      %p365 = pneg %p359
      %p366 = scmp.eq.s32.totalorder %s22, 1
      %p367 = por %p365, %p366
      %p368 = scmp.ne.s32.totalorder %s360, %s363
      %p369 = scmp.eq.s32.totalorder %s22, 0
      %p370 = por %p368, %p369
      %p371 = scmp.ne.s32.totalorder %s360, %s363
      %p372 = scmp.eq.s32.totalorder %s27, 1
      %p373 = por %p371, %p372
      %p374 = scmp.ne.s32.totalorder %s363, %s364
      %p375 = scmp.eq.s32.totalorder %s27, 0
      %p376 = por %p374, %p375
      %p377 = scmp.ne.s32.totalorder %s363, %s364
      %p378 = scmp.eq.s32.totalorder %s28, 1
      %p379 = por %p377, %p378
      %p381 = scmp.ne.s32.totalorder %s364, %s380
      %p382 = scmp.eq.s32.totalorder %s28, 0
      %p383 = por %p381, %p382
      %s385 = sadd.s32 %s384, 1
      %p388 = scmp.eq.s32.totalorder %s22, 1
      %p389 = scmp.ne.s32.totalorder %s384, %s386
      %p390 = scmp.eq.s32.totalorder %s22, 0
      %p391 = por %p389, %p390
      %p392 = scmp.ne.s32.totalorder %s384, %s386
      %p393 = scmp.eq.s32.totalorder %s27, 1
      %p394 = por %p392, %p393
      %p395 = scmp.ne.s32.totalorder %s386, %s387
      %p396 = scmp.eq.s32.totalorder %s27, 0
      %p397 = por %p395, %p396
      %p398 = scmp.ne.s32.totalorder %s386, %s387
      %p399 = scmp.eq.s32.totalorder %s28, 1
      %p400 = por %p398, %p399
      %p402 = scmp.ne.s32.totalorder %s387, %s401
      %p403 = scmp.eq.s32.totalorder %s28, 0
      %p404 = por %p402, %p403
      %p405 = scmp.le.s32.totalorder 1, %s22
      %p406 = scmp.lt.s32.totalorder %s22, 3
      %p407 = pnand %p405, %p406
      %p408 = pneg %p407
      // Predicated region
      $region9: #{tpu_custom_call.1} parent=5 // pred_check
        _
      $region10: #{tpu_custom_call.1} parent=5 // pred_check_branch
        %410 = sbr.rel (%p407) target = $region12
      $region11: #{tpu_custom_call.1} parent=5 // pred_region
        %s411 = ssub.s32 %s22, 1
        // Predicated region
        $region13: #{tpu_custom_call.1} parent=11 // pred_check
          %p412 = pneg %p43
        $region14: #{tpu_custom_call.1} parent=11 // pred_check_branch
          %414 = sbr.rel (%p412) target = $region16
        $region15: #{tpu_custom_call.1} parent=11 // pred_region
          %s416 = ssub.s32 256, 256
          %417 = vsyncadd [#allocation4], %s416
          %s418 = sshll.u32 [#allocation3], 4
          %s419 = int_to_ptr.vmem [resolvable:$true] %s418
          %424 = dma.hbm_to_vmem [thread:$0]  %s0, 256, %s419, [#allocation4], 128, 128, 8
        $region16: #{tpu_custom_call.1} parent=11 // pred_fallthru
          _
        // Predicated region
        $region17: #{tpu_custom_call.1} parent=11 // pred_check
          %p425 = pneg %p64
        $region18: #{tpu_custom_call.1} parent=11 // pred_check_branch
          %427 = sbr.rel (%p425) target = $region20
        $region19: #{tpu_custom_call.1} parent=11 // pred_region
          _
        $region20: #{tpu_custom_call.1} parent=11 // pred_fallthru
          _
      $region12: #{tpu_custom_call.1} parent=5 // pred_fallthru
        _
      %p428 = scmp.lt.s32.totalorder %s22, 2
      // Predicated region
      $region21: #{tpu_custom_call.1} parent=5 // pred_check
        %p429 = pneg %p428
      $region22: #{tpu_custom_call.1} parent=5 // pred_check_branch
        %431 = sbr.rel (%p429) target = $region24
      $region23: #{tpu_custom_call.1} parent=5 // pred_region
        // Predicated region
        $region25: #{tpu_custom_call.1} parent=23 // pred_check
          %p432 = pneg %p84
        $region26: #{tpu_custom_call.1} parent=23 // pred_check_branch
          %434 = sbr.rel (%p432) target = $region28
        $region27: #{tpu_custom_call.1} parent=23 // pred_region
          %p435 = scmp.lt.s32.totalorder %s22, 1
          %s436 = scalar_select %p435, %s22, 1
          %s437 = smul.addr %s436, 4
          %s438 = smul.addr %s437, 8
          %s439 = scalar_lea.vmem %s2, %s438
        $region28: #{tpu_custom_call.1} parent=23 // pred_fallthru
          _
        // Predicated region
        $region29: #{tpu_custom_call.1} parent=23 // pred_check
          %p440 = pneg %p110
        $region30: #{tpu_custom_call.1} parent=23 // pred_check_branch
          %442 = sbr.rel (%p440) target = $region32
        $region31: #{tpu_custom_call.1} parent=23 // pred_region
          %p443 = scmp.lt.s32.totalorder %s22, 1
          %s444 = scalar_select %p443, %s22, 1
          %s445 = scalar_lea.vmem %s3, %s444
        $region32: #{tpu_custom_call.1} parent=23 // pred_fallthru
          _
        // Predicated region
        $region33: #{tpu_custom_call.1} parent=23 // pred_check
          %p446 = pneg %p136
        $region34: #{tpu_custom_call.1} parent=23 // pred_check_branch
          %448 = sbr.rel (%p446) target = $region36
        $region35: #{tpu_custom_call.1} parent=23 // pred_region
          %p449 = scmp.lt.s32.totalorder %s22, 1
          %s450 = scalar_select %p449, %s22, 1
          %s451 = smul.addr %s450, 4
          %s452 = smul.addr %s451, 8
          %s453 = scalar_lea.vmem %s4, %s452
        $region36: #{tpu_custom_call.1} parent=23 // pred_fallthru
          _
        // Predicated region
        $region37: #{tpu_custom_call.1} parent=23 // pred_check
          %p454 = pneg %p162
        $region38: #{tpu_custom_call.1} parent=23 // pred_check_branch
          %456 = sbr.rel (%p454) target = $region40
        $region39: #{tpu_custom_call.1} parent=23 // pred_region
          %p457 = scmp.lt.s32.totalorder %s22, 1
          %s458 = scalar_select %p457, %s22, 1
          %s459 = scalar_lea.vmem %s5, %s458
        $region40: #{tpu_custom_call.1} parent=23 // pred_fallthru
          _
        // Predicated region
        $region41: #{tpu_custom_call.1} parent=23 // pred_check
          %p460 = pneg %p188
        $region42: #{tpu_custom_call.1} parent=23 // pred_check_branch
          %462 = sbr.rel (%p460) target = $region44
        $region43: #{tpu_custom_call.1} parent=23 // pred_region
          %p463 = scmp.lt.s32.totalorder %s22, 1
          %s464 = scalar_select %p463, %s22, 1
          %s465 = scalar_lea.vmem %s6, %s464
        $region44: #{tpu_custom_call.1} parent=23 // pred_fallthru
          _
        // Predicated region
        $region45: #{tpu_custom_call.1} parent=23 // pred_check
          %p466 = pneg %p214
        $region46: #{tpu_custom_call.1} parent=23 // pred_check_branch
          %468 = sbr.rel (%p466) target = $region48
        $region47: #{tpu_custom_call.1} parent=23 // pred_region
          %p469 = scmp.lt.s32.totalorder %s22, 1
          %s470 = scalar_select %p469, %s22, 1
          %s471 = scalar_lea.vmem %s7, %s470
        $region48: #{tpu_custom_call.1} parent=23 // pred_fallthru
          _
        // Predicated region
        $region49: #{tpu_custom_call.1} parent=23 // pred_check
          %p472 = pneg %p240
        $region50: #{tpu_custom_call.1} parent=23 // pred_check_branch
          %474 = sbr.rel (%p472) target = $region52
        $region51: #{tpu_custom_call.1} parent=23 // pred_region
          %p475 = scmp.lt.s32.totalorder %s22, 1
          %s476 = scalar_select %p475, %s22, 1
          %s477 = smul.addr %s476, 4
          %s478 = smul.addr %s477, 8
          %s479 = scalar_lea.vmem %s8, %s478
        $region52: #{tpu_custom_call.1} parent=23 // pred_fallthru
          _
        // Predicated region
        $region53: #{tpu_custom_call.1} parent=23 // pred_check
          %p480 = pneg %p266
        $region54: #{tpu_custom_call.1} parent=23 // pred_check_branch
          %482 = sbr.rel (%p480) target = $region56
        $region55: #{tpu_custom_call.1} parent=23 // pred_region
          %p483 = scmp.lt.s32.totalorder %s22, 1
          %s484 = scalar_select %p483, %s22, 1
          %s485 = scalar_lea.vmem %s9, %s484
        $region56: #{tpu_custom_call.1} parent=23 // pred_fallthru
          _
        // Predicated region
        $region57: #{tpu_custom_call.1} parent=23 // pred_check
          %p486 = pneg %p292
        $region58: #{tpu_custom_call.1} parent=23 // pred_check_branch
          %488 = sbr.rel (%p486) target = $region60
        $region59: #{tpu_custom_call.1} parent=23 // pred_region
          %p489 = scmp.lt.s32.totalorder %s22, 1
          %s490 = scalar_select %p489, %s22, 1
          %s491 = smul.addr %s490, 8
          %s492 = smul.addr %s491, 8
          %s493 = scalar_lea.vmem %s10, %s492
        $region60: #{tpu_custom_call.1} parent=23 // pred_fallthru
          _
        // Predicated region
        $region61: #{tpu_custom_call.1} parent=23 // pred_check
          %p494 = pneg %p318
        $region62: #{tpu_custom_call.1} parent=23 // pred_check_branch
          %496 = sbr.rel (%p494) target = $region64
        $region63: #{tpu_custom_call.1} parent=23 // pred_region
          %p497 = scmp.lt.s32.totalorder %s22, 1
          %s498 = scalar_select %p497, %s22, 1
          %s499 = scalar_lea.vmem %s11, %s498
        $region64: #{tpu_custom_call.1} parent=23 // pred_fallthru
          _
        // Predicated region
        $region65: #{tpu_custom_call.1} parent=23 // pred_check
          %p500 = pneg %p344
        $region66: #{tpu_custom_call.1} parent=23 // pred_check_branch
          %502 = sbr.rel (%p500) target = $region68
        $region67: #{tpu_custom_call.1} parent=23 // pred_region
          %p503 = scmp.lt.s32.totalorder %s22, 1
          %s504 = scalar_select %p503, %s22, 1
          %s505 = scalar_lea.vmem %s12, %s504
        $region68: #{tpu_custom_call.1} parent=23 // pred_fallthru
          _
        // Predicated region
        $region69: #{tpu_custom_call.1} parent=23 // pred_check
          %p506 = pneg %p370
        $region70: #{tpu_custom_call.1} parent=23 // pred_check_branch
          %508 = sbr.rel (%p506) target = $region72
        $region71: #{tpu_custom_call.1} parent=23 // pred_region
          %p509 = scmp.lt.s32.totalorder %s22, 1
          %s510 = scalar_select %p509, %s22, 1
          %s511 = scalar_lea.vmem %s13, %s510
        $region72: #{tpu_custom_call.1} parent=23 // pred_fallthru
          _
      $region24: #{tpu_custom_call.1} parent=5 // pred_fallthru
        _
      %p512 = scmp.le.s32.totalorder 1, %s22
      %p513 = scmp.lt.s32.totalorder %s22, 3
      %p514 = pnand %p512, %p513
      %p515 = pneg %p514
      // Predicated region
      $region73: #{tpu_custom_call.1} parent=5 // pred_check
        _
      $region74: #{tpu_custom_call.1} parent=5 // pred_check_branch
        %517 = sbr.rel (%p514) target = $region76
      $region75: #{tpu_custom_call.1} parent=5 // pred_region
        %s518 = ssub.s32 %s22, 1
        // Predicated region
        $region77: #{tpu_custom_call.1} parent=75 // pred_check
          %p519 = pneg %p43
        $region78: #{tpu_custom_call.1} parent=75 // pred_check_branch
          %521 = sbr.rel (%p519) target = $region80
        $region79: #{tpu_custom_call.1} parent=75 // pred_region
          %522 = dma.done [#allocation4], 256
        $region80: #{tpu_custom_call.1} parent=75 // pred_fallthru
          _
        %p523 = pneg %p43
        %p524 = pneg %p40
        %p525 = pneg %p64
        %p526 = pneg %p61
        %p527 = scmp.lt.s32.totalorder %s27, 1
        %s528 = scalar_select %p527, %s27, 1
        %s529 = smul.addr %s528, 4
        %s530 = smul.addr %s529, 8
        %s531 = scalar_lea.vmem %s2, %s530
        %p532 = pneg %p90
        %p533 = pneg %p87
        %p534 = scmp.lt.s32.totalorder %s27, 1
        %s535 = scalar_select %p534, %s27, 1
        %s536 = scalar_lea.vmem %s3, %s535
        %p537 = pneg %p116
        %p538 = pneg %p113
        %p539 = scmp.lt.s32.totalorder %s27, 1
        %s540 = scalar_select %p539, %s27, 1
        %s541 = smul.addr %s540, 4
        %s542 = smul.addr %s541, 8
        %s543 = scalar_lea.vmem %s4, %s542
        %p544 = pneg %p142
        %p545 = pneg %p139
        %p546 = scmp.lt.s32.totalorder %s27, 1
        %s547 = scalar_select %p546, %s27, 1
        %s548 = scalar_lea.vmem %s5, %s547
        %p549 = pneg %p168
        %p550 = pneg %p165
        %p551 = scmp.lt.s32.totalorder %s27, 1
        %s552 = scalar_select %p551, %s27, 1
        %s553 = scalar_lea.vmem %s6, %s552
        %p554 = pneg %p194
        %p555 = pneg %p191
        %p556 = scmp.lt.s32.totalorder %s27, 1
        %s557 = scalar_select %p556, %s27, 1
        %s558 = scalar_lea.vmem %s7, %s557
        %p559 = pneg %p220
        %p560 = pneg %p217
        %p561 = scmp.lt.s32.totalorder %s27, 1
        %s562 = scalar_select %p561, %s27, 1
        %s563 = smul.addr %s562, 4
        %s564 = smul.addr %s563, 8
        %s565 = scalar_lea.vmem %s8, %s564
        %p566 = pneg %p246
        %p567 = pneg %p243
        %p568 = scmp.lt.s32.totalorder %s27, 1
        %s569 = scalar_select %p568, %s27, 1
        %s570 = scalar_lea.vmem %s9, %s569
        %p571 = pneg %p272
        %p572 = pneg %p269
        %p573 = scmp.lt.s32.totalorder %s27, 1
        %s574 = scalar_select %p573, %s27, 1
        %s575 = smul.addr %s574, 8
        %s576 = smul.addr %s575, 8
        %s577 = scalar_lea.vmem %s10, %s576
        %p578 = pneg %p298
        %p579 = pneg %p295
        %p580 = scmp.lt.s32.totalorder %s27, 1
        %s581 = scalar_select %p580, %s27, 1
        %s582 = scalar_lea.vmem %s11, %s581
        %p583 = pneg %p324
        %p584 = pneg %p321
        %p585 = scmp.lt.s32.totalorder %s27, 1
        %s586 = scalar_select %p585, %s27, 1
        %s587 = scalar_lea.vmem %s12, %s586
        %p588 = pneg %p350
        %p589 = pneg %p347
        %p590 = scmp.lt.s32.totalorder %s27, 1
        %s591 = scalar_select %p590, %s27, 1
        %s592 = scalar_lea.vmem %s13, %s591
        %p593 = pneg %p376
        %p594 = pneg %p373
        %p595 = pneg %p397
        %p596 = pneg %p394
        %p597 = scmp.lt.s32.totalorder %s27, 1
        %s598 = scalar_select %p597, %s27, 1
        %s599 = smul.addr %s598, 4
        %s600 = smul.addr %s599, 8
        %s601 = scalar_lea.vmem %s2, %s600
        %p602 = scmp.lt.s32.totalorder %s27, 1
        %s603 = scalar_select %p602, %s27, 1
        %s604 = scalar_lea.vmem %s3, %s603
        %p605 = scmp.lt.s32.totalorder %s27, 1
        %s606 = scalar_select %p605, %s27, 1
        %s607 = smul.addr %s606, 4
        %s608 = smul.addr %s607, 8
        %s609 = scalar_lea.vmem %s4, %s608
        %p610 = scmp.lt.s32.totalorder %s27, 1
        %s611 = scalar_select %p610, %s27, 1
        %s612 = scalar_lea.vmem %s5, %s611
        %p613 = scmp.lt.s32.totalorder %s27, 1
        %s614 = scalar_select %p613, %s27, 1
        %s615 = scalar_lea.vmem %s6, %s614
        %p616 = scmp.lt.s32.totalorder %s27, 1
        %s617 = scalar_select %p616, %s27, 1
        %s618 = scalar_lea.vmem %s7, %s617
        %p619 = scmp.lt.s32.totalorder %s27, 1
        %s620 = scalar_select %p619, %s27, 1
        %s621 = smul.addr %s620, 4
        %s622 = smul.addr %s621, 8
        %s623 = scalar_lea.vmem %s8, %s622
        %p624 = scmp.lt.s32.totalorder %s27, 1
        %s625 = scalar_select %p624, %s27, 1
        %s626 = scalar_lea.vmem %s9, %s625
        %p627 = scmp.lt.s32.totalorder %s27, 1
        %s628 = scalar_select %p627, %s27, 1
        %s629 = smul.addr %s628, 8
        %s630 = smul.addr %s629, 8
        %s631 = scalar_lea.vmem %s10, %s630
        %p632 = scmp.lt.s32.totalorder %s27, 1
        %s633 = scalar_select %p632, %s27, 1
        %s634 = scalar_lea.vmem %s11, %s633
        %p635 = scmp.lt.s32.totalorder %s27, 1
        %s636 = scalar_select %p635, %s27, 1
        %s637 = scalar_lea.vmem %s12, %s636
        %p638 = scmp.lt.s32.totalorder %s27, 1
        %s639 = scalar_select %p638, %s27, 1
        %s640 = scalar_lea.vmem %s13, %s639
        %p641 = scmp.eq.s32.totalorder %s27, 0
        // Predicated region
        $region81: #{tpu_custom_call.1} parent=75 // pred_check
          %p642 = pneg %p641
        $region82: #{tpu_custom_call.1} parent=75 // pred_check_branch
          %644 = sbr.rel (%p642) target = $region84
        $region83: #{tpu_custom_call.1} parent=75 // pred_region
          %v645 = vld [vmem:[#allocation3] sm:$0xff]
          %v646 = vld [vmem:[#allocation3 + $0x8] sm:$0xff]
          %vm647 = vcmask 261120
          %648 = vst.msk [vmem:[#allocation2] sm:$0xff] %vm647, %v645
          %649 = vst.msk [vmem:[#allocation2 + $0x8] sm:$0xff] %vm647, %v646
        $region84: #{tpu_custom_call.1} parent=75 // pred_fallthru
          _
        %v650 = vld [vmem:[#allocation2] sm:$0xff]
        %v651 = vld [vmem:[#allocation2 + $0x8] sm:$0xff]
        %v652 = vld [vmem:[%s1] sm:$0x1]
        %v653 = vld [vmem:[%s1 + $0x1] sm:$0x1]
        %v654 = vld [vmem:[%s601] sm:$0xff]
        %v655 = vld [vmem:[%s601 + $0x8] sm:$0xff]
        %v656 = vld [vmem:[%s601 + $0x10] sm:$0xff]
        %v657 = vld [vmem:[%s601 + $0x18] sm:$0xff]
        %v658 = vld [vmem:[%s604] sm:$0x1]
        %v660 = vlaneseq
        %v661 = vshrl.u32 %v660, 7
        %v662 = vsub.s32 0, %v661
        %v663 = vrot.slane %v658, %v662
        %vm665 = vcmask 261120
        %v667 = vsel %vm665, %v650, 0
        %v670 = vsel %vm665, %v651, 0
        %672 = vmatprep.subr.mxu0 0.0
        %673 = vmatpush1.msra.mxu0 %v654
        %674 = vmatprep.subr.mxu0 0.0
        %675 = vmatpush1.msra.mxu0 %v655
        %676 = vmatprep.subr.mxu0 0.0
        %677 = vmatpush1.msra.mxu0 %v656
        %678 = vmatprep.subr.mxu0 0.0
        %679 = vmatpush1.msra.mxu0 %v657
        %680 = vmatprep.subr.mxu0 0.0
        %681 = vmatpush1.msra.mxu0 0.0
        %682 = vmatprep.subr.mxu0 0.0
        %683 = vmatpush1.msra.mxu0 0.0
        %684 = vmatprep.subr.mxu0 0.0
        %685 = vmatpush1.msra.mxu0 0.0
        %686 = vmatprep.subr.mxu0 0.0
        %687 = vmatpush1.msra.mxu0 0.0
        %688 = vmatprep.subr.mxu0 0.0
        %689 = vmatpush1.msra.mxu0 0.0
        %690 = vmatprep.subr.mxu0 0.0
        %691 = vmatpush1.msra.mxu0 0.0
        %692 = vmatprep.subr.mxu0 0.0
        %693 = vmatpush1.msra.mxu0 0.0
        %694 = vmatprep.subr.mxu0 0.0
        %695 = vmatpush1.msra.mxu0 0.0
        %696 = vmatprep.subr.mxu0 0.0
        %697 = vmatpush1.msra.mxu0 0.0
        %698 = vmatprep.subr.mxu0 0.0
        %699 = vmatpush1.msra.mxu0 0.0
        %700 = vmatprep.subr.mxu0 0.0
        %701 = vmatpush1.msra.mxu0 0.0
        %702 = vmatprep.subr.mxu0 0.0
        %703 = vmatpush1.msra.mxu0 0.0
        %704 = vmatprep.subr.mxu0 0.0
        %705 = vmatpush1.msra.mxu0 0.0
        %706 = vmatprep.subr.mxu0 0.0
        %707 = vmatpush1.msra.mxu0 0.0
        %708 = vmatprep.subr.mxu0 0.0
        %709 = vmatpush1.msra.mxu0 0.0
        %710 = vmatprep.subr.mxu0 0.0
        %711 = vmatpush1.msra.mxu0 0.0
        %712 = vmatprep.subr.mxu0 0.0
        %713 = vmatpush1.msra.mxu0 0.0
        %714 = vmatprep.subr.mxu0 0.0
        %715 = vmatpush1.msra.mxu0 0.0
        %716 = vmatprep.subr.mxu0 0.0
        %717 = vmatpush1.msra.mxu0 0.0
        %718 = vmatprep.subr.mxu0 0.0
        %719 = vmatpush1.msra.mxu0 0.0
        %720 = vmatprep.subr.mxu0 0.0
        %721 = vmatpush1.msra.mxu0 0.0
        %722 = vmatprep.subr.mxu0 0.0
        %723 = vmatpush1.msra.mxu0 0.0
        %724 = vmatprep.subr.mxu0 0.0
        %725 = vmatpush1.msra.mxu0 0.0
        %726 = vmatprep.subr.mxu0 0.0
        %727 = vmatpush1.msra.mxu0 0.0
        %728 = vmatprep.subr.mxu0 0.0
        %729 = vmatpush1.msra.mxu0 0.0
        %730 = vmatprep.subr.mxu0 0.0
        %731 = vmatpush1.msra.mxu0 0.0
        %732 = vmatprep.subr.mxu0 0.0
        %733 = vmatpush1.msra.mxu0 0.0
        %734 = vmatprep.subr.mxu0 0.0
        %735 = vmatpush1.msra.mxu0 0.0
        %736 = vmatprep.mubr.f32.mxu0 0.0
        %737 = vmatmul.mubr.f32.gmra.mrb[0].mxu0 %v667
        %v738 = vpop.f32.mrb[0].mxu0
        %v739 = vadd.f32 %v663, %v738
        %v740 = vpop.f32.mrb[0].mxu0
        %741 = vmatprep.mubr.f32.mxu0 0.0
        %742 = vmatmul.mubr.f32.gmra.mrb[0].mxu0 %v670
        %v743 = vpop.f32.mrb[0].mxu0
        %v744 = vadd.f32 %v663, %v743
        %v745 = vpop.f32.mrb[0].mxu0
        %746 = vdwg.mxu0
        %v747 = vld [vmem:[%s609] sm:$0xff]
        %v748 = vld [vmem:[%s609 + $0x8] sm:$0xff]
        %v749 = vld [vmem:[%s609 + $0x10] sm:$0xff]
        %v750 = vld [vmem:[%s609 + $0x18] sm:$0xff]
        %752 = vrot.lane.b32.xlu0 %v739, 96
        %v753 = vpop.permute.xlu0 %752
        %vm754 = vcmask 64512
        %v755 = vsel %vm754, %v739, 0
        %v757 = vsel %vm754, %v753, 0
        %759 = vmatprep.subr.mxu0 0.0
        %760 = vmatpush1.xpose.msra.mxu0 %v757
        %761 = vmatprep.subr.mxu0 0.0
        %762 = vmatpush1.xpose.msra.mxu0 0.0
        %763 = vmatprep.subr.mxu0 0.0
        %764 = vmatpush1.xpose.msra.mxu0 0.0
        %765 = vmatprep.subr.mxu0 0.0
        %766 = vmatpush1.xpose.msra.mxu0 0.0
        %767 = vmatprep.subr.mxu0 0.0
        %768 = vmatpush1.xpose.msra.mxu0 0.0
        %769 = vmatprep.subr.mxu0 0.0
        %770 = vmatpush1.xpose.msra.mxu0 0.0
        %771 = vmatprep.subr.mxu0 0.0
        %772 = vmatpush1.xpose.msra.mxu0 0.0
        %773 = vmatprep.subr.mxu0 0.0
        %774 = vmatpush1.xpose.msra.mxu0 0.0
        %775 = vmatprep.subr.mxu0 0.0
        %776 = vmatpush1.xpose.msra.mxu0 0.0
        %777 = vmatprep.subr.mxu0 0.0
        %778 = vmatpush1.xpose.msra.mxu0 0.0
        %779 = vmatprep.subr.mxu0 0.0
        %780 = vmatpush1.xpose.msra.mxu0 0.0
        %781 = vmatprep.subr.mxu0 0.0
        %782 = vmatpush1.xpose.msra.mxu0 0.0
        %783 = vmatprep.subr.mxu0 0.0
        %784 = vmatpush1.xpose.msra.mxu0 0.0
        %785 = vmatprep.subr.mxu0 0.0
        %786 = vmatpush1.xpose.msra.mxu0 0.0
        %787 = vmatprep.subr.mxu0 0.0
        %788 = vmatpush1.xpose.msra.mxu0 0.0
        %789 = vmatprep.subr.mxu0 0.0
        %790 = vmatpush1.xpose.msra.mxu0 0.0
        %791 = vmatprep.subr.mxu0 0.0
        %792 = vmatpush1.xpose.msra.mxu0 0.0
        %793 = vmatprep.subr.mxu0 0.0
        %794 = vmatpush1.xpose.msra.mxu0 0.0
        %795 = vmatprep.subr.mxu0 0.0
        %796 = vmatpush1.xpose.msra.mxu0 0.0
        %797 = vmatprep.subr.mxu0 0.0
        %798 = vmatpush1.xpose.msra.mxu0 0.0
        %799 = vmatprep.subr.mxu0 0.0
        %800 = vmatpush1.xpose.msra.mxu0 0.0
        %801 = vmatprep.subr.mxu0 0.0
        %802 = vmatpush1.xpose.msra.mxu0 0.0
        %803 = vmatprep.subr.mxu0 0.0
        %804 = vmatpush1.xpose.msra.mxu0 0.0
        %805 = vmatprep.subr.mxu0 0.0
        %806 = vmatpush1.xpose.msra.mxu0 0.0
        %807 = vmatprep.subr.mxu0 0.0
        %808 = vmatpush1.xpose.msra.mxu0 0.0
        %809 = vmatprep.subr.mxu0 0.0
        %810 = vmatpush1.xpose.msra.mxu0 0.0
        %811 = vmatprep.subr.mxu0 0.0
        %812 = vmatpush1.xpose.msra.mxu0 0.0
        %813 = vmatprep.subr.mxu0 0.0
        %814 = vmatpush1.xpose.msra.mxu0 0.0
        %815 = vmatprep.subr.mxu0 0.0
        %816 = vmatpush1.xpose.msra.mxu0 0.0
        %817 = vmatprep.subr.mxu0 0.0
        %818 = vmatpush1.xpose.msra.mxu0 0.0
        %819 = vmatprep.subr.mxu0 0.0
        %820 = vmatpush1.xpose.msra.mxu0 0.0
        %821 = vmatprep.subr.mxu0 0.0
        %822 = vmatpush1.xpose.msra.mxu0 0.0
        %823 = vmatprep.mubr.f32.mxu0 0.0
        %824 = vmatmul.mubr.f32.gmra.mrb[0].mxu0 %v755
        %v825 = vpop.f32.mrb[0].mxu0
        %v826 = vadd.f32 0.0, %v825
        %v827 = vpop.f32.mrb[0].mxu0
        %828 = vdwg.mxu0
        %830 = vrot.lane.b32.xlu0 %v744, 96
        %v831 = vpop.permute.xlu0 %830
        %v832 = vsel %vm754, %v744, 0
        %v834 = vsel %vm754, %v831, 0
        %836 = vmatprep.subr.mxu0 0.0
        %837 = vmatpush1.xpose.msra.mxu0 %v834
        %838 = vmatprep.subr.mxu0 0.0
        %839 = vmatpush1.xpose.msra.mxu0 0.0
        %840 = vmatprep.subr.mxu0 0.0
        %841 = vmatpush1.xpose.msra.mxu0 0.0
        %842 = vmatprep.subr.mxu0 0.0
        %843 = vmatpush1.xpose.msra.mxu0 0.0
        %844 = vmatprep.subr.mxu0 0.0
        %845 = vmatpush1.xpose.msra.mxu0 0.0
        %846 = vmatprep.subr.mxu0 0.0
        %847 = vmatpush1.xpose.msra.mxu0 0.0
        %848 = vmatprep.subr.mxu0 0.0
        %849 = vmatpush1.xpose.msra.mxu0 0.0
        %850 = vmatprep.subr.mxu0 0.0
        %851 = vmatpush1.xpose.msra.mxu0 0.0
        %852 = vmatprep.subr.mxu0 0.0
        %853 = vmatpush1.xpose.msra.mxu0 0.0
        %854 = vmatprep.subr.mxu0 0.0
        %855 = vmatpush1.xpose.msra.mxu0 0.0
        %856 = vmatprep.subr.mxu0 0.0
        %857 = vmatpush1.xpose.msra.mxu0 0.0
        %858 = vmatprep.subr.mxu0 0.0
        %859 = vmatpush1.xpose.msra.mxu0 0.0
        %860 = vmatprep.subr.mxu0 0.0
        %861 = vmatpush1.xpose.msra.mxu0 0.0
        %862 = vmatprep.subr.mxu0 0.0
        %863 = vmatpush1.xpose.msra.mxu0 0.0
        %864 = vmatprep.subr.mxu0 0.0
        %865 = vmatpush1.xpose.msra.mxu0 0.0
        %866 = vmatprep.subr.mxu0 0.0
        %867 = vmatpush1.xpose.msra.mxu0 0.0
        %868 = vmatprep.subr.mxu0 0.0
        %869 = vmatpush1.xpose.msra.mxu0 0.0
        %870 = vmatprep.subr.mxu0 0.0
        %871 = vmatpush1.xpose.msra.mxu0 0.0
        %872 = vmatprep.subr.mxu0 0.0
        %873 = vmatpush1.xpose.msra.mxu0 0.0
        %874 = vmatprep.subr.mxu0 0.0
        %875 = vmatpush1.xpose.msra.mxu0 0.0
        %876 = vmatprep.subr.mxu0 0.0
        %877 = vmatpush1.xpose.msra.mxu0 0.0
        %878 = vmatprep.subr.mxu0 0.0
        %879 = vmatpush1.xpose.msra.mxu0 0.0
        %880 = vmatprep.subr.mxu0 0.0
        %881 = vmatpush1.xpose.msra.mxu0 0.0
        %882 = vmatprep.subr.mxu0 0.0
        %883 = vmatpush1.xpose.msra.mxu0 0.0
        %884 = vmatprep.subr.mxu0 0.0
        %885 = vmatpush1.xpose.msra.mxu0 0.0
        %886 = vmatprep.subr.mxu0 0.0
        %887 = vmatpush1.xpose.msra.mxu0 0.0
        %888 = vmatprep.subr.mxu0 0.0
        %889 = vmatpush1.xpose.msra.mxu0 0.0
        %890 = vmatprep.subr.mxu0 0.0
        %891 = vmatpush1.xpose.msra.mxu0 0.0
        %892 = vmatprep.subr.mxu0 0.0
        %893 = vmatpush1.xpose.msra.mxu0 0.0
        %894 = vmatprep.subr.mxu0 0.0
        %895 = vmatpush1.xpose.msra.mxu0 0.0
        %896 = vmatprep.subr.mxu0 0.0
        %897 = vmatpush1.xpose.msra.mxu0 0.0
        %898 = vmatprep.subr.mxu0 0.0
        %899 = vmatpush1.xpose.msra.mxu0 0.0
        %900 = vmatprep.mubr.f32.mxu0 0.0
        %901 = vmatmul.mubr.f32.gmra.mrb[0].mxu0 %v832
        %v902 = vpop.f32.mrb[0].mxu0
        %v903 = vadd.f32 0.0, %v902
        %v904 = vpop.f32.mrb[0].mxu0
        %905 = vdwg.mxu0
        %v906 = vmul.f32 %v826, 0.35355338
        %v907 = vmul.f32 %v903, 0.35355338
        %v910 = vlaneseq
        %v911 = vshrl.u32 %v910, 7
        %v912 = vsub.s32 0, %v911
        %v913 = vrot.slane %v652, %v912
        %v914 = vlaneseq
        %v915 = vshrl.u32 %v914, 7
        %v916 = vsub.s32 0, %v915
        %v917 = vrot.slane %v653, %v916
        %v920 = vadd.f32 %v906, %v913
        %v921 = vadd.f32 %v907, %v917
        %v922 = vsel %vm754, %v920, -inf
        %923 = vmax.xlane.f32.xlu0 %v922
        %v924 = vpop.xlane.xlu0 %923
        %v925 = vsel %vm754, %v921, -inf
        %926 = vmax.xlane.f32.xlu0 %v925
        %v927 = vpop.xlane.xlu0 %926
        %v928 = vsub.f32 %v920, %v924
        %v929 = vsub.f32 %v921, %v927
        %v930 = vmul.f32 %v928, 1.442695
        %v931 = vpow.pop %v930
        %v932 = vmul.f32 %v929, 1.442695
        %v933 = vpow.pop %v932
        %v934 = vsel %vm754, %v931, 0.0
        %935 = vadd.xlane.f32.xlu0 %v934
        %v936 = vpop.xlane.xlu0 %935
        %v937 = vsel %vm754, %v933, 0.0
        %938 = vadd.xlane.f32.xlu0 %v937
        %v939 = vpop.xlane.xlu0 %938
        %v940 = vrcp.pop %v936
        %v941 = vrcp.pop %v939
        %v942 = vmul.f32 %v931, %v940
        %v943 = vmul.f32 %v933, %v941
        %944 = vrot.lane.b32.xlu0 %v739, 64
        %v945 = vpop.permute.xlu0 %944
        %v948 = vsel %vm754, %v942, 0
        %950 = vmatprep.subr.mxu0 0.0
        %951 = vmatpush1.msra.mxu0 %v945
        %952 = vmatprep.subr.mxu0 0.0
        %953 = vmatpush1.msra.mxu0 0.0
        %954 = vmatprep.subr.mxu0 0.0
        %955 = vmatpush1.msra.mxu0 0.0
        %956 = vmatprep.subr.mxu0 0.0
        %957 = vmatpush1.msra.mxu0 0.0
        %958 = vmatprep.subr.mxu0 0.0
        %959 = vmatpush1.msra.mxu0 0.0
        %960 = vmatprep.subr.mxu0 0.0
        %961 = vmatpush1.msra.mxu0 0.0
        %962 = vmatprep.subr.mxu0 0.0
        %963 = vmatpush1.msra.mxu0 0.0
        %964 = vmatprep.subr.mxu0 0.0
        %965 = vmatpush1.msra.mxu0 0.0
        %966 = vmatprep.subr.mxu0 0.0
        %967 = vmatpush1.msra.mxu0 0.0
        %968 = vmatprep.subr.mxu0 0.0
        %969 = vmatpush1.msra.mxu0 0.0
        %970 = vmatprep.subr.mxu0 0.0
        %971 = vmatpush1.msra.mxu0 0.0
        %972 = vmatprep.subr.mxu0 0.0
        %973 = vmatpush1.msra.mxu0 0.0
        %974 = vmatprep.subr.mxu0 0.0
        %975 = vmatpush1.msra.mxu0 0.0
        %976 = vmatprep.subr.mxu0 0.0
        %977 = vmatpush1.msra.mxu0 0.0
        %978 = vmatprep.subr.mxu0 0.0
        %979 = vmatpush1.msra.mxu0 0.0
        %980 = vmatprep.subr.mxu0 0.0
        %981 = vmatpush1.msra.mxu0 0.0
        %982 = vmatprep.subr.mxu0 0.0
        %983 = vmatpush1.msra.mxu0 0.0
        %984 = vmatprep.subr.mxu0 0.0
        %985 = vmatpush1.msra.mxu0 0.0
        %986 = vmatprep.subr.mxu0 0.0
        %987 = vmatpush1.msra.mxu0 0.0
        %988 = vmatprep.subr.mxu0 0.0
        %989 = vmatpush1.msra.mxu0 0.0
        %990 = vmatprep.subr.mxu0 0.0
        %991 = vmatpush1.msra.mxu0 0.0
        %992 = vmatprep.subr.mxu0 0.0
        %993 = vmatpush1.msra.mxu0 0.0
        %994 = vmatprep.subr.mxu0 0.0
        %995 = vmatpush1.msra.mxu0 0.0
        %996 = vmatprep.subr.mxu0 0.0
        %997 = vmatpush1.msra.mxu0 0.0
        %998 = vmatprep.subr.mxu0 0.0
        %999 = vmatpush1.msra.mxu0 0.0
        %1000 = vmatprep.subr.mxu0 0.0
        %1001 = vmatpush1.msra.mxu0 0.0
        %1002 = vmatprep.subr.mxu0 0.0
        %1003 = vmatpush1.msra.mxu0 0.0
        %1004 = vmatprep.subr.mxu0 0.0
        %1005 = vmatpush1.msra.mxu0 0.0
        %1006 = vmatprep.subr.mxu0 0.0
        %1007 = vmatpush1.msra.mxu0 0.0
        %1008 = vmatprep.subr.mxu0 0.0
        %1009 = vmatpush1.msra.mxu0 0.0
        %1010 = vmatprep.subr.mxu0 0.0
        %1011 = vmatpush1.msra.mxu0 0.0
        %1012 = vmatprep.subr.mxu0 0.0
        %1013 = vmatpush1.msra.mxu0 0.0
        %1014 = vmatprep.mubr.f32.mxu0 0.0
        %1015 = vmatmul.mubr.f32.gmra.mrb[0].mxu0 %v948
        %v1016 = vpop.f32.mrb[0].mxu0
        %v1017 = vadd.f32 0.0, %v1016
        %v1018 = vpop.f32.mrb[0].mxu0
        %1019 = vdwg.mxu0
        %1020 = vrot.lane.b32.xlu0 %v744, 64
        %v1021 = vpop.permute.xlu0 %1020
        %v1024 = vsel %vm754, %v943, 0
        %1026 = vmatprep.subr.mxu0 0.0
        %1027 = vmatpush1.msra.mxu0 %v1021
        %1028 = vmatprep.subr.mxu0 0.0
        %1029 = vmatpush1.msra.mxu0 0.0
        %1030 = vmatprep.subr.mxu0 0.0
        %1031 = vmatpush1.msra.mxu0 0.0
        %1032 = vmatprep.subr.mxu0 0.0
        %1033 = vmatpush1.msra.mxu0 0.0
        %1034 = vmatprep.subr.mxu0 0.0
        %1035 = vmatpush1.msra.mxu0 0.0
        %1036 = vmatprep.subr.mxu0 0.0
        %1037 = vmatpush1.msra.mxu0 0.0
        %1038 = vmatprep.subr.mxu0 0.0
        %1039 = vmatpush1.msra.mxu0 0.0
        %1040 = vmatprep.subr.mxu0 0.0
        %1041 = vmatpush1.msra.mxu0 0.0
        %1042 = vmatprep.subr.mxu0 0.0
        %1043 = vmatpush1.msra.mxu0 0.0
        %1044 = vmatprep.subr.mxu0 0.0
        %1045 = vmatpush1.msra.mxu0 0.0
        %1046 = vmatprep.subr.mxu0 0.0
        %1047 = vmatpush1.msra.mxu0 0.0
        %1048 = vmatprep.subr.mxu0 0.0
        %1049 = vmatpush1.msra.mxu0 0.0
        %1050 = vmatprep.subr.mxu0 0.0
        %1051 = vmatpush1.msra.mxu0 0.0
        %1052 = vmatprep.subr.mxu0 0.0
        %1053 = vmatpush1.msra.mxu0 0.0
        %1054 = vmatprep.subr.mxu0 0.0
        %1055 = vmatpush1.msra.mxu0 0.0
        %1056 = vmatprep.subr.mxu0 0.0
        %1057 = vmatpush1.msra.mxu0 0.0
        %1058 = vmatprep.subr.mxu0 0.0
        %1059 = vmatpush1.msra.mxu0 0.0
        %1060 = vmatprep.subr.mxu0 0.0
        %1061 = vmatpush1.msra.mxu0 0.0
        %1062 = vmatprep.subr.mxu0 0.0
        %1063 = vmatpush1.msra.mxu0 0.0
        %1064 = vmatprep.subr.mxu0 0.0
        %1065 = vmatpush1.msra.mxu0 0.0
        %1066 = vmatprep.subr.mxu0 0.0
        %1067 = vmatpush1.msra.mxu0 0.0
        %1068 = vmatprep.subr.mxu0 0.0
        %1069 = vmatpush1.msra.mxu0 0.0
        %1070 = vmatprep.subr.mxu0 0.0
        %1071 = vmatpush1.msra.mxu0 0.0
        %1072 = vmatprep.subr.mxu0 0.0
        %1073 = vmatpush1.msra.mxu0 0.0
        %1074 = vmatprep.subr.mxu0 0.0
        %1075 = vmatpush1.msra.mxu0 0.0
        %1076 = vmatprep.subr.mxu0 0.0
        %1077 = vmatpush1.msra.mxu0 0.0
        %1078 = vmatprep.subr.mxu0 0.0
        %1079 = vmatpush1.msra.mxu0 0.0
        %1080 = vmatprep.subr.mxu0 0.0
        %1081 = vmatpush1.msra.mxu0 0.0
        %1082 = vmatprep.subr.mxu0 0.0
        %1083 = vmatpush1.msra.mxu0 0.0
        %1084 = vmatprep.subr.mxu0 0.0
        %1085 = vmatpush1.msra.mxu0 0.0
        %1086 = vmatprep.subr.mxu0 0.0
        %1087 = vmatpush1.msra.mxu0 0.0
        %1088 = vmatprep.subr.mxu0 0.0
        %1089 = vmatpush1.msra.mxu0 0.0
        %1090 = vmatprep.mubr.f32.mxu0 0.0
        %1091 = vmatmul.mubr.f32.gmra.mrb[0].mxu0 %v1024
        %v1092 = vpop.f32.mrb[0].mxu0
        %v1093 = vadd.f32 0.0, %v1092
        %v1094 = vpop.f32.mrb[0].mxu0
        %1095 = vdwg.mxu0
        %1096 = vrot.lane.b32.xlu0 %v739, 120
        %v1097 = vpop.permute.xlu0 %1096
        %1098 = vrot.lane.b32.xlu0 %v739, 88
        %v1099 = vpop.permute.xlu0 %1098
        %v1100 = vsel %vm754, %v1097, 0
        %v1102 = vsel %vm754, %v1099, 0
        %1104 = vmatprep.subr.mxu0 0.0
        %1105 = vmatpush1.xpose.msra.mxu0 %v1102
        %1106 = vmatprep.subr.mxu0 0.0
        %1107 = vmatpush1.xpose.msra.mxu0 0.0
        %1108 = vmatprep.subr.mxu0 0.0
        %1109 = vmatpush1.xpose.msra.mxu0 0.0
        %1110 = vmatprep.subr.mxu0 0.0
        %1111 = vmatpush1.xpose.msra.mxu0 0.0
        %1112 = vmatprep.subr.mxu0 0.0
        %1113 = vmatpush1.xpose.msra.mxu0 0.0
        %1114 = vmatprep.subr.mxu0 0.0
        %1115 = vmatpush1.xpose.msra.mxu0 0.0
        %1116 = vmatprep.subr.mxu0 0.0
        %1117 = vmatpush1.xpose.msra.mxu0 0.0
        %1118 = vmatprep.subr.mxu0 0.0
        %1119 = vmatpush1.xpose.msra.mxu0 0.0
        %1120 = vmatprep.subr.mxu0 0.0
        %1121 = vmatpush1.xpose.msra.mxu0 0.0
        %1122 = vmatprep.subr.mxu0 0.0
        %1123 = vmatpush1.xpose.msra.mxu0 0.0
        %1124 = vmatprep.subr.mxu0 0.0
        %1125 = vmatpush1.xpose.msra.mxu0 0.0
        %1126 = vmatprep.subr.mxu0 0.0
        %1127 = vmatpush1.xpose.msra.mxu0 0.0
        %1128 = vmatprep.subr.mxu0 0.0
        %1129 = vmatpush1.xpose.msra.mxu0 0.0
        %1130 = vmatprep.subr.mxu0 0.0
        %1131 = vmatpush1.xpose.msra.mxu0 0.0
        %1132 = vmatprep.subr.mxu0 0.0
        %1133 = vmatpush1.xpose.msra.mxu0 0.0
        %1134 = vmatprep.subr.mxu0 0.0
        %1135 = vmatpush1.xpose.msra.mxu0 0.0
        %1136 = vmatprep.subr.mxu0 0.0
        %1137 = vmatpush1.xpose.msra.mxu0 0.0
        %1138 = vmatprep.subr.mxu0 0.0
        %1139 = vmatpush1.xpose.msra.mxu0 0.0
        %1140 = vmatprep.subr.mxu0 0.0
        %1141 = vmatpush1.xpose.msra.mxu0 0.0
        %1142 = vmatprep.subr.mxu0 0.0
        %1143 = vmatpush1.xpose.msra.mxu0 0.0
        %1144 = vmatprep.subr.mxu0 0.0
        %1145 = vmatpush1.xpose.msra.mxu0 0.0
        %1146 = vmatprep.subr.mxu0 0.0
        %1147 = vmatpush1.xpose.msra.mxu0 0.0
        %1148 = vmatprep.subr.mxu0 0.0
        %1149 = vmatpush1.xpose.msra.mxu0 0.0
        %1150 = vmatprep.subr.mxu0 0.0
        %1151 = vmatpush1.xpose.msra.mxu0 0.0
        %1152 = vmatprep.subr.mxu0 0.0
        %1153 = vmatpush1.xpose.msra.mxu0 0.0
        %1154 = vmatprep.subr.mxu0 0.0
        %1155 = vmatpush1.xpose.msra.mxu0 0.0
        %1156 = vmatprep.subr.mxu0 0.0
        %1157 = vmatpush1.xpose.msra.mxu0 0.0
        %1158 = vmatprep.subr.mxu0 0.0
        %1159 = vmatpush1.xpose.msra.mxu0 0.0
        %1160 = vmatprep.subr.mxu0 0.0
        %1161 = vmatpush1.xpose.msra.mxu0 0.0
        %1162 = vmatprep.subr.mxu0 0.0
        %1163 = vmatpush1.xpose.msra.mxu0 0.0
        %1164 = vmatprep.subr.mxu0 0.0
        %1165 = vmatpush1.xpose.msra.mxu0 0.0
        %1166 = vmatprep.subr.mxu0 0.0
        %1167 = vmatpush1.xpose.msra.mxu0 0.0
        %1168 = vmatprep.mubr.f32.mxu0 0.0
        %1169 = vmatmul.mubr.f32.gmra.mrb[0].mxu0 %v1100
        %v1170 = vpop.f32.mrb[0].mxu0
        %v1171 = vadd.f32 0.0, %v1170
        %v1172 = vpop.f32.mrb[0].mxu0
        %1173 = vdwg.mxu0
        %1174 = vrot.lane.b32.xlu0 %v744, 120
        %v1175 = vpop.permute.xlu0 %1174
        %1176 = vrot.lane.b32.xlu0 %v744, 88
        %v1177 = vpop.permute.xlu0 %1176
        %v1178 = vsel %vm754, %v1175, 0
        %v1180 = vsel %vm754, %v1177, 0
        %1182 = vmatprep.subr.mxu0 0.0
        %1183 = vmatpush1.xpose.msra.mxu0 %v1180
        %1184 = vmatprep.subr.mxu0 0.0
        %1185 = vmatpush1.xpose.msra.mxu0 0.0
        %1186 = vmatprep.subr.mxu0 0.0
        %1187 = vmatpush1.xpose.msra.mxu0 0.0
        %1188 = vmatprep.subr.mxu0 0.0
        %1189 = vmatpush1.xpose.msra.mxu0 0.0
        %1190 = vmatprep.subr.mxu0 0.0
        %1191 = vmatpush1.xpose.msra.mxu0 0.0
        %1192 = vmatprep.subr.mxu0 0.0
        %1193 = vmatpush1.xpose.msra.mxu0 0.0
        %1194 = vmatprep.subr.mxu0 0.0
        %1195 = vmatpush1.xpose.msra.mxu0 0.0
        %1196 = vmatprep.subr.mxu0 0.0
        %1197 = vmatpush1.xpose.msra.mxu0 0.0
        %1198 = vmatprep.subr.mxu0 0.0
        %1199 = vmatpush1.xpose.msra.mxu0 0.0
        %1200 = vmatprep.subr.mxu0 0.0
        %1201 = vmatpush1.xpose.msra.mxu0 0.0
        %1202 = vmatprep.subr.mxu0 0.0
        %1203 = vmatpush1.xpose.msra.mxu0 0.0
        %1204 = vmatprep.subr.mxu0 0.0
        %1205 = vmatpush1.xpose.msra.mxu0 0.0
        %1206 = vmatprep.subr.mxu0 0.0
        %1207 = vmatpush1.xpose.msra.mxu0 0.0
        %1208 = vmatprep.subr.mxu0 0.0
        %1209 = vmatpush1.xpose.msra.mxu0 0.0
        %1210 = vmatprep.subr.mxu0 0.0
        %1211 = vmatpush1.xpose.msra.mxu0 0.0
        %1212 = vmatprep.subr.mxu0 0.0
        %1213 = vmatpush1.xpose.msra.mxu0 0.0
        %1214 = vmatprep.subr.mxu0 0.0
        %1215 = vmatpush1.xpose.msra.mxu0 0.0
        %1216 = vmatprep.subr.mxu0 0.0
        %1217 = vmatpush1.xpose.msra.mxu0 0.0
        %1218 = vmatprep.subr.mxu0 0.0
        %1219 = vmatpush1.xpose.msra.mxu0 0.0
        %1220 = vmatprep.subr.mxu0 0.0
        %1221 = vmatpush1.xpose.msra.mxu0 0.0
        %1222 = vmatprep.subr.mxu0 0.0
        %1223 = vmatpush1.xpose.msra.mxu0 0.0
        %1224 = vmatprep.subr.mxu0 0.0
        %1225 = vmatpush1.xpose.msra.mxu0 0.0
        %1226 = vmatprep.subr.mxu0 0.0
        %1227 = vmatpush1.xpose.msra.mxu0 0.0
        %1228 = vmatprep.subr.mxu0 0.0
        %1229 = vmatpush1.xpose.msra.mxu0 0.0
        %1230 = vmatprep.subr.mxu0 0.0
        %1231 = vmatpush1.xpose.msra.mxu0 0.0
        %1232 = vmatprep.subr.mxu0 0.0
        %1233 = vmatpush1.xpose.msra.mxu0 0.0
        %1234 = vmatprep.subr.mxu0 0.0
        %1235 = vmatpush1.xpose.msra.mxu0 0.0
        %1236 = vmatprep.subr.mxu0 0.0
        %1237 = vmatpush1.xpose.msra.mxu0 0.0
        %1238 = vmatprep.subr.mxu0 0.0
        %1239 = vmatpush1.xpose.msra.mxu0 0.0
        %1240 = vmatprep.subr.mxu0 0.0
        %1241 = vmatpush1.xpose.msra.mxu0 0.0
        %1242 = vmatprep.subr.mxu0 0.0
        %1243 = vmatpush1.xpose.msra.mxu0 0.0
        %1244 = vmatprep.subr.mxu0 0.0
        %1245 = vmatpush1.xpose.msra.mxu0 0.0
        %1246 = vmatprep.mubr.f32.mxu0 0.0
        %1247 = vmatmul.mubr.f32.gmra.mrb[0].mxu0 %v1178
        %v1248 = vpop.f32.mrb[0].mxu0
        %v1249 = vadd.f32 0.0, %v1248
        %v1250 = vpop.f32.mrb[0].mxu0
        %1251 = vdwg.mxu0
        %v1252 = vmul.f32 %v1171, 0.35355338
        %v1253 = vmul.f32 %v1249, 0.35355338
        %v1254 = vadd.f32 %v1252, %v913
        %v1255 = vadd.f32 %v1253, %v917
        %v1256 = vsel %vm754, %v1254, -inf
        %1257 = vmax.xlane.f32.xlu0 %v1256
        %v1258 = vpop.xlane.xlu0 %1257
        %v1259 = vsel %vm754, %v1255, -inf
        %1260 = vmax.xlane.f32.xlu0 %v1259
        %v1261 = vpop.xlane.xlu0 %1260
        %v1262 = vsub.f32 %v1254, %v1258
        %v1263 = vsub.f32 %v1255, %v1261
        %v1264 = vmul.f32 %v1262, 1.442695
        %v1265 = vpow.pop %v1264
        %v1266 = vmul.f32 %v1263, 1.442695
        %v1267 = vpow.pop %v1266
        %v1268 = vsel %vm754, %v1265, 0.0
        %1269 = vadd.xlane.f32.xlu0 %v1268
        %v1270 = vpop.xlane.xlu0 %1269
        %v1271 = vsel %vm754, %v1267, 0.0
        %1272 = vadd.xlane.f32.xlu0 %v1271
        %v1273 = vpop.xlane.xlu0 %1272
        %v1274 = vrcp.pop %v1270
        %v1275 = vrcp.pop %v1273
        %v1276 = vmul.f32 %v1265, %v1274
        %v1277 = vmul.f32 %v1267, %v1275
        %1278 = vrot.lane.b32.xlu0 %v739, 56
        %v1279 = vpop.permute.xlu0 %1278
        %v1282 = vsel %vm754, %v1276, 0
        %1284 = vmatprep.subr.mxu0 0.0
        %1285 = vmatpush1.msra.mxu0 %v1279
        %1286 = vmatprep.subr.mxu0 0.0
        %1287 = vmatpush1.msra.mxu0 0.0
        %1288 = vmatprep.subr.mxu0 0.0
        %1289 = vmatpush1.msra.mxu0 0.0
        %1290 = vmatprep.subr.mxu0 0.0
        %1291 = vmatpush1.msra.mxu0 0.0
        %1292 = vmatprep.subr.mxu0 0.0
        %1293 = vmatpush1.msra.mxu0 0.0
        %1294 = vmatprep.subr.mxu0 0.0
        %1295 = vmatpush1.msra.mxu0 0.0
        %1296 = vmatprep.subr.mxu0 0.0
        %1297 = vmatpush1.msra.mxu0 0.0
        %1298 = vmatprep.subr.mxu0 0.0
        %1299 = vmatpush1.msra.mxu0 0.0
        %1300 = vmatprep.subr.mxu0 0.0
        %1301 = vmatpush1.msra.mxu0 0.0
        %1302 = vmatprep.subr.mxu0 0.0
        %1303 = vmatpush1.msra.mxu0 0.0
        %1304 = vmatprep.subr.mxu0 0.0
        %1305 = vmatpush1.msra.mxu0 0.0
        %1306 = vmatprep.subr.mxu0 0.0
        %1307 = vmatpush1.msra.mxu0 0.0
        %1308 = vmatprep.subr.mxu0 0.0
        %1309 = vmatpush1.msra.mxu0 0.0
        %1310 = vmatprep.subr.mxu0 0.0
        %1311 = vmatpush1.msra.mxu0 0.0
        %1312 = vmatprep.subr.mxu0 0.0
        %1313 = vmatpush1.msra.mxu0 0.0
        %1314 = vmatprep.subr.mxu0 0.0
        %1315 = vmatpush1.msra.mxu0 0.0
        %1316 = vmatprep.subr.mxu0 0.0
        %1317 = vmatpush1.msra.mxu0 0.0
        %1318 = vmatprep.subr.mxu0 0.0
        %1319 = vmatpush1.msra.mxu0 0.0
        %1320 = vmatprep.subr.mxu0 0.0
        %1321 = vmatpush1.msra.mxu0 0.0
        %1322 = vmatprep.subr.mxu0 0.0
        %1323 = vmatpush1.msra.mxu0 0.0
        %1324 = vmatprep.subr.mxu0 0.0
        %1325 = vmatpush1.msra.mxu0 0.0
        %1326 = vmatprep.subr.mxu0 0.0
        %1327 = vmatpush1.msra.mxu0 0.0
        %1328 = vmatprep.subr.mxu0 0.0
        %1329 = vmatpush1.msra.mxu0 0.0
        %1330 = vmatprep.subr.mxu0 0.0
        %1331 = vmatpush1.msra.mxu0 0.0
        %1332 = vmatprep.subr.mxu0 0.0
        %1333 = vmatpush1.msra.mxu0 0.0
        %1334 = vmatprep.subr.mxu0 0.0
        %1335 = vmatpush1.msra.mxu0 0.0
        %1336 = vmatprep.subr.mxu0 0.0
        %1337 = vmatpush1.msra.mxu0 0.0
        %1338 = vmatprep.subr.mxu0 0.0
        %1339 = vmatpush1.msra.mxu0 0.0
        %1340 = vmatprep.subr.mxu0 0.0
        %1341 = vmatpush1.msra.mxu0 0.0
        %1342 = vmatprep.subr.mxu0 0.0
        %1343 = vmatpush1.msra.mxu0 0.0
        %1344 = vmatprep.subr.mxu0 0.0
        %1345 = vmatpush1.msra.mxu0 0.0
        %1346 = vmatprep.subr.mxu0 0.0
        %1347 = vmatpush1.msra.mxu0 0.0
        %1348 = vmatprep.mubr.f32.mxu0 0.0
        %1349 = vmatmul.mubr.f32.gmra.mrb[0].mxu0 %v1282
        %v1350 = vpop.f32.mrb[0].mxu0
        %v1351 = vadd.f32 0.0, %v1350
        %v1352 = vpop.f32.mrb[0].mxu0
        %1353 = vdwg.mxu0
        %1354 = vrot.lane.b32.xlu0 %v744, 56
        %v1355 = vpop.permute.xlu0 %1354
        %v1358 = vsel %vm754, %v1277, 0
        %1360 = vmatprep.subr.mxu0 0.0
        %1361 = vmatpush1.msra.mxu0 %v1355
        %1362 = vmatprep.subr.mxu0 0.0
        %1363 = vmatpush1.msra.mxu0 0.0
        %1364 = vmatprep.subr.mxu0 0.0
        %1365 = vmatpush1.msra.mxu0 0.0
        %1366 = vmatprep.subr.mxu0 0.0
        %1367 = vmatpush1.msra.mxu0 0.0
        %1368 = vmatprep.subr.mxu0 0.0
        %1369 = vmatpush1.msra.mxu0 0.0
        %1370 = vmatprep.subr.mxu0 0.0
        %1371 = vmatpush1.msra.mxu0 0.0
        %1372 = vmatprep.subr.mxu0 0.0
        %1373 = vmatpush1.msra.mxu0 0.0
        %1374 = vmatprep.subr.mxu0 0.0
        %1375 = vmatpush1.msra.mxu0 0.0
        %1376 = vmatprep.subr.mxu0 0.0
        %1377 = vmatpush1.msra.mxu0 0.0
        %1378 = vmatprep.subr.mxu0 0.0
        %1379 = vmatpush1.msra.mxu0 0.0
        %1380 = vmatprep.subr.mxu0 0.0
        %1381 = vmatpush1.msra.mxu0 0.0
        %1382 = vmatprep.subr.mxu0 0.0
        %1383 = vmatpush1.msra.mxu0 0.0
        %1384 = vmatprep.subr.mxu0 0.0
        %1385 = vmatpush1.msra.mxu0 0.0
        %1386 = vmatprep.subr.mxu0 0.0
        %1387 = vmatpush1.msra.mxu0 0.0
        %1388 = vmatprep.subr.mxu0 0.0
        %1389 = vmatpush1.msra.mxu0 0.0
        %1390 = vmatprep.subr.mxu0 0.0
        %1391 = vmatpush1.msra.mxu0 0.0
        %1392 = vmatprep.subr.mxu0 0.0
        %1393 = vmatpush1.msra.mxu0 0.0
        %1394 = vmatprep.subr.mxu0 0.0
        %1395 = vmatpush1.msra.mxu0 0.0
        %1396 = vmatprep.subr.mxu0 0.0
        %1397 = vmatpush1.msra.mxu0 0.0
        %1398 = vmatprep.subr.mxu0 0.0
        %1399 = vmatpush1.msra.mxu0 0.0
        %1400 = vmatprep.subr.mxu0 0.0
        %1401 = vmatpush1.msra.mxu0 0.0
        %1402 = vmatprep.subr.mxu0 0.0
        %1403 = vmatpush1.msra.mxu0 0.0
        %1404 = vmatprep.subr.mxu0 0.0
        %1405 = vmatpush1.msra.mxu0 0.0
        %1406 = vmatprep.subr.mxu0 0.0
        %1407 = vmatpush1.msra.mxu0 0.0
        %1408 = vmatprep.subr.mxu0 0.0
        %1409 = vmatpush1.msra.mxu0 0.0
        %1410 = vmatprep.subr.mxu0 0.0
        %1411 = vmatpush1.msra.mxu0 0.0
        %1412 = vmatprep.subr.mxu0 0.0
        %1413 = vmatpush1.msra.mxu0 0.0
        %1414 = vmatprep.subr.mxu0 0.0
        %1415 = vmatpush1.msra.mxu0 0.0
        %1416 = vmatprep.subr.mxu0 0.0
        %1417 = vmatpush1.msra.mxu0 0.0
        %1418 = vmatprep.subr.mxu0 0.0
        %1419 = vmatpush1.msra.mxu0 0.0
        %1420 = vmatprep.subr.mxu0 0.0
        %1421 = vmatpush1.msra.mxu0 0.0
        %1422 = vmatprep.subr.mxu0 0.0
        %1423 = vmatpush1.msra.mxu0 0.0
        %1424 = vmatprep.mubr.f32.mxu0 0.0
        %1425 = vmatmul.mubr.f32.gmra.mrb[0].mxu0 %v1358
        %v1426 = vpop.f32.mrb[0].mxu0
        %v1427 = vadd.f32 0.0, %v1426
        %v1428 = vpop.f32.mrb[0].mxu0
        %1429 = vdwg.mxu0
        %v1431 = vsel %vm754, %v1351, 0
        %v1434 = vsel %vm754, %v1427, 0
        %1436 = vmatprep.subr.mxu0 0.0
        %1437 = vmatpush1.msra.mxu0 %v748
        %1438 = vmatprep.subr.mxu0 0.0
        %1439 = vmatpush1.msra.mxu0 0.0
        %1440 = vmatprep.subr.mxu0 0.0
        %1441 = vmatpush1.msra.mxu0 0.0
        %1442 = vmatprep.subr.mxu0 0.0
        %1443 = vmatpush1.msra.mxu0 0.0
        %1444 = vmatprep.subr.mxu0 0.0
        %1445 = vmatpush1.msra.mxu0 0.0
        %1446 = vmatprep.subr.mxu0 0.0
        %1447 = vmatpush1.msra.mxu0 0.0
        %1448 = vmatprep.subr.mxu0 0.0
        %1449 = vmatpush1.msra.mxu0 0.0
        %1450 = vmatprep.subr.mxu0 0.0
        %1451 = vmatpush1.msra.mxu0 0.0
        %1452 = vmatprep.subr.mxu0 0.0
        %1453 = vmatpush1.msra.mxu0 0.0
        %1454 = vmatprep.subr.mxu0 0.0
        %1455 = vmatpush1.msra.mxu0 0.0
        %1456 = vmatprep.subr.mxu0 0.0
        %1457 = vmatpush1.msra.mxu0 0.0
        %1458 = vmatprep.subr.mxu0 0.0
        %1459 = vmatpush1.msra.mxu0 0.0
        %1460 = vmatprep.subr.mxu0 0.0
        %1461 = vmatpush1.msra.mxu0 0.0
        %1462 = vmatprep.subr.mxu0 0.0
        %1463 = vmatpush1.msra.mxu0 0.0
        %1464 = vmatprep.subr.mxu0 0.0
        %1465 = vmatpush1.msra.mxu0 0.0
        %1466 = vmatprep.subr.mxu0 0.0
        %1467 = vmatpush1.msra.mxu0 0.0
        %1468 = vmatprep.subr.mxu0 0.0
        %1469 = vmatpush1.msra.mxu0 0.0
        %1470 = vmatprep.subr.mxu0 0.0
        %1471 = vmatpush1.msra.mxu0 0.0
        %1472 = vmatprep.subr.mxu0 0.0
        %1473 = vmatpush1.msra.mxu0 0.0
        %1474 = vmatprep.subr.mxu0 0.0
        %1475 = vmatpush1.msra.mxu0 0.0
        %1476 = vmatprep.subr.mxu0 0.0
        %1477 = vmatpush1.msra.mxu0 0.0
        %1478 = vmatprep.subr.mxu0 0.0
        %1479 = vmatpush1.msra.mxu0 0.0
        %1480 = vmatprep.subr.mxu0 0.0
        %1481 = vmatpush1.msra.mxu0 0.0
        %1482 = vmatprep.subr.mxu0 0.0
        %1483 = vmatpush1.msra.mxu0 0.0
        %1484 = vmatprep.subr.mxu0 0.0
        %1485 = vmatpush1.msra.mxu0 0.0
        %1486 = vmatprep.subr.mxu0 0.0
        %1487 = vmatpush1.msra.mxu0 0.0
        %1488 = vmatprep.subr.mxu0 0.0
        %1489 = vmatpush1.msra.mxu0 0.0
        %1490 = vmatprep.subr.mxu0 0.0
        %1491 = vmatpush1.msra.mxu0 0.0
        %1492 = vmatprep.subr.mxu0 0.0
        %1493 = vmatpush1.msra.mxu0 0.0
        %1494 = vmatprep.subr.mxu0 0.0
        %1495 = vmatpush1.msra.mxu0 0.0
        %1496 = vmatprep.subr.mxu0 0.0
        %1497 = vmatpush1.msra.mxu0 0.0
        %1498 = vmatprep.subr.mxu0 0.0
        %1499 = vmatpush1.msra.mxu0 0.0
        %1500 = vmatprep.mubr.f32.mxu0 0.0
        %1501 = vmatmul.mubr.f32.gmra.mrb[0].mxu0 %v1431
        %v1502 = vpop.f32.mrb[0].mxu0
        %v1503 = vadd.f32 0.0, %v1502
        %v1504 = vpop.f32.mrb[0].mxu0
        %1505 = vmatprep.mubr.f32.mxu0 0.0
        %1506 = vmatmul.mubr.f32.gmra.mrb[0].mxu0 %v1434
        %v1507 = vpop.f32.mrb[0].mxu0
        %v1508 = vadd.f32 0.0, %v1507
        %v1509 = vpop.f32.mrb[0].mxu0
        %1510 = vdwg.mxu0
        %v1512 = vsel %vm754, %v1017, 0
        %v1515 = vsel %vm754, %v1093, 0
        %1517 = vmatprep.subr.mxu0 0.0
        %1518 = vmatpush1.msra.mxu0 %v747
        %1519 = vmatprep.subr.mxu0 0.0
        %1520 = vmatpush1.msra.mxu0 0.0
        %1521 = vmatprep.subr.mxu0 0.0
        %1522 = vmatpush1.msra.mxu0 0.0
        %1523 = vmatprep.subr.mxu0 0.0
        %1524 = vmatpush1.msra.mxu0 0.0
        %1525 = vmatprep.subr.mxu0 0.0
        %1526 = vmatpush1.msra.mxu0 0.0
        %1527 = vmatprep.subr.mxu0 0.0
        %1528 = vmatpush1.msra.mxu0 0.0
        %1529 = vmatprep.subr.mxu0 0.0
        %1530 = vmatpush1.msra.mxu0 0.0
        %1531 = vmatprep.subr.mxu0 0.0
        %1532 = vmatpush1.msra.mxu0 0.0
        %1533 = vmatprep.subr.mxu0 0.0
        %1534 = vmatpush1.msra.mxu0 0.0
        %1535 = vmatprep.subr.mxu0 0.0
        %1536 = vmatpush1.msra.mxu0 0.0
        %1537 = vmatprep.subr.mxu0 0.0
        %1538 = vmatpush1.msra.mxu0 0.0
        %1539 = vmatprep.subr.mxu0 0.0
        %1540 = vmatpush1.msra.mxu0 0.0
        %1541 = vmatprep.subr.mxu0 0.0
        %1542 = vmatpush1.msra.mxu0 0.0
        %1543 = vmatprep.subr.mxu0 0.0
        %1544 = vmatpush1.msra.mxu0 0.0
        %1545 = vmatprep.subr.mxu0 0.0
        %1546 = vmatpush1.msra.mxu0 0.0
        %1547 = vmatprep.subr.mxu0 0.0
        %1548 = vmatpush1.msra.mxu0 0.0
        %1549 = vmatprep.subr.mxu0 0.0
        %1550 = vmatpush1.msra.mxu0 0.0
        %1551 = vmatprep.subr.mxu0 0.0
        %1552 = vmatpush1.msra.mxu0 0.0
        %1553 = vmatprep.subr.mxu0 0.0
        %1554 = vmatpush1.msra.mxu0 0.0
        %1555 = vmatprep.subr.mxu0 0.0
        %1556 = vmatpush1.msra.mxu0 0.0
        %1557 = vmatprep.subr.mxu0 0.0
        %1558 = vmatpush1.msra.mxu0 0.0
        %1559 = vmatprep.subr.mxu0 0.0
        %1560 = vmatpush1.msra.mxu0 0.0
        %1561 = vmatprep.subr.mxu0 0.0
        %1562 = vmatpush1.msra.mxu0 0.0
        %1563 = vmatprep.subr.mxu0 0.0
        %1564 = vmatpush1.msra.mxu0 0.0
        %1565 = vmatprep.subr.mxu0 0.0
        %1566 = vmatpush1.msra.mxu0 0.0
        %1567 = vmatprep.subr.mxu0 0.0
        %1568 = vmatpush1.msra.mxu0 0.0
        %1569 = vmatprep.subr.mxu0 0.0
        %1570 = vmatpush1.msra.mxu0 0.0
        %1571 = vmatprep.subr.mxu0 0.0
        %1572 = vmatpush1.msra.mxu0 0.0
        %1573 = vmatprep.subr.mxu0 0.0
        %1574 = vmatpush1.msra.mxu0 0.0
        %1575 = vmatprep.subr.mxu0 0.0
        %1576 = vmatpush1.msra.mxu0 0.0
        %1577 = vmatprep.subr.mxu0 0.0
        %1578 = vmatpush1.msra.mxu0 0.0
        %1579 = vmatprep.subr.mxu0 0.0
        %1580 = vmatpush1.msra.mxu0 0.0
        %1581 = vmatprep.mubr.f32.mxu0 0.0
        %1582 = vmatmul.mubr.f32.gmra.mrb[0].mxu0 %v1512
        %v1583 = vpop.f32.mrb[0].mxu0
        %v1584 = vadd.f32 %v1503, %v1583
        %v1585 = vpop.f32.mrb[0].mxu0
        %1586 = vmatprep.mubr.f32.mxu0 0.0
        %1587 = vmatmul.mubr.f32.gmra.mrb[0].mxu0 %v1515
        %v1588 = vpop.f32.mrb[0].mxu0
        %v1589 = vadd.f32 %v1508, %v1588
        %v1590 = vpop.f32.mrb[0].mxu0
        %1591 = vdwg.mxu0
        %1592 = vrot.lane.b32.xlu0 %v739, 112
        %v1593 = vpop.permute.xlu0 %1592
        %1594 = vrot.lane.b32.xlu0 %v739, 80
        %v1595 = vpop.permute.xlu0 %1594
        %v1596 = vsel %vm754, %v1593, 0
        %v1598 = vsel %vm754, %v1595, 0
        %1600 = vmatprep.subr.mxu0 0.0
        %1601 = vmatpush1.xpose.msra.mxu0 %v1598
        %1602 = vmatprep.subr.mxu0 0.0
        %1603 = vmatpush1.xpose.msra.mxu0 0.0
        %1604 = vmatprep.subr.mxu0 0.0
        %1605 = vmatpush1.xpose.msra.mxu0 0.0
        %1606 = vmatprep.subr.mxu0 0.0
        %1607 = vmatpush1.xpose.msra.mxu0 0.0
        %1608 = vmatprep.subr.mxu0 0.0
        %1609 = vmatpush1.xpose.msra.mxu0 0.0
        %1610 = vmatprep.subr.mxu0 0.0
        %1611 = vmatpush1.xpose.msra.mxu0 0.0
        %1612 = vmatprep.subr.mxu0 0.0
        %1613 = vmatpush1.xpose.msra.mxu0 0.0
        %1614 = vmatprep.subr.mxu0 0.0
        %1615 = vmatpush1.xpose.msra.mxu0 0.0
        %1616 = vmatprep.subr.mxu0 0.0
        %1617 = vmatpush1.xpose.msra.mxu0 0.0
        %1618 = vmatprep.subr.mxu0 0.0
        %1619 = vmatpush1.xpose.msra.mxu0 0.0
        %1620 = vmatprep.subr.mxu0 0.0
        %1621 = vmatpush1.xpose.msra.mxu0 0.0
        %1622 = vmatprep.subr.mxu0 0.0
        %1623 = vmatpush1.xpose.msra.mxu0 0.0
        %1624 = vmatprep.subr.mxu0 0.0
        %1625 = vmatpush1.xpose.msra.mxu0 0.0
        %1626 = vmatprep.subr.mxu0 0.0
        %1627 = vmatpush1.xpose.msra.mxu0 0.0
        %1628 = vmatprep.subr.mxu0 0.0
        %1629 = vmatpush1.xpose.msra.mxu0 0.0
        %1630 = vmatprep.subr.mxu0 0.0
        %1631 = vmatpush1.xpose.msra.mxu0 0.0
        %1632 = vmatprep.subr.mxu0 0.0
        %1633 = vmatpush1.xpose.msra.mxu0 0.0
        %1634 = vmatprep.subr.mxu0 0.0
        %1635 = vmatpush1.xpose.msra.mxu0 0.0
        %1636 = vmatprep.subr.mxu0 0.0
        %1637 = vmatpush1.xpose.msra.mxu0 0.0
        %1638 = vmatprep.subr.mxu0 0.0
        %1639 = vmatpush1.xpose.msra.mxu0 0.0
        %1640 = vmatprep.subr.mxu0 0.0
        %1641 = vmatpush1.xpose.msra.mxu0 0.0
        %1642 = vmatprep.subr.mxu0 0.0
        %1643 = vmatpush1.xpose.msra.mxu0 0.0
        %1644 = vmatprep.subr.mxu0 0.0
        %1645 = vmatpush1.xpose.msra.mxu0 0.0
        %1646 = vmatprep.subr.mxu0 0.0
        %1647 = vmatpush1.xpose.msra.mxu0 0.0
        %1648 = vmatprep.subr.mxu0 0.0
        %1649 = vmatpush1.xpose.msra.mxu0 0.0
        %1650 = vmatprep.subr.mxu0 0.0
        %1651 = vmatpush1.xpose.msra.mxu0 0.0
        %1652 = vmatprep.subr.mxu0 0.0
        %1653 = vmatpush1.xpose.msra.mxu0 0.0
        %1654 = vmatprep.subr.mxu0 0.0
        %1655 = vmatpush1.xpose.msra.mxu0 0.0
        %1656 = vmatprep.subr.mxu0 0.0
        %1657 = vmatpush1.xpose.msra.mxu0 0.0
        %1658 = vmatprep.subr.mxu0 0.0
        %1659 = vmatpush1.xpose.msra.mxu0 0.0
        %1660 = vmatprep.subr.mxu0 0.0
        %1661 = vmatpush1.xpose.msra.mxu0 0.0
        %1662 = vmatprep.subr.mxu0 0.0
        %1663 = vmatpush1.xpose.msra.mxu0 0.0
        %1664 = vmatprep.mubr.f32.mxu0 0.0
        %1665 = vmatmul.mubr.f32.gmra.mrb[0].mxu0 %v1596
        %v1666 = vpop.f32.mrb[0].mxu0
        %v1667 = vadd.f32 0.0, %v1666
        %v1668 = vpop.f32.mrb[0].mxu0
        %1669 = vdwg.mxu0
        %1670 = vrot.lane.b32.xlu0 %v744, 112
        %v1671 = vpop.permute.xlu0 %1670
        %1672 = vrot.lane.b32.xlu0 %v744, 80
        %v1673 = vpop.permute.xlu0 %1672
        %v1674 = vsel %vm754, %v1671, 0
        %v1676 = vsel %vm754, %v1673, 0
        %1678 = vmatprep.subr.mxu0 0.0
        %1679 = vmatpush1.xpose.msra.mxu0 %v1676
        %1680 = vmatprep.subr.mxu0 0.0
        %1681 = vmatpush1.xpose.msra.mxu0 0.0
        %1682 = vmatprep.subr.mxu0 0.0
        %1683 = vmatpush1.xpose.msra.mxu0 0.0
        %1684 = vmatprep.subr.mxu0 0.0
        %1685 = vmatpush1.xpose.msra.mxu0 0.0
        %1686 = vmatprep.subr.mxu0 0.0
        %1687 = vmatpush1.xpose.msra.mxu0 0.0
        %1688 = vmatprep.subr.mxu0 0.0
        %1689 = vmatpush1.xpose.msra.mxu0 0.0
        %1690 = vmatprep.subr.mxu0 0.0
        %1691 = vmatpush1.xpose.msra.mxu0 0.0
        %1692 = vmatprep.subr.mxu0 0.0
        %1693 = vmatpush1.xpose.msra.mxu0 0.0
        %1694 = vmatprep.subr.mxu0 0.0
        %1695 = vmatpush1.xpose.msra.mxu0 0.0
        %1696 = vmatprep.subr.mxu0 0.0
        %1697 = vmatpush1.xpose.msra.mxu0 0.0
        %1698 = vmatprep.subr.mxu0 0.0
        %1699 = vmatpush1.xpose.msra.mxu0 0.0
        %1700 = vmatprep.subr.mxu0 0.0
        %1701 = vmatpush1.xpose.msra.mxu0 0.0
        %1702 = vmatprep.subr.mxu0 0.0
        %1703 = vmatpush1.xpose.msra.mxu0 0.0
        %1704 = vmatprep.subr.mxu0 0.0
        %1705 = vmatpush1.xpose.msra.mxu0 0.0
        %1706 = vmatprep.subr.mxu0 0.0
        %1707 = vmatpush1.xpose.msra.mxu0 0.0
        %1708 = vmatprep.subr.mxu0 0.0
        %1709 = vmatpush1.xpose.msra.mxu0 0.0
        %1710 = vmatprep.subr.mxu0 0.0
        %1711 = vmatpush1.xpose.msra.mxu0 0.0
        %1712 = vmatprep.subr.mxu0 0.0
        %1713 = vmatpush1.xpose.msra.mxu0 0.0
        %1714 = vmatprep.subr.mxu0 0.0
        %1715 = vmatpush1.xpose.msra.mxu0 0.0
        %1716 = vmatprep.subr.mxu0 0.0
        %1717 = vmatpush1.xpose.msra.mxu0 0.0
        %1718 = vmatprep.subr.mxu0 0.0
        %1719 = vmatpush1.xpose.msra.mxu0 0.0
        %1720 = vmatprep.subr.mxu0 0.0
        %1721 = vmatpush1.xpose.msra.mxu0 0.0
        %1722 = vmatprep.subr.mxu0 0.0
        %1723 = vmatpush1.xpose.msra.mxu0 0.0
        %1724 = vmatprep.subr.mxu0 0.0
        %1725 = vmatpush1.xpose.msra.mxu0 0.0
        %1726 = vmatprep.subr.mxu0 0.0
        %1727 = vmatpush1.xpose.msra.mxu0 0.0
        %1728 = vmatprep.subr.mxu0 0.0
        %1729 = vmatpush1.xpose.msra.mxu0 0.0
        %1730 = vmatprep.subr.mxu0 0.0
        %1731 = vmatpush1.xpose.msra.mxu0 0.0
        %1732 = vmatprep.subr.mxu0 0.0
        %1733 = vmatpush1.xpose.msra.mxu0 0.0
        %1734 = vmatprep.subr.mxu0 0.0
        %1735 = vmatpush1.xpose.msra.mxu0 0.0
        %1736 = vmatprep.subr.mxu0 0.0
        %1737 = vmatpush1.xpose.msra.mxu0 0.0
        %1738 = vmatprep.subr.mxu0 0.0
        %1739 = vmatpush1.xpose.msra.mxu0 0.0
        %1740 = vmatprep.subr.mxu0 0.0
        %1741 = vmatpush1.xpose.msra.mxu0 0.0
        %1742 = vmatprep.mubr.f32.mxu0 0.0
        %1743 = vmatmul.mubr.f32.gmra.mrb[0].mxu0 %v1674
        %v1744 = vpop.f32.mrb[0].mxu0
        %v1745 = vadd.f32 0.0, %v1744
        %v1746 = vpop.f32.mrb[0].mxu0
        %1747 = vdwg.mxu0
        %v1748 = vmul.f32 %v1667, 0.35355338
        %v1749 = vmul.f32 %v1745, 0.35355338
        %v1750 = vadd.f32 %v1748, %v913
        %v1751 = vadd.f32 %v1749, %v917
        %v1752 = vsel %vm754, %v1750, -inf
        %1753 = vmax.xlane.f32.xlu0 %v1752
        %v1754 = vpop.xlane.xlu0 %1753
        %v1755 = vsel %vm754, %v1751, -inf
        %1756 = vmax.xlane.f32.xlu0 %v1755
        %v1757 = vpop.xlane.xlu0 %1756
        %v1758 = vsub.f32 %v1750, %v1754
        %v1759 = vsub.f32 %v1751, %v1757
        %v1760 = vmul.f32 %v1758, 1.442695
        %v1761 = vpow.pop %v1760
        %v1762 = vmul.f32 %v1759, 1.442695
        %v1763 = vpow.pop %v1762
        %v1764 = vsel %vm754, %v1761, 0.0
        %1765 = vadd.xlane.f32.xlu0 %v1764
        %v1766 = vpop.xlane.xlu0 %1765
        %v1767 = vsel %vm754, %v1763, 0.0
        %1768 = vadd.xlane.f32.xlu0 %v1767
        %v1769 = vpop.xlane.xlu0 %1768
        %v1770 = vrcp.pop %v1766
        %v1771 = vrcp.pop %v1769
        %v1772 = vmul.f32 %v1761, %v1770
        %v1773 = vmul.f32 %v1763, %v1771
        %1774 = vrot.lane.b32.xlu0 %v739, 48
        %v1775 = vpop.permute.xlu0 %1774
        %v1778 = vsel %vm754, %v1772, 0
        %1780 = vmatprep.subr.mxu0 0.0
        %1781 = vmatpush1.msra.mxu0 %v1775
        %1782 = vmatprep.subr.mxu0 0.0
        %1783 = vmatpush1.msra.mxu0 0.0
        %1784 = vmatprep.subr.mxu0 0.0
        %1785 = vmatpush1.msra.mxu0 0.0
        %1786 = vmatprep.subr.mxu0 0.0
        %1787 = vmatpush1.msra.mxu0 0.0
        %1788 = vmatprep.subr.mxu0 0.0
        %1789 = vmatpush1.msra.mxu0 0.0
        %1790 = vmatprep.subr.mxu0 0.0
        %1791 = vmatpush1.msra.mxu0 0.0
        %1792 = vmatprep.subr.mxu0 0.0
        %1793 = vmatpush1.msra.mxu0 0.0
        %1794 = vmatprep.subr.mxu0 0.0
        %1795 = vmatpush1.msra.mxu0 0.0
        %1796 = vmatprep.subr.mxu0 0.0
        %1797 = vmatpush1.msra.mxu0 0.0
        %1798 = vmatprep.subr.mxu0 0.0
        %1799 = vmatpush1.msra.mxu0 0.0
        %1800 = vmatprep.subr.mxu0 0.0
        %1801 = vmatpush1.msra.mxu0 0.0
        %1802 = vmatprep.subr.mxu0 0.0
        %1803 = vmatpush1.msra.mxu0 0.0
        %1804 = vmatprep.subr.mxu0 0.0
        %1805 = vmatpush1.msra.mxu0 0.0
        %1806 = vmatprep.subr.mxu0 0.0
        %1807 = vmatpush1.msra.mxu0 0.0
        %1808 = vmatprep.subr.mxu0 0.0
        %1809 = vmatpush1.msra.mxu0 0.0
        %1810 = vmatprep.subr.mxu0 0.0
        %1811 = vmatpush1.msra.mxu0 0.0
        %1812 = vmatprep.subr.mxu0 0.0
        %1813 = vmatpush1.msra.mxu0 0.0
        %1814 = vmatprep.subr.mxu0 0.0
        %1815 = vmatpush1.msra.mxu0 0.0
        %1816 = vmatprep.subr.mxu0 0.0
        %1817 = vmatpush1.msra.mxu0 0.0
        %1818 = vmatprep.subr.mxu0 0.0
        %1819 = vmatpush1.msra.mxu0 0.0
        %1820 = vmatprep.subr.mxu0 0.0
        %1821 = vmatpush1.msra.mxu0 0.0
        %1822 = vmatprep.subr.mxu0 0.0
        %1823 = vmatpush1.msra.mxu0 0.0
        %1824 = vmatprep.subr.mxu0 0.0
        %1825 = vmatpush1.msra.mxu0 0.0
        %1826 = vmatprep.subr.mxu0 0.0
        %1827 = vmatpush1.msra.mxu0 0.0
        %1828 = vmatprep.subr.mxu0 0.0
        %1829 = vmatpush1.msra.mxu0 0.0
        %1830 = vmatprep.subr.mxu0 0.0
        %1831 = vmatpush1.msra.mxu0 0.0
        %1832 = vmatprep.subr.mxu0 0.0
        %1833 = vmatpush1.msra.mxu0 0.0
        %1834 = vmatprep.subr.mxu0 0.0
        %1835 = vmatpush1.msra.mxu0 0.0
        %1836 = vmatprep.subr.mxu0 0.0
        %1837 = vmatpush1.msra.mxu0 0.0
        %1838 = vmatprep.subr.mxu0 0.0
        %1839 = vmatpush1.msra.mxu0 0.0
        %1840 = vmatprep.subr.mxu0 0.0
        %1841 = vmatpush1.msra.mxu0 0.0
        %1842 = vmatprep.subr.mxu0 0.0
        %1843 = vmatpush1.msra.mxu0 0.0
        %1844 = vmatprep.mubr.f32.mxu0 0.0
        %1845 = vmatmul.mubr.f32.gmra.mrb[0].mxu0 %v1778
        %v1846 = vpop.f32.mrb[0].mxu0
        %v1847 = vadd.f32 0.0, %v1846
        %v1848 = vpop.f32.mrb[0].mxu0
        %1849 = vdwg.mxu0
        %1850 = vrot.lane.b32.xlu0 %v744, 48
        %v1851 = vpop.permute.xlu0 %1850
        %v1854 = vsel %vm754, %v1773, 0
        %1856 = vmatprep.subr.mxu0 0.0
        %1857 = vmatpush1.msra.mxu0 %v1851
        %1858 = vmatprep.subr.mxu0 0.0
        %1859 = vmatpush1.msra.mxu0 0.0
        %1860 = vmatprep.subr.mxu0 0.0
        %1861 = vmatpush1.msra.mxu0 0.0
        %1862 = vmatprep.subr.mxu0 0.0
        %1863 = vmatpush1.msra.mxu0 0.0
        %1864 = vmatprep.subr.mxu0 0.0
        %1865 = vmatpush1.msra.mxu0 0.0
        %1866 = vmatprep.subr.mxu0 0.0
        %1867 = vmatpush1.msra.mxu0 0.0
        %1868 = vmatprep.subr.mxu0 0.0
        %1869 = vmatpush1.msra.mxu0 0.0
        %1870 = vmatprep.subr.mxu0 0.0
        %1871 = vmatpush1.msra.mxu0 0.0
        %1872 = vmatprep.subr.mxu0 0.0
        %1873 = vmatpush1.msra.mxu0 0.0
        %1874 = vmatprep.subr.mxu0 0.0
        %1875 = vmatpush1.msra.mxu0 0.0
        %1876 = vmatprep.subr.mxu0 0.0
        %1877 = vmatpush1.msra.mxu0 0.0
        %1878 = vmatprep.subr.mxu0 0.0
        %1879 = vmatpush1.msra.mxu0 0.0
        %1880 = vmatprep.subr.mxu0 0.0
        %1881 = vmatpush1.msra.mxu0 0.0
        %1882 = vmatprep.subr.mxu0 0.0
        %1883 = vmatpush1.msra.mxu0 0.0
        %1884 = vmatprep.subr.mxu0 0.0
        %1885 = vmatpush1.msra.mxu0 0.0
        %1886 = vmatprep.subr.mxu0 0.0
        %1887 = vmatpush1.msra.mxu0 0.0
        %1888 = vmatprep.subr.mxu0 0.0
        %1889 = vmatpush1.msra.mxu0 0.0
        %1890 = vmatprep.subr.mxu0 0.0
        %1891 = vmatpush1.msra.mxu0 0.0
        %1892 = vmatprep.subr.mxu0 0.0
        %1893 = vmatpush1.msra.mxu0 0.0
        %1894 = vmatprep.subr.mxu0 0.0
        %1895 = vmatpush1.msra.mxu0 0.0
        %1896 = vmatprep.subr.mxu0 0.0
        %1897 = vmatpush1.msra.mxu0 0.0
        %1898 = vmatprep.subr.mxu0 0.0
        %1899 = vmatpush1.msra.mxu0 0.0
        %1900 = vmatprep.subr.mxu0 0.0
        %1901 = vmatpush1.msra.mxu0 0.0
        %1902 = vmatprep.subr.mxu0 0.0
        %1903 = vmatpush1.msra.mxu0 0.0
        %1904 = vmatprep.subr.mxu0 0.0
        %1905 = vmatpush1.msra.mxu0 0.0
        %1906 = vmatprep.subr.mxu0 0.0
        %1907 = vmatpush1.msra.mxu0 0.0
        %1908 = vmatprep.subr.mxu0 0.0
        %1909 = vmatpush1.msra.mxu0 0.0
        %1910 = vmatprep.subr.mxu0 0.0
        %1911 = vmatpush1.msra.mxu0 0.0
        %1912 = vmatprep.subr.mxu0 0.0
        %1913 = vmatpush1.msra.mxu0 0.0
        %1914 = vmatprep.subr.mxu0 0.0
        %1915 = vmatpush1.msra.mxu0 0.0
        %1916 = vmatprep.subr.mxu0 0.0
        %1917 = vmatpush1.msra.mxu0 0.0
        %1918 = vmatprep.subr.mxu0 0.0
        %1919 = vmatpush1.msra.mxu0 0.0
        %1920 = vmatprep.mubr.f32.mxu0 0.0
        %1921 = vmatmul.mubr.f32.gmra.mrb[0].mxu0 %v1854
        %v1922 = vpop.f32.mrb[0].mxu0
        %v1923 = vadd.f32 0.0, %v1922
        %v1924 = vpop.f32.mrb[0].mxu0
        %1925 = vdwg.mxu0
        %v1927 = vsel %vm754, %v1847, 0
        %v1930 = vsel %vm754, %v1923, 0
        %1932 = vmatprep.subr.mxu0 0.0
        %1933 = vmatpush1.msra.mxu0 %v749
        %1934 = vmatprep.subr.mxu0 0.0
        %1935 = vmatpush1.msra.mxu0 0.0
        %1936 = vmatprep.subr.mxu0 0.0
        %1937 = vmatpush1.msra.mxu0 0.0
        %1938 = vmatprep.subr.mxu0 0.0
        %1939 = vmatpush1.msra.mxu0 0.0
        %1940 = vmatprep.subr.mxu0 0.0
        %1941 = vmatpush1.msra.mxu0 0.0
        %1942 = vmatprep.subr.mxu0 0.0
        %1943 = vmatpush1.msra.mxu0 0.0
        %1944 = vmatprep.subr.mxu0 0.0
        %1945 = vmatpush1.msra.mxu0 0.0
        %1946 = vmatprep.subr.mxu0 0.0
        %1947 = vmatpush1.msra.mxu0 0.0
        %1948 = vmatprep.subr.mxu0 0.0
        %1949 = vmatpush1.msra.mxu0 0.0
        %1950 = vmatprep.subr.mxu0 0.0
        %1951 = vmatpush1.msra.mxu0 0.0
        %1952 = vmatprep.subr.mxu0 0.0
        %1953 = vmatpush1.msra.mxu0 0.0
        %1954 = vmatprep.subr.mxu0 0.0
        %1955 = vmatpush1.msra.mxu0 0.0
        %1956 = vmatprep.subr.mxu0 0.0
        %1957 = vmatpush1.msra.mxu0 0.0
        %1958 = vmatprep.subr.mxu0 0.0
        %1959 = vmatpush1.msra.mxu0 0.0
        %1960 = vmatprep.subr.mxu0 0.0
        %1961 = vmatpush1.msra.mxu0 0.0
        %1962 = vmatprep.subr.mxu0 0.0
        %1963 = vmatpush1.msra.mxu0 0.0
        %1964 = vmatprep.subr.mxu0 0.0
        %1965 = vmatpush1.msra.mxu0 0.0
        %1966 = vmatprep.subr.mxu0 0.0
        %1967 = vmatpush1.msra.mxu0 0.0
        %1968 = vmatprep.subr.mxu0 0.0
        %1969 = vmatpush1.msra.mxu0 0.0
        %1970 = vmatprep.subr.mxu0 0.0
        %1971 = vmatpush1.msra.mxu0 0.0
        %1972 = vmatprep.subr.mxu0 0.0
        %1973 = vmatpush1.msra.mxu0 0.0
        %1974 = vmatprep.subr.mxu0 0.0
        %1975 = vmatpush1.msra.mxu0 0.0
        %1976 = vmatprep.subr.mxu0 0.0
        %1977 = vmatpush1.msra.mxu0 0.0
        %1978 = vmatprep.subr.mxu0 0.0
        %1979 = vmatpush1.msra.mxu0 0.0
        %1980 = vmatprep.subr.mxu0 0.0
        %1981 = vmatpush1.msra.mxu0 0.0
        %1982 = vmatprep.subr.mxu0 0.0
        %1983 = vmatpush1.msra.mxu0 0.0
        %1984 = vmatprep.subr.mxu0 0.0
        %1985 = vmatpush1.msra.mxu0 0.0
        %1986 = vmatprep.subr.mxu0 0.0
        %1987 = vmatpush1.msra.mxu0 0.0
        %1988 = vmatprep.subr.mxu0 0.0
        %1989 = vmatpush1.msra.mxu0 0.0
        %1990 = vmatprep.subr.mxu0 0.0
        %1991 = vmatpush1.msra.mxu0 0.0
        %1992 = vmatprep.subr.mxu0 0.0
        %1993 = vmatpush1.msra.mxu0 0.0
        %1994 = vmatprep.subr.mxu0 0.0
        %1995 = vmatpush1.msra.mxu0 0.0
        %1996 = vmatprep.mubr.f32.mxu0 0.0
        %1997 = vmatmul.mubr.f32.gmra.mrb[0].mxu0 %v1927
        %v1998 = vpop.f32.mrb[0].mxu0
        %v1999 = vadd.f32 0.0, %v1998
        %v2000 = vpop.f32.mrb[0].mxu0
        %2001 = vmatprep.mubr.f32.mxu0 0.0
        %2002 = vmatmul.mubr.f32.gmra.mrb[0].mxu0 %v1930
        %v2003 = vpop.f32.mrb[0].mxu0
        %v2004 = vadd.f32 0.0, %v2003
        %v2005 = vpop.f32.mrb[0].mxu0
        %2006 = vdwg.mxu0
        %v2007 = vadd.f32 %v1584, %v1999
        %v2008 = vadd.f32 %v1589, %v2004
        %2009 = vrot.lane.b32.xlu0 %v739, 104
        %v2010 = vpop.permute.xlu0 %2009
        %2011 = vrot.lane.b32.xlu0 %v739, 72
        %v2012 = vpop.permute.xlu0 %2011
        %v2013 = vsel %vm754, %v2010, 0
        %v2015 = vsel %vm754, %v2012, 0
        %2017 = vmatprep.subr.mxu0 0.0
        %2018 = vmatpush1.xpose.msra.mxu0 %v2015
        %2019 = vmatprep.subr.mxu0 0.0
        %2020 = vmatpush1.xpose.msra.mxu0 0.0
        %2021 = vmatprep.subr.mxu0 0.0
        %2022 = vmatpush1.xpose.msra.mxu0 0.0
        %2023 = vmatprep.subr.mxu0 0.0
        %2024 = vmatpush1.xpose.msra.mxu0 0.0
        %2025 = vmatprep.subr.mxu0 0.0
        %2026 = vmatpush1.xpose.msra.mxu0 0.0
        %2027 = vmatprep.subr.mxu0 0.0
        %2028 = vmatpush1.xpose.msra.mxu0 0.0
        %2029 = vmatprep.subr.mxu0 0.0
        %2030 = vmatpush1.xpose.msra.mxu0 0.0
        %2031 = vmatprep.subr.mxu0 0.0
        %2032 = vmatpush1.xpose.msra.mxu0 0.0
        %2033 = vmatprep.subr.mxu0 0.0
        %2034 = vmatpush1.xpose.msra.mxu0 0.0
        %2035 = vmatprep.subr.mxu0 0.0
        %2036 = vmatpush1.xpose.msra.mxu0 0.0
        %2037 = vmatprep.subr.mxu0 0.0
        %2038 = vmatpush1.xpose.msra.mxu0 0.0
        %2039 = vmatprep.subr.mxu0 0.0
        %2040 = vmatpush1.xpose.msra.mxu0 0.0
        %2041 = vmatprep.subr.mxu0 0.0
        %2042 = vmatpush1.xpose.msra.mxu0 0.0
        %2043 = vmatprep.subr.mxu0 0.0
        %2044 = vmatpush1.xpose.msra.mxu0 0.0
        %2045 = vmatprep.subr.mxu0 0.0
        %2046 = vmatpush1.xpose.msra.mxu0 0.0
        %2047 = vmatprep.subr.mxu0 0.0
        %2048 = vmatpush1.xpose.msra.mxu0 0.0
        %2049 = vmatprep.subr.mxu0 0.0
        %2050 = vmatpush1.xpose.msra.mxu0 0.0
        %2051 = vmatprep.subr.mxu0 0.0
        %2052 = vmatpush1.xpose.msra.mxu0 0.0
        %2053 = vmatprep.subr.mxu0 0.0
        %2054 = vmatpush1.xpose.msra.mxu0 0.0
        %2055 = vmatprep.subr.mxu0 0.0
        %2056 = vmatpush1.xpose.msra.mxu0 0.0
        %2057 = vmatprep.subr.mxu0 0.0
        %2058 = vmatpush1.xpose.msra.mxu0 0.0
        %2059 = vmatprep.subr.mxu0 0.0
        %2060 = vmatpush1.xpose.msra.mxu0 0.0
        %2061 = vmatprep.subr.mxu0 0.0
        %2062 = vmatpush1.xpose.msra.mxu0 0.0
        %2063 = vmatprep.subr.mxu0 0.0
        %2064 = vmatpush1.xpose.msra.mxu0 0.0
        %2065 = vmatprep.subr.mxu0 0.0
        %2066 = vmatpush1.xpose.msra.mxu0 0.0
        %2067 = vmatprep.subr.mxu0 0.0
        %2068 = vmatpush1.xpose.msra.mxu0 0.0
        %2069 = vmatprep.subr.mxu0 0.0
        %2070 = vmatpush1.xpose.msra.mxu0 0.0
        %2071 = vmatprep.subr.mxu0 0.0
        %2072 = vmatpush1.xpose.msra.mxu0 0.0
        %2073 = vmatprep.subr.mxu0 0.0
        %2074 = vmatpush1.xpose.msra.mxu0 0.0
        %2075 = vmatprep.subr.mxu0 0.0
        %2076 = vmatpush1.xpose.msra.mxu0 0.0
        %2077 = vmatprep.subr.mxu0 0.0
        %2078 = vmatpush1.xpose.msra.mxu0 0.0
        %2079 = vmatprep.subr.mxu0 0.0
        %2080 = vmatpush1.xpose.msra.mxu0 0.0
        %2081 = vmatprep.mubr.f32.mxu0 0.0
        %2082 = vmatmul.mubr.f32.gmra.mrb[0].mxu0 %v2013
        %v2083 = vpop.f32.mrb[0].mxu0
        %v2084 = vadd.f32 0.0, %v2083
        %v2085 = vpop.f32.mrb[0].mxu0
        %2086 = vdwg.mxu0
        %2087 = vrot.lane.b32.xlu0 %v744, 104
        %v2088 = vpop.permute.xlu0 %2087
        %2089 = vrot.lane.b32.xlu0 %v744, 72
        %v2090 = vpop.permute.xlu0 %2089
        %v2091 = vsel %vm754, %v2088, 0
        %v2093 = vsel %vm754, %v2090, 0
        %2095 = vmatprep.subr.mxu0 0.0
        %2096 = vmatpush1.xpose.msra.mxu0 %v2093
        %2097 = vmatprep.subr.mxu0 0.0
        %2098 = vmatpush1.xpose.msra.mxu0 0.0
        %2099 = vmatprep.subr.mxu0 0.0
        %2100 = vmatpush1.xpose.msra.mxu0 0.0
        %2101 = vmatprep.subr.mxu0 0.0
        %2102 = vmatpush1.xpose.msra.mxu0 0.0
        %2103 = vmatprep.subr.mxu0 0.0
        %2104 = vmatpush1.xpose.msra.mxu0 0.0
        %2105 = vmatprep.subr.mxu0 0.0
        %2106 = vmatpush1.xpose.msra.mxu0 0.0
        %2107 = vmatprep.subr.mxu0 0.0
        %2108 = vmatpush1.xpose.msra.mxu0 0.0
        %2109 = vmatprep.subr.mxu0 0.0
        %2110 = vmatpush1.xpose.msra.mxu0 0.0
        %2111 = vmatprep.subr.mxu0 0.0
        %2112 = vmatpush1.xpose.msra.mxu0 0.0
        %2113 = vmatprep.subr.mxu0 0.0
        %2114 = vmatpush1.xpose.msra.mxu0 0.0
        %2115 = vmatprep.subr.mxu0 0.0
        %2116 = vmatpush1.xpose.msra.mxu0 0.0
        %2117 = vmatprep.subr.mxu0 0.0
        %2118 = vmatpush1.xpose.msra.mxu0 0.0
        %2119 = vmatprep.subr.mxu0 0.0
        %2120 = vmatpush1.xpose.msra.mxu0 0.0
        %2121 = vmatprep.subr.mxu0 0.0
        %2122 = vmatpush1.xpose.msra.mxu0 0.0
        %2123 = vmatprep.subr.mxu0 0.0
        %2124 = vmatpush1.xpose.msra.mxu0 0.0
        %2125 = vmatprep.subr.mxu0 0.0
        %2126 = vmatpush1.xpose.msra.mxu0 0.0
        %2127 = vmatprep.subr.mxu0 0.0
        %2128 = vmatpush1.xpose.msra.mxu0 0.0
        %2129 = vmatprep.subr.mxu0 0.0
        %2130 = vmatpush1.xpose.msra.mxu0 0.0
        %2131 = vmatprep.subr.mxu0 0.0
        %2132 = vmatpush1.xpose.msra.mxu0 0.0
        %2133 = vmatprep.subr.mxu0 0.0
        %2134 = vmatpush1.xpose.msra.mxu0 0.0
        %2135 = vmatprep.subr.mxu0 0.0
        %2136 = vmatpush1.xpose.msra.mxu0 0.0
        %2137 = vmatprep.subr.mxu0 0.0
        %2138 = vmatpush1.xpose.msra.mxu0 0.0
        %2139 = vmatprep.subr.mxu0 0.0
        %2140 = vmatpush1.xpose.msra.mxu0 0.0
        %2141 = vmatprep.subr.mxu0 0.0
        %2142 = vmatpush1.xpose.msra.mxu0 0.0
        %2143 = vmatprep.subr.mxu0 0.0
        %2144 = vmatpush1.xpose.msra.mxu0 0.0
        %2145 = vmatprep.subr.mxu0 0.0
        %2146 = vmatpush1.xpose.msra.mxu0 0.0
        %2147 = vmatprep.subr.mxu0 0.0
        %2148 = vmatpush1.xpose.msra.mxu0 0.0
        %2149 = vmatprep.subr.mxu0 0.0
        %2150 = vmatpush1.xpose.msra.mxu0 0.0
        %2151 = vmatprep.subr.mxu0 0.0
        %2152 = vmatpush1.xpose.msra.mxu0 0.0
        %2153 = vmatprep.subr.mxu0 0.0
        %2154 = vmatpush1.xpose.msra.mxu0 0.0
        %2155 = vmatprep.subr.mxu0 0.0
        %2156 = vmatpush1.xpose.msra.mxu0 0.0
        %2157 = vmatprep.subr.mxu0 0.0
        %2158 = vmatpush1.xpose.msra.mxu0 0.0
        %2159 = vmatprep.mubr.f32.mxu0 0.0
        %2160 = vmatmul.mubr.f32.gmra.mrb[0].mxu0 %v2091
        %v2161 = vpop.f32.mrb[0].mxu0
        %v2162 = vadd.f32 0.0, %v2161
        %v2163 = vpop.f32.mrb[0].mxu0
        %2164 = vdwg.mxu0
        %v2165 = vmul.f32 %v2084, 0.35355338
        %v2166 = vmul.f32 %v2162, 0.35355338
        %v2167 = vadd.f32 %v2165, %v913
        %v2168 = vadd.f32 %v2166, %v917
        %v2169 = vsel %vm754, %v2167, -inf
        %2170 = vmax.xlane.f32.xlu0 %v2169
        %v2171 = vpop.xlane.xlu0 %2170
        %v2172 = vsel %vm754, %v2168, -inf
        %2173 = vmax.xlane.f32.xlu0 %v2172
        %v2174 = vpop.xlane.xlu0 %2173
        %v2175 = vsub.f32 %v2167, %v2171
        %v2176 = vsub.f32 %v2168, %v2174
        %v2177 = vmul.f32 %v2175, 1.442695
        %v2178 = vpow.pop %v2177
        %v2179 = vmul.f32 %v2176, 1.442695
        %v2180 = vpow.pop %v2179
        %v2181 = vsel %vm754, %v2178, 0.0
        %2182 = vadd.xlane.f32.xlu0 %v2181
        %v2183 = vpop.xlane.xlu0 %2182
        %v2184 = vsel %vm754, %v2180, 0.0
        %2185 = vadd.xlane.f32.xlu0 %v2184
        %v2186 = vpop.xlane.xlu0 %2185
        %v2187 = vrcp.pop %v2183
        %v2188 = vrcp.pop %v2186
        %v2189 = vmul.f32 %v2178, %v2187
        %v2190 = vmul.f32 %v2180, %v2188
        %2191 = vrot.lane.b32.xlu0 %v739, 40
        %v2192 = vpop.permute.xlu0 %2191
        %v2195 = vsel %vm754, %v2189, 0
        %2197 = vmatprep.subr.mxu0 0.0
        %2198 = vmatpush1.msra.mxu0 %v2192
        %2199 = vmatprep.subr.mxu0 0.0
        %2200 = vmatpush1.msra.mxu0 0.0
        %2201 = vmatprep.subr.mxu0 0.0
        %2202 = vmatpush1.msra.mxu0 0.0
        %2203 = vmatprep.subr.mxu0 0.0
        %2204 = vmatpush1.msra.mxu0 0.0
        %2205 = vmatprep.subr.mxu0 0.0
        %2206 = vmatpush1.msra.mxu0 0.0
        %2207 = vmatprep.subr.mxu0 0.0
        %2208 = vmatpush1.msra.mxu0 0.0
        %2209 = vmatprep.subr.mxu0 0.0
        %2210 = vmatpush1.msra.mxu0 0.0
        %2211 = vmatprep.subr.mxu0 0.0
        %2212 = vmatpush1.msra.mxu0 0.0
        %2213 = vmatprep.subr.mxu0 0.0
        %2214 = vmatpush1.msra.mxu0 0.0
        %2215 = vmatprep.subr.mxu0 0.0
        %2216 = vmatpush1.msra.mxu0 0.0
        %2217 = vmatprep.subr.mxu0 0.0
        %2218 = vmatpush1.msra.mxu0 0.0
        %2219 = vmatprep.subr.mxu0 0.0
        %2220 = vmatpush1.msra.mxu0 0.0
        %2221 = vmatprep.subr.mxu0 0.0
        %2222 = vmatpush1.msra.mxu0 0.0
        %2223 = vmatprep.subr.mxu0 0.0
        %2224 = vmatpush1.msra.mxu0 0.0
        %2225 = vmatprep.subr.mxu0 0.0
        %2226 = vmatpush1.msra.mxu0 0.0
        %2227 = vmatprep.subr.mxu0 0.0
        %2228 = vmatpush1.msra.mxu0 0.0
        %2229 = vmatprep.subr.mxu0 0.0
        %2230 = vmatpush1.msra.mxu0 0.0
        %2231 = vmatprep.subr.mxu0 0.0
        %2232 = vmatpush1.msra.mxu0 0.0
        %2233 = vmatprep.subr.mxu0 0.0
        %2234 = vmatpush1.msra.mxu0 0.0
        %2235 = vmatprep.subr.mxu0 0.0
        %2236 = vmatpush1.msra.mxu0 0.0
        %2237 = vmatprep.subr.mxu0 0.0
        %2238 = vmatpush1.msra.mxu0 0.0
        %2239 = vmatprep.subr.mxu0 0.0
        %2240 = vmatpush1.msra.mxu0 0.0
        %2241 = vmatprep.subr.mxu0 0.0
        %2242 = vmatpush1.msra.mxu0 0.0
        %2243 = vmatprep.subr.mxu0 0.0
        %2244 = vmatpush1.msra.mxu0 0.0
        %2245 = vmatprep.subr.mxu0 0.0
        %2246 = vmatpush1.msra.mxu0 0.0
        %2247 = vmatprep.subr.mxu0 0.0
        %2248 = vmatpush1.msra.mxu0 0.0
        %2249 = vmatprep.subr.mxu0 0.0
        %2250 = vmatpush1.msra.mxu0 0.0
        %2251 = vmatprep.subr.mxu0 0.0
        %2252 = vmatpush1.msra.mxu0 0.0
        %2253 = vmatprep.subr.mxu0 0.0
        %2254 = vmatpush1.msra.mxu0 0.0
        %2255 = vmatprep.subr.mxu0 0.0
        %2256 = vmatpush1.msra.mxu0 0.0
        %2257 = vmatprep.subr.mxu0 0.0
        %2258 = vmatpush1.msra.mxu0 0.0
        %2259 = vmatprep.subr.mxu0 0.0
        %2260 = vmatpush1.msra.mxu0 0.0
        %2261 = vmatprep.mubr.f32.mxu0 0.0
        %2262 = vmatmul.mubr.f32.gmra.mrb[0].mxu0 %v2195
        %v2263 = vpop.f32.mrb[0].mxu0
        %v2264 = vadd.f32 0.0, %v2263
        %v2265 = vpop.f32.mrb[0].mxu0
        %2266 = vdwg.mxu0
        %2267 = vrot.lane.b32.xlu0 %v744, 40
        %v2268 = vpop.permute.xlu0 %2267
        %v2271 = vsel %vm754, %v2190, 0
        %2273 = vmatprep.subr.mxu0 0.0
        %2274 = vmatpush1.msra.mxu0 %v2268
        %2275 = vmatprep.subr.mxu0 0.0
        %2276 = vmatpush1.msra.mxu0 0.0
        %2277 = vmatprep.subr.mxu0 0.0
        %2278 = vmatpush1.msra.mxu0 0.0
        %2279 = vmatprep.subr.mxu0 0.0
        %2280 = vmatpush1.msra.mxu0 0.0
        %2281 = vmatprep.subr.mxu0 0.0
        %2282 = vmatpush1.msra.mxu0 0.0
        %2283 = vmatprep.subr.mxu0 0.0
        %2284 = vmatpush1.msra.mxu0 0.0
        %2285 = vmatprep.subr.mxu0 0.0
        %2286 = vmatpush1.msra.mxu0 0.0
        %2287 = vmatprep.subr.mxu0 0.0
        %2288 = vmatpush1.msra.mxu0 0.0
        %2289 = vmatprep.subr.mxu0 0.0
        %2290 = vmatpush1.msra.mxu0 0.0
        %2291 = vmatprep.subr.mxu0 0.0
        %2292 = vmatpush1.msra.mxu0 0.0
        %2293 = vmatprep.subr.mxu0 0.0
        %2294 = vmatpush1.msra.mxu0 0.0
        %2295 = vmatprep.subr.mxu0 0.0
        %2296 = vmatpush1.msra.mxu0 0.0
        %2297 = vmatprep.subr.mxu0 0.0
        %2298 = vmatpush1.msra.mxu0 0.0
        %2299 = vmatprep.subr.mxu0 0.0
        %2300 = vmatpush1.msra.mxu0 0.0
        %2301 = vmatprep.subr.mxu0 0.0
        %2302 = vmatpush1.msra.mxu0 0.0
        %2303 = vmatprep.subr.mxu0 0.0
        %2304 = vmatpush1.msra.mxu0 0.0
        %2305 = vmatprep.subr.mxu0 0.0
        %2306 = vmatpush1.msra.mxu0 0.0
        %2307 = vmatprep.subr.mxu0 0.0
        %2308 = vmatpush1.msra.mxu0 0.0
        %2309 = vmatprep.subr.mxu0 0.0
        %2310 = vmatpush1.msra.mxu0 0.0
        %2311 = vmatprep.subr.mxu0 0.0
        %2312 = vmatpush1.msra.mxu0 0.0
        %2313 = vmatprep.subr.mxu0 0.0
        %2314 = vmatpush1.msra.mxu0 0.0
        %2315 = vmatprep.subr.mxu0 0.0
        %2316 = vmatpush1.msra.mxu0 0.0
        %2317 = vmatprep.subr.mxu0 0.0
        %2318 = vmatpush1.msra.mxu0 0.0
        %2319 = vmatprep.subr.mxu0 0.0
        %2320 = vmatpush1.msra.mxu0 0.0
        %2321 = vmatprep.subr.mxu0 0.0
        %2322 = vmatpush1.msra.mxu0 0.0
        %2323 = vmatprep.subr.mxu0 0.0
        %2324 = vmatpush1.msra.mxu0 0.0
        %2325 = vmatprep.subr.mxu0 0.0
        %2326 = vmatpush1.msra.mxu0 0.0
        %2327 = vmatprep.subr.mxu0 0.0
        %2328 = vmatpush1.msra.mxu0 0.0
        %2329 = vmatprep.subr.mxu0 0.0
        %2330 = vmatpush1.msra.mxu0 0.0
        %2331 = vmatprep.subr.mxu0 0.0
        %2332 = vmatpush1.msra.mxu0 0.0
        %2333 = vmatprep.subr.mxu0 0.0
        %2334 = vmatpush1.msra.mxu0 0.0
        %2335 = vmatprep.subr.mxu0 0.0
        %2336 = vmatpush1.msra.mxu0 0.0
        %2337 = vmatprep.mubr.f32.mxu0 0.0
        %2338 = vmatmul.mubr.f32.gmra.mrb[0].mxu0 %v2271
        %v2339 = vpop.f32.mrb[0].mxu0
        %v2340 = vadd.f32 0.0, %v2339
        %v2341 = vpop.f32.mrb[0].mxu0
        %2342 = vdwg.mxu0
        %v2344 = vsel %vm754, %v2264, 0
        %v2347 = vsel %vm754, %v2340, 0
        %2349 = vmatprep.subr.mxu0 0.0
        %2350 = vmatpush1.msra.mxu0 %v750
        %2351 = vmatprep.subr.mxu0 0.0
        %2352 = vmatpush1.msra.mxu0 0.0
        %2353 = vmatprep.subr.mxu0 0.0
        %2354 = vmatpush1.msra.mxu0 0.0
        %2355 = vmatprep.subr.mxu0 0.0
        %2356 = vmatpush1.msra.mxu0 0.0
        %2357 = vmatprep.subr.mxu0 0.0
        %2358 = vmatpush1.msra.mxu0 0.0
        %2359 = vmatprep.subr.mxu0 0.0
        %2360 = vmatpush1.msra.mxu0 0.0
        %2361 = vmatprep.subr.mxu0 0.0
        %2362 = vmatpush1.msra.mxu0 0.0
        %2363 = vmatprep.subr.mxu0 0.0
        %2364 = vmatpush1.msra.mxu0 0.0
        %2365 = vmatprep.subr.mxu0 0.0
        %2366 = vmatpush1.msra.mxu0 0.0
        %2367 = vmatprep.subr.mxu0 0.0
        %2368 = vmatpush1.msra.mxu0 0.0
        %2369 = vmatprep.subr.mxu0 0.0
        %2370 = vmatpush1.msra.mxu0 0.0
        %2371 = vmatprep.subr.mxu0 0.0
        %2372 = vmatpush1.msra.mxu0 0.0
        %2373 = vmatprep.subr.mxu0 0.0
        %2374 = vmatpush1.msra.mxu0 0.0
        %2375 = vmatprep.subr.mxu0 0.0
        %2376 = vmatpush1.msra.mxu0 0.0
        %2377 = vmatprep.subr.mxu0 0.0
        %2378 = vmatpush1.msra.mxu0 0.0
        %2379 = vmatprep.subr.mxu0 0.0
        %2380 = vmatpush1.msra.mxu0 0.0
        %2381 = vmatprep.subr.mxu0 0.0
        %2382 = vmatpush1.msra.mxu0 0.0
        %2383 = vmatprep.subr.mxu0 0.0
        %2384 = vmatpush1.msra.mxu0 0.0
        %2385 = vmatprep.subr.mxu0 0.0
        %2386 = vmatpush1.msra.mxu0 0.0
        %2387 = vmatprep.subr.mxu0 0.0
        %2388 = vmatpush1.msra.mxu0 0.0
        %2389 = vmatprep.subr.mxu0 0.0
        %2390 = vmatpush1.msra.mxu0 0.0
        %2391 = vmatprep.subr.mxu0 0.0
        %2392 = vmatpush1.msra.mxu0 0.0
        %2393 = vmatprep.subr.mxu0 0.0
        %2394 = vmatpush1.msra.mxu0 0.0
        %2395 = vmatprep.subr.mxu0 0.0
        %2396 = vmatpush1.msra.mxu0 0.0
        %2397 = vmatprep.subr.mxu0 0.0
        %2398 = vmatpush1.msra.mxu0 0.0
        %2399 = vmatprep.subr.mxu0 0.0
        %2400 = vmatpush1.msra.mxu0 0.0
        %2401 = vmatprep.subr.mxu0 0.0
        %2402 = vmatpush1.msra.mxu0 0.0
        %2403 = vmatprep.subr.mxu0 0.0
        %2404 = vmatpush1.msra.mxu0 0.0
        %2405 = vmatprep.subr.mxu0 0.0
        %2406 = vmatpush1.msra.mxu0 0.0
        %2407 = vmatprep.subr.mxu0 0.0
        %2408 = vmatpush1.msra.mxu0 0.0
        %2409 = vmatprep.subr.mxu0 0.0
        %2410 = vmatpush1.msra.mxu0 0.0
        %2411 = vmatprep.subr.mxu0 0.0
        %2412 = vmatpush1.msra.mxu0 0.0
        %2413 = vmatprep.mubr.f32.mxu0 0.0
        %2414 = vmatmul.mubr.f32.gmra.mrb[0].mxu0 %v2344
        %v2415 = vpop.f32.mrb[0].mxu0
        %v2416 = vadd.f32 0.0, %v2415
        %v2417 = vpop.f32.mrb[0].mxu0
        %2418 = vmatprep.mubr.f32.mxu0 0.0
        %2419 = vmatmul.mubr.f32.gmra.mrb[0].mxu0 %v2347
        %v2420 = vpop.f32.mrb[0].mxu0
        %v2421 = vadd.f32 0.0, %v2420
        %v2422 = vpop.f32.mrb[0].mxu0
        %2423 = vdwg.mxu0
        %v2424 = vadd.f32 %v2007, %v2416
        %v2425 = vadd.f32 %v2008, %v2421
        %v2426 = vld [vmem:[%s612] sm:$0x1]
        %v2428 = vlaneseq
        %v2429 = vshrl.u32 %v2428, 7
        %v2430 = vsub.s32 0, %v2429
        %v2431 = vrot.slane %v2426, %v2430
        %v2433 = vadd.f32 %v2424, %v2431
        %v2434 = vadd.f32 %v2425, %v2431
        %v2435 = vadd.f32 %v2433, %v650
        %v2436 = vadd.f32 %v2434, %v651
        %v2437 = vld [vmem:[%s615] sm:$0x1]
        %v2438 = vld [vmem:[%s618] sm:$0x1]
        %v2439 = vsel %vm665, %v2435, 0.0
        %2440 = vadd.xlane.f32.xlu0 %v2439
        %v2441 = vpop.xlane.xlu0 %2440
        %v2442 = vsel %vm665, %v2436, 0.0
        %2443 = vadd.xlane.f32.xlu0 %v2442
        %v2444 = vpop.xlane.xlu0 %2443
        %v2445 = vrcp.pop 32.0
        %v2446 = vmul.f32 %v2441, %v2445
        %v2447 = vmul.f32 %v2444, %v2445
        %v2448 = vsub.f32 %v2435, %v2446
        %v2449 = vsub.f32 %v2436, %v2447
        %v2450 = vmul.f32 %v2448, %v2448
        %v2451 = vmul.f32 %v2449, %v2449
        %v2452 = vsel %vm665, %v2450, 0.0
        %2453 = vadd.xlane.f32.xlu0 %v2452
        %v2454 = vpop.xlane.xlu0 %2453
        %v2455 = vsel %vm665, %v2451, 0.0
        %2456 = vadd.xlane.f32.xlu0 %v2455
        %v2457 = vpop.xlane.xlu0 %2456
        %v2458 = vmul.f32 %v2454, %v2445
        %v2459 = vmul.f32 %v2457, %v2445
        %v2460 = vadd.f32 %v2458, 1e-05
        %v2461 = vadd.f32 %v2459, 1e-05
        %v2462 = vrsqrt.pop %v2460
        %v2463 = vrsqrt.pop %v2461
        %v2464 = vmul.f32 %v2448, %v2462
        %v2465 = vmul.f32 %v2449, %v2463
        %v2467 = vlaneseq
        %v2468 = vshrl.u32 %v2467, 7
        %v2469 = vsub.s32 0, %v2468
        %v2470 = vrot.slane %v2437, %v2469
        %v2472 = vmul.f32 %v2464, %v2470
        %v2473 = vmul.f32 %v2465, %v2470
        %v2475 = vlaneseq
        %v2476 = vshrl.u32 %v2475, 7
        %v2477 = vsub.s32 0, %v2476
        %v2478 = vrot.slane %v2438, %v2477
        %v2480 = vadd.f32 %v2472, %v2478
        %v2481 = vadd.f32 %v2473, %v2478
        %v2482 = vld [vmem:[%s623] sm:$0xff]
        %v2483 = vld [vmem:[%s623 + $0x8] sm:$0xff]
        %v2484 = vld [vmem:[%s623 + $0x10] sm:$0xff]
        %v2485 = vld [vmem:[%s623 + $0x18] sm:$0xff]
        %v2486 = vld [vmem:[%s626] sm:$0x1]
        %v2488 = vlaneseq
        %v2489 = vshrl.u32 %v2488, 7
        %v2490 = vsub.s32 0, %v2489
        %v2491 = vrot.slane %v2486, %v2490
        %v2494 = vsel %vm665, %v2480, 0
        %v2497 = vsel %vm665, %v2481, 0
        %2499 = vmatprep.subr.mxu0 0.0
        %2500 = vmatpush1.msra.mxu0 %v2482
        %2501 = vmatprep.subr.mxu0 0.0
        %2502 = vmatpush1.msra.mxu0 %v2483
        %2503 = vmatprep.subr.mxu0 0.0
        %2504 = vmatpush1.msra.mxu0 %v2484
        %2505 = vmatprep.subr.mxu0 0.0
        %2506 = vmatpush1.msra.mxu0 %v2485
        %2507 = vmatprep.subr.mxu0 0.0
        %2508 = vmatpush1.msra.mxu0 0.0
        %2509 = vmatprep.subr.mxu0 0.0
        %2510 = vmatpush1.msra.mxu0 0.0
        %2511 = vmatprep.subr.mxu0 0.0
        %2512 = vmatpush1.msra.mxu0 0.0
        %2513 = vmatprep.subr.mxu0 0.0
        %2514 = vmatpush1.msra.mxu0 0.0
        %2515 = vmatprep.subr.mxu0 0.0
        %2516 = vmatpush1.msra.mxu0 0.0
        %2517 = vmatprep.subr.mxu0 0.0
        %2518 = vmatpush1.msra.mxu0 0.0
        %2519 = vmatprep.subr.mxu0 0.0
        %2520 = vmatpush1.msra.mxu0 0.0
        %2521 = vmatprep.subr.mxu0 0.0
        %2522 = vmatpush1.msra.mxu0 0.0
        %2523 = vmatprep.subr.mxu0 0.0
        %2524 = vmatpush1.msra.mxu0 0.0
        %2525 = vmatprep.subr.mxu0 0.0
        %2526 = vmatpush1.msra.mxu0 0.0
        %2527 = vmatprep.subr.mxu0 0.0
        %2528 = vmatpush1.msra.mxu0 0.0
        %2529 = vmatprep.subr.mxu0 0.0
        %2530 = vmatpush1.msra.mxu0 0.0
        %2531 = vmatprep.subr.mxu0 0.0
        %2532 = vmatpush1.msra.mxu0 0.0
        %2533 = vmatprep.subr.mxu0 0.0
        %2534 = vmatpush1.msra.mxu0 0.0
        %2535 = vmatprep.subr.mxu0 0.0
        %2536 = vmatpush1.msra.mxu0 0.0
        %2537 = vmatprep.subr.mxu0 0.0
        %2538 = vmatpush1.msra.mxu0 0.0
        %2539 = vmatprep.subr.mxu0 0.0
        %2540 = vmatpush1.msra.mxu0 0.0
        %2541 = vmatprep.subr.mxu0 0.0
        %2542 = vmatpush1.msra.mxu0 0.0
        %2543 = vmatprep.subr.mxu0 0.0
        %2544 = vmatpush1.msra.mxu0 0.0
        %2545 = vmatprep.subr.mxu0 0.0
        %2546 = vmatpush1.msra.mxu0 0.0
        %2547 = vmatprep.subr.mxu0 0.0
        %2548 = vmatpush1.msra.mxu0 0.0
        %2549 = vmatprep.subr.mxu0 0.0
        %2550 = vmatpush1.msra.mxu0 0.0
        %2551 = vmatprep.subr.mxu0 0.0
        %2552 = vmatpush1.msra.mxu0 0.0
        %2553 = vmatprep.subr.mxu0 0.0
        %2554 = vmatpush1.msra.mxu0 0.0
        %2555 = vmatprep.subr.mxu0 0.0
        %2556 = vmatpush1.msra.mxu0 0.0
        %2557 = vmatprep.subr.mxu0 0.0
        %2558 = vmatpush1.msra.mxu0 0.0
        %2559 = vmatprep.subr.mxu0 0.0
        %2560 = vmatpush1.msra.mxu0 0.0
        %2561 = vmatprep.subr.mxu0 0.0
        %2562 = vmatpush1.msra.mxu0 0.0
        %2563 = vmatprep.mubr.f32.mxu0 0.0
        %2564 = vmatmul.mubr.f32.gmra.mrb[0].mxu0 %v2494
        %v2565 = vpop.f32.mrb[0].mxu0
        %v2566 = vadd.f32 %v2491, %v2565
        %v2567 = vpop.f32.mrb[0].mxu0
        %2568 = vmatprep.mubr.f32.mxu0 0.0
        %2569 = vmatmul.mubr.f32.gmra.mrb[0].mxu0 %v2497
        %v2570 = vpop.f32.mrb[0].mxu0
        %v2571 = vadd.f32 %v2491, %v2570
        %v2572 = vpop.f32.mrb[0].mxu0
        %2573 = vdwg.mxu0
        %v2574 = vmul.f32 %v2566, 0.5
        %v2575 = vmul.f32 %v2571, 0.5
        %v2576 = vrcp.pop 1.4142135
        %v2577 = vmul.f32 %v2566, %v2576
        %v2578 = vmul.f32 %v2571, %v2576
        %v2579 = verf.f32.pop %v2577
        %v2580 = verf.f32.pop %v2578
        %v2581 = vadd.f32 %v2579, 1.0
        %v2582 = vadd.f32 %v2580, 1.0
        %v2583 = vmul.f32 %v2574, %v2581
        %v2584 = vmul.f32 %v2575, %v2582
        %v2585 = vld [vmem:[%s631] sm:$0xff]
        %v2586 = vld [vmem:[%s631 + $0x8] sm:$0xff]
        %v2587 = vld [vmem:[%s631 + $0x10] sm:$0xff]
        %v2588 = vld [vmem:[%s631 + $0x18] sm:$0xff]
        %v2589 = vld [vmem:[%s631 + $0x20] sm:$0xff]
        %v2590 = vld [vmem:[%s631 + $0x28] sm:$0xff]
        %v2591 = vld [vmem:[%s631 + $0x30] sm:$0xff]
        %v2592 = vld [vmem:[%s631 + $0x38] sm:$0xff]
        %v2593 = vld [vmem:[%s634] sm:$0x1]
        %v2595 = vlaneseq
        %v2596 = vshrl.u32 %v2595, 7
        %v2597 = vsub.s32 0, %v2596
        %v2598 = vrot.slane %v2593, %v2597
        %vm2600 = vcmask 523264
        %v2602 = vsel %vm2600, %v2583, 0
        %v2605 = vsel %vm2600, %v2584, 0
        %2607 = vmatprep.subr.mxu0 0.0
        %2608 = vmatpush1.msra.mxu0 %v2585
        %2609 = vmatprep.subr.mxu0 0.0
        %2610 = vmatpush1.msra.mxu0 %v2586
        %2611 = vmatprep.subr.mxu0 0.0
        %2612 = vmatpush1.msra.mxu0 %v2587
        %2613 = vmatprep.subr.mxu0 0.0
        %2614 = vmatpush1.msra.mxu0 %v2588
        %2615 = vmatprep.subr.mxu0 0.0
        %2616 = vmatpush1.msra.mxu0 %v2589
        %2617 = vmatprep.subr.mxu0 0.0
        %2618 = vmatpush1.msra.mxu0 %v2590
        %2619 = vmatprep.subr.mxu0 0.0
        %2620 = vmatpush1.msra.mxu0 %v2591
        %2621 = vmatprep.subr.mxu0 0.0
        %2622 = vmatpush1.msra.mxu0 %v2592
        %2623 = vmatprep.subr.mxu0 0.0
        %2624 = vmatpush1.msra.mxu0 0.0
        %2625 = vmatprep.subr.mxu0 0.0
        %2626 = vmatpush1.msra.mxu0 0.0
        %2627 = vmatprep.subr.mxu0 0.0
        %2628 = vmatpush1.msra.mxu0 0.0
        %2629 = vmatprep.subr.mxu0 0.0
        %2630 = vmatpush1.msra.mxu0 0.0
        %2631 = vmatprep.subr.mxu0 0.0
        %2632 = vmatpush1.msra.mxu0 0.0
        %2633 = vmatprep.subr.mxu0 0.0
        %2634 = vmatpush1.msra.mxu0 0.0
        %2635 = vmatprep.subr.mxu0 0.0
        %2636 = vmatpush1.msra.mxu0 0.0
        %2637 = vmatprep.subr.mxu0 0.0
        %2638 = vmatpush1.msra.mxu0 0.0
        %2639 = vmatprep.subr.mxu0 0.0
        %2640 = vmatpush1.msra.mxu0 0.0
        %2641 = vmatprep.subr.mxu0 0.0
        %2642 = vmatpush1.msra.mxu0 0.0
        %2643 = vmatprep.subr.mxu0 0.0
        %2644 = vmatpush1.msra.mxu0 0.0
        %2645 = vmatprep.subr.mxu0 0.0
        %2646 = vmatpush1.msra.mxu0 0.0
        %2647 = vmatprep.subr.mxu0 0.0
        %2648 = vmatpush1.msra.mxu0 0.0
        %2649 = vmatprep.subr.mxu0 0.0
        %2650 = vmatpush1.msra.mxu0 0.0
        %2651 = vmatprep.subr.mxu0 0.0
        %2652 = vmatpush1.msra.mxu0 0.0
        %2653 = vmatprep.subr.mxu0 0.0
        %2654 = vmatpush1.msra.mxu0 0.0
        %2655 = vmatprep.subr.mxu0 0.0
        %2656 = vmatpush1.msra.mxu0 0.0
        %2657 = vmatprep.subr.mxu0 0.0
        %2658 = vmatpush1.msra.mxu0 0.0
        %2659 = vmatprep.subr.mxu0 0.0
        %2660 = vmatpush1.msra.mxu0 0.0
        %2661 = vmatprep.subr.mxu0 0.0
        %2662 = vmatpush1.msra.mxu0 0.0
        %2663 = vmatprep.subr.mxu0 0.0
        %2664 = vmatpush1.msra.mxu0 0.0
        %2665 = vmatprep.subr.mxu0 0.0
        %2666 = vmatpush1.msra.mxu0 0.0
        %2667 = vmatprep.subr.mxu0 0.0
        %2668 = vmatpush1.msra.mxu0 0.0
        %2669 = vmatprep.subr.mxu0 0.0
        %2670 = vmatpush1.msra.mxu0 0.0
        %2671 = vmatprep.mubr.f32.mxu0 0.0
        %2672 = vmatmul.mubr.f32.gmra.mrb[0].mxu0 %v2602
        %v2673 = vpop.f32.mrb[0].mxu0
        %v2674 = vadd.f32 %v2598, %v2673
        %v2675 = vpop.f32.mrb[0].mxu0
        %2676 = vmatprep.mubr.f32.mxu0 0.0
        %2677 = vmatmul.mubr.f32.gmra.mrb[0].mxu0 %v2605
        %v2678 = vpop.f32.mrb[0].mxu0
        %v2679 = vadd.f32 %v2598, %v2678
        %v2680 = vpop.f32.mrb[0].mxu0
        %2681 = vdwg.mxu0
        %v2682 = vadd.f32 %v2674, %v2480
        %v2683 = vadd.f32 %v2679, %v2481
        %v2684 = vld [vmem:[%s637] sm:$0x1]
        %v2685 = vld [vmem:[%s640] sm:$0x1]
        %v2686 = vsel %vm665, %v2682, 0.0
        %2687 = vadd.xlane.f32.xlu0 %v2686
        %v2688 = vpop.xlane.xlu0 %2687
        %v2689 = vsel %vm665, %v2683, 0.0
        %2690 = vadd.xlane.f32.xlu0 %v2689
        %v2691 = vpop.xlane.xlu0 %2690
        %v2692 = vmul.f32 %v2688, %v2445
        %v2693 = vmul.f32 %v2691, %v2445
        %v2694 = vsub.f32 %v2682, %v2692
        %v2695 = vsub.f32 %v2683, %v2693
        %v2696 = vmul.f32 %v2694, %v2694
        %v2697 = vmul.f32 %v2695, %v2695
        %v2698 = vsel %vm665, %v2696, 0.0
        %2699 = vadd.xlane.f32.xlu0 %v2698
        %v2700 = vpop.xlane.xlu0 %2699
        %v2701 = vsel %vm665, %v2697, 0.0
        %2702 = vadd.xlane.f32.xlu0 %v2701
        %v2703 = vpop.xlane.xlu0 %2702
        %v2704 = vmul.f32 %v2700, %v2445
        %v2705 = vmul.f32 %v2703, %v2445
        %v2706 = vadd.f32 %v2704, 1e-05
        %v2707 = vadd.f32 %v2705, 1e-05
        %v2708 = vrsqrt.pop %v2706
        %v2709 = vrsqrt.pop %v2707
        %v2710 = vmul.f32 %v2694, %v2708
        %v2711 = vmul.f32 %v2695, %v2709
        %v2713 = vlaneseq
        %v2714 = vshrl.u32 %v2713, 7
        %v2715 = vsub.s32 0, %v2714
        %v2716 = vrot.slane %v2684, %v2715
        %v2718 = vmul.f32 %v2710, %v2716
        %v2719 = vmul.f32 %v2711, %v2716
        %v2721 = vlaneseq
        %v2722 = vshrl.u32 %v2721, 7
        %v2723 = vsub.s32 0, %v2722
        %v2724 = vrot.slane %v2685, %v2723
        %v2726 = vadd.f32 %v2718, %v2724
        %v2727 = vadd.f32 %v2719, %v2724
        %2728 = vst.msk [vmem:[#allocation2] sm:$0xff] %vm665, %v2726
        %2729 = vst.msk [vmem:[#allocation2 + $0x8] sm:$0xff] %vm665, %v2727
        %p2730 = scmp.eq.s32.totalorder %s27, 1
        // Predicated region
        $region85: #{tpu_custom_call.1} parent=75 // pred_check
          %p2731 = pneg %p2730
        $region86: #{tpu_custom_call.1} parent=75 // pred_check_branch
          %2733 = sbr.rel (%p2731) target = $region88
        $region87: #{tpu_custom_call.1} parent=75 // pred_region
          %2734 = vst.msk [vmem:[#allocation6] sm:$0xff] %vm665, %v2726
          %2735 = vst.msk [vmem:[#allocation6 + $0x8] sm:$0xff] %vm665, %v2727
        $region88: #{tpu_custom_call.1} parent=75 // pred_fallthru
          _
        // Predicated region
        $region89: #{tpu_custom_call.1} parent=75 // pred_check
          %p2736 = pneg %p394
        $region90: #{tpu_custom_call.1} parent=75 // pred_check_branch
          %2738 = sbr.rel (%p2736) target = $region92
        $region91: #{tpu_custom_call.1} parent=75 // pred_region
          %s2740 = ssub.s32 256, 256
          %2741 = vsyncadd [#allocation5], %s2740
          %s2742 = sshll.u32 [#allocation6], 4
          %s2743 = int_to_ptr.vmem [resolvable:$true] %s2742
          %2748 = dma.vmem_to_hbm [thread:$0]  %s2743, 256, %s14, [#allocation5], 128, 128, 8
        $region92: #{tpu_custom_call.1} parent=75 // pred_fallthru
          _
        // Predicated region
        $region93: #{tpu_custom_call.1} parent=75 // pred_check
          %p2749 = pneg %p394
        $region94: #{tpu_custom_call.1} parent=75 // pred_check_branch
          %2751 = sbr.rel (%p2749) target = $region96
        $region95: #{tpu_custom_call.1} parent=75 // pred_region
          %2752 = dma.done [#allocation5], 256
        $region96: #{tpu_custom_call.1} parent=75 // pred_fallthru
          _
      $region76: #{tpu_custom_call.1} parent=5 // pred_fallthru
        _
      %p2753 = scmp.le.s32.totalorder 2, %s22
      // Predicated region
      $region97: #{tpu_custom_call.1} parent=5 // pred_check
        %p2754 = pneg %p2753
      $region98: #{tpu_custom_call.1} parent=5 // pred_check_branch
        %2756 = sbr.rel (%p2754) target = $region100
      $region99: #{tpu_custom_call.1} parent=5 // pred_region
        %s2757 = ssub.s32 %s22, 2
      $region100: #{tpu_custom_call.1} parent=5 // pred_fallthru
        _
    $region6: #{tpu_custom_call.1} parent=1 // loop_footer
      %s26 = sadd.s32 1, %s22
    $region7: #{tpu_custom_call.1} parent=1 // loop_footer_branch
      %21 = sbr.rel target = $region3
    $region8: #{tpu_custom_call.1} parent=1 // loop_exit
      _
    %2758 = vsyncpa [#allocation4], 1
    %s2759 = scalar_lea.sflag [#allocation4], 1
    %2760 = vsyncpa %s2759, 1
    %2761 = vsyncpa [#allocation5], 1
    %s2762 = scalar_lea.sflag [#allocation5], 1
    %2763 = vsyncpa %s2762, 1

</llo_original>
